<compile_context>
chip_gen: v7x
topology: tpu7x:2x2x1
jax: 0.10.0
libtpu: 0.0.40
codegen_flags: <defaults>
</compile_context>

<pallas_src>
import functools

import jax
import jax.numpy as jnp
from jax import lax
from jax.experimental import pallas as pl
from jax.experimental.pallas import tpu as pltpu


def _basic_block_kernel(x_ref, w1_ref, b1_ref, w2_ref, b2_ref, out_ref,
                        pad_ref):
    """One batch tile per grid step.

    x_ref   : (B, H,   W,   Cin)   input block (also the residual)
    w1_ref  : (9*Cin, Cout)        conv1 weights, im2col layout, BN1 scale folded
    b1_ref  : (1, Cout)            BN1 folded bias
    w2_ref  : (9*Cout, Cout)       conv2 weights, im2col layout, BN2 scale folded
    b2_ref  : (1, Cout)            BN2 folded bias
    out_ref : (B, H, W, Cout)
    pad_ref : VMEM (B, H+2, W+2, C)  zero-halo padded scratch, shared by both
              convs (Cin == Cout for stride=1 / downsample=None)
    """
    B, H, W, cin = x_ref.shape
    cout = out_ref.shape[3]
    M = B * H * W
    cdt = pad_ref.dtype

    # --- zero only the 1-pixel halo of the pad scratch ------------------------
    # The interior is fully overwritten before every use, so a full-scratch
    # zero is wasted stores; zeroing the halo each step is cheap and stays
    # correct under megacore grid partitioning (unlike a program_id==0 guard,
    # which would leave the second core's scratch uninitialized).
    zrow = jnp.zeros((B, 1, W + 2, cin), cdt)
    zcol = jnp.zeros((B, H + 2, 1, cin), cdt)
    pad_ref[:, 0:1, :, :] = zrow
    pad_ref[:, H + 1:H + 2, :, :] = zrow
    pad_ref[:, :, 0:1, :] = zcol
    pad_ref[:, :, W + 1:W + 2, :] = zcol

    # Read the input block once; reused for the pad copy and the residual add.
    xv = x_ref[...]

    # --- conv1 (3x3, stride 1, pad 1): im2col -> ONE MXU matmul, K = 9*Cin ----
    pad_ref[:, 1:H + 1, 1:W + 1, :] = xv
    taps1 = [pad_ref[:, dy:dy + H, dx:dx + W, :]
             for dy in range(3) for dx in range(3)]
    patch1 = jnp.concatenate(taps1, axis=-1).reshape(M, 9 * cin)
    acc1 = jnp.dot(patch1, w1_ref[...], preferred_element_type=jnp.float32)

    # --- BN1 (scale already folded into w1) bias + ReLU -----------------------
    out1 = jnp.maximum(acc1 + b1_ref[...], 0.0)          # (M, Cout), f32

    # --- conv2 (3x3, stride 1, pad 1): reuse the SAME pad scratch -------------
    # The conv1 taps above are loads whose values feed `out1`, so this store
    # is ordered after them; the halo is still zero.
    pad_ref[:, 1:H + 1, 1:W + 1, :] = out1.astype(cdt).reshape(B, H, W, cout)
    taps2 = [pad_ref[:, dy:dy + H, dx:dx + W, :]
             for dy in range(3) for dx in range(3)]
    patch2 = jnp.concatenate(taps2, axis=-1).reshape(M, 9 * cout)
    acc2 = jnp.dot(patch2, w2_ref[...], preferred_element_type=jnp.float32)

    # --- BN2 bias + residual add + ReLU ---------------------------------------
    out2 = (acc2 + b2_ref[...]).reshape(B, H, W, cout)
    out2 = out2 + xv.astype(jnp.float32)
    out_ref[...] = jnp.maximum(out2, 0.0).astype(out_ref.dtype)


def _default_batch_tile(n, per_image_bytes, budget=16 * 1024 * 1024):
    """Largest batch tile that keeps >= 2 grid steps (megacore) and fits the
    per-step VMEM budget (input/output blocks double-buffered + scratch)."""
    if n <= 1:
        return 1
    best = 1
    for bt in range(1, n // 2 + 1):
        if n % bt == 0 and bt * per_image_bytes <= budget:
            best = bt
    return best


@functools.partial(jax.jit,
                   static_argnames=("eps", "compute_dtype", "batch_tile"))
def basic_block_forward(x_nchw, w1_oihw, g1, beta1, m1, v1,
                        w2_oihw, g2, beta2, m2, v2, eps=1e-5,
                        compute_dtype=jnp.float32, batch_tile=None):
    """BasicBlock forward (stride=1, downsample=None). Input/output are NCHW."""
    N, Cin, H, W = x_nchw.shape
    Cout = w1_oihw.shape[0]
    assert w1_oihw.shape[1] == Cin
    assert Cin == Cout, "stride=1 / downsample=None requires inplanes == planes"

    out_dtype = x_nchw.dtype
    cbytes = jnp.dtype(compute_dtype).itemsize
    obytes = jnp.dtype(out_dtype).itemsize

    if batch_tile is None:
        # Conservative per-image VMEM estimate: double-buffered in/out blocks,
        # shared pad scratch, live patch matrix and f32 intermediates.
        per_image = (2 * H * W * Cin * cbytes
                     + 2 * H * W * Cout * obytes
                     + (H + 2) * (W + 2) * Cin * cbytes
                     + H * W * 9 * Cin * cbytes
                     + 2 * H * W * Cout * 4)
        batch_tile = _default_batch_tile(N, per_image)
    assert N % batch_tile == 0

    # Fold BN running stats (eval mode): scale goes into the conv weights,
    # only the per-channel bias stays for the in-kernel epilogue.
    s1 = g1 / jnp.sqrt(v1 + eps)
    b1 = beta1 - m1 * s1
    s2 = g2 / jnp.sqrt(v2 + eps)
    b2 = beta2 - m2 * s2

    # OIHW -> HWIO, scale output channels, flatten to im2col weight matrices.
    # Row index = (dy*3 + dx)*Cin + ci, matching the in-kernel tap order.
    w1m = (jnp.transpose(w1_oihw, (2, 3, 1, 0)) * s1).reshape(9 * Cin, Cout)
    w2m = (jnp.transpose(w2_oihw, (2, 3, 1, 0)) * s2).reshape(9 * Cout, Cout)
    w1m = w1m.astype(compute_dtype)
    w2m = w2m.astype(compute_dtype)
    b1r = b1.reshape(1, Cout).astype(jnp.float32)
    b2r = b2.reshape(1, Cout).astype(jnp.float32)

    # NCHW -> NHWC; matmul operands in compute_dtype (bf16 on v6e/v7x halves
    # HBM/VMEM traffic and doubles MXU throughput; epilogue stays f32).
    x = jnp.transpose(x_nchw, (0, 2, 3, 1)).astype(compute_dtype)

    flops = 2 * N * H * W * 9 * (Cin * Cout + Cout * Cout)
    bytes_accessed = (N * H * W * Cin * cbytes
                      + N * H * W * Cout * obytes
                      + (9 * Cin * Cout + 9 * Cout * Cout) * cbytes
                      + 2 * Cout * 4)

    out_nhwc = pl.pallas_call(
        _basic_block_kernel,
        out_shape=jax.ShapeDtypeStruct((N, H, W, Cout), out_dtype),
        grid_spec=pltpu.PrefetchScalarGridSpec(
            num_scalar_prefetch=0,
            grid=(N // batch_tile,),
            in_specs=[
                pl.BlockSpec((batch_tile, H, W, Cin), lambda n: (n, 0, 0, 0)),
                pl.BlockSpec((9 * Cin, Cout), lambda n: (0, 0)),
                pl.BlockSpec((1, Cout), lambda n: (0, 0)),
                pl.BlockSpec((9 * Cout, Cout), lambda n: (0, 0)),
                pl.BlockSpec((1, Cout), lambda n: (0, 0)),
            ],
            out_specs=pl.BlockSpec((batch_tile, H, W, Cout),
                                   lambda n: (n, 0, 0, 0)),
            scratch_shapes=[
                pltpu.VMEM((batch_tile, H + 2, W + 2, Cin), compute_dtype),
            ],
        ),
        compiler_params=pltpu.CompilerParams(
            dimension_semantics=("parallel",),
            vmem_limit_bytes=32 * 1024 * 1024),
        cost_estimate=pl.CostEstimate(flops=flops, transcendentals=0,
                                      bytes_accessed=bytes_accessed),
    )(x, w1m, b1r, w2m, b2r)

    return jnp.transpose(out_nhwc, (0, 3, 1, 2))  # back to NCHW


def _reference_forward(x_nchw, w1, g1, beta1, m1, v1,
                       w2, g2, beta2, m2, v2, eps=1e-5):
    """Pure-JAX reference (eval-mode BN), NCHW, for correctness checking."""
    def conv(x, w):
        return lax.conv_general_dilated(
            x, w, window_strides=(1, 1), padding=((1, 1), (1, 1)),
            dimension_numbers=("NCHW", "OIHW", "NCHW"))

    def bn(x, g, b, m, v):
        s = g / jnp.sqrt(v + eps)
        return x * s[None, :, None, None] + (b - m * s)[None, :, None, None]

    out = jnp.maximum(bn(conv(x_nchw, w1), g1, beta1, m1, v1), 0.0)
    out = bn(conv(out, w2), g2, beta2, m2, v2)
    return jnp.maximum(out + x_nchw, 0.0)


if __name__ == "__main__":
    key = jax.random.PRNGKey(0)
    N, C, H, W = 2, 4, 16, 16     # inplanes = planes = 4, stride = 1
    keys = jax.random.split(key, 12)

    x = jax.random.normal(keys[0], (N, C, H, W), jnp.float32)

    # conv weights (PyTorch OIHW shape: [out, in, 3, 3]), bias=False
    w1 = jax.random.normal(keys[1], (C, C, 3, 3), jnp.float32) * 0.1
    w2 = jax.random.normal(keys[2], (C, C, 3, 3), jnp.float32) * 0.1

    # BN1 / BN2 parameters and running stats
    g1 = 1.0 + 0.1 * jax.random.normal(keys[3], (C,), jnp.float32)
    beta1 = 0.1 * jax.random.normal(keys[4], (C,), jnp.float32)
    m1 = 0.1 * jax.random.normal(keys[5], (C,), jnp.float32)
    v1 = 1.0 + 0.1 * jax.random.uniform(keys[6], (C,), jnp.float32)

    g2 = 1.0 + 0.1 * jax.random.normal(keys[7], (C,), jnp.float32)
    beta2 = 0.1 * jax.random.normal(keys[8], (C,), jnp.float32)
    m2 = 0.1 * jax.random.normal(keys[9], (C,), jnp.float32)
    v2 = 1.0 + 0.1 * jax.random.uniform(keys[10], (C,), jnp.float32)

    ref = _reference_forward(x, w1, g1, beta1, m1, v1,
                             w2, g2, beta2, m2, v2)

    # f32 path, one image per grid step (>= 2 parallel steps -> megacore).
    out = basic_block_forward(x, w1, g1, beta1, m1, v1,
                              w2, g2, beta2, m2, v2)
    out = jax.block_until_ready(out)
    assert out.shape == (N, C, H, W)
    assert jnp.max(jnp.abs(out - ref)) < 1e-4, "mismatch vs pure-JAX reference"

    # f32 path, co-batched: both images in one grid step (bigger MXU M).
    out_b = basic_block_forward(x, w1, g1, beta1, m1, v1,
                                w2, g2, beta2, m2, v2, batch_tile=2)
    out_b = jax.block_until_ready(out_b)
    assert jnp.max(jnp.abs(out_b - ref)) < 1e-4, "mismatch (batch_tile=2)"

    # bf16 matmul operands (v6e/v7x fast path); accumulation/epilogue in f32.
    out_bf16 = basic_block_forward(x, w1, g1, beta1, m1, v1,
                                   w2, g2, beta2, m2, v2,
                                   compute_dtype=jnp.bfloat16)
    out_bf16 = jax.block_until_ready(out_bf16)
    assert jnp.max(jnp.abs(out_bf16 - ref)) < 0.25, "mismatch (bf16 path)"

    print("KERNEL_OK")
</pallas_src>

<mosaic_0001>
module attributes {stable_mosaic.version = 11 : i64} {
  func.func @_basic_block_kernel(%arg0: i32, %arg1: memref<1x16x16x4xf32, #tpu.memory_space<vmem>>, %arg2: memref<36x4xf32, #tpu.memory_space<vmem>>, %arg3: memref<1x4xf32, #tpu.memory_space<vmem>>, %arg4: memref<36x4xf32, #tpu.memory_space<vmem>>, %arg5: memref<1x4xf32, #tpu.memory_space<vmem>>, %arg6: memref<1x16x16x4xf32, #tpu.memory_space<vmem>>, %arg7: memref<1x18x18x4xf32, #tpu.memory_space<vmem>>) attributes {dimension_semantics = [#tpu.dimension_semantics<parallel>], iteration_bounds = array<i64: 2>, scalar_prefetch = 0 : i64, scratch_operands = 1 : i64, tpu.core_type = #tpu.core_type<tc>, window_params = [{transform_indices = @transform_0, window_bounds = array<i64: 1, 16, 16, 4>}, {pipeline_mode = #tpu.pipeline_mode<synchronous>, transform_indices = @transform_1, window_bounds = array<i64: 36, 4>}, {pipeline_mode = #tpu.pipeline_mode<synchronous>, transform_indices = @transform_2, window_bounds = array<i64: 1, 4>}, {pipeline_mode = #tpu.pipeline_mode<synchronous>, transform_indices = @transform_3, window_bounds = array<i64: 36, 4>}, {pipeline_mode = #tpu.pipeline_mode<synchronous>, transform_indices = @transform_4, window_bounds = array<i64: 1, 4>}, {transform_indices = @transform_5, window_bounds = array<i64: 1, 16, 16, 4>}]} {
    %cst = arith.constant 0.000000e+00 : f32
    %0 = vector.broadcast %cst : f32 to vector<1x1x18x4xf32>
    %cst_0 = arith.constant 0.000000e+00 : f32
    %1 = vector.broadcast %cst_0 : f32 to vector<1x18x1x4xf32>
    %c0 = arith.constant 0 : index
    %c0_1 = arith.constant 0 : index
    %c0_2 = arith.constant 0 : index
    %c0_3 = arith.constant 0 : index
    %2 = vector.load %arg7[%c0, %c0_1, %c0_2, %c0_3] : memref<1x18x18x4xf32, #tpu.memory_space<vmem>>, vector<1x1x18x4xf32>
    tpu.vector_store %arg7[%c0, %c0_1, %c0_2, %c0_3], %0 {strides = array<i32>} : memref<1x18x18x4xf32, #tpu.memory_space<vmem>>, vector<1x1x18x4xf32>,
    %c0_4 = arith.constant 0 : index
    %c17 = arith.constant 17 : index
    %c0_5 = arith.constant 0 : index
    %c0_6 = arith.constant 0 : index
    %3 = vector.load %arg7[%c0_4, %c17, %c0_5, %c0_6] : memref<1x18x18x4xf32, #tpu.memory_space<vmem>>, vector<1x1x18x4xf32>
    tpu.vector_store %arg7[%c0_4, %c17, %c0_5, %c0_6], %0 {strides = array<i32>} : memref<1x18x18x4xf32, #tpu.memory_space<vmem>>, vector<1x1x18x4xf32>,
    %c0_7 = arith.constant 0 : index
    %c0_8 = arith.constant 0 : index
    %c0_9 = arith.constant 0 : index
    %c0_10 = arith.constant 0 : index
    %4 = vector.load %arg7[%c0_7, %c0_8, %c0_9, %c0_10] : memref<1x18x18x4xf32, #tpu.memory_space<vmem>>, vector<1x18x1x4xf32>
    tpu.vector_store %arg7[%c0_7, %c0_8, %c0_9, %c0_10], %1 {strides = array<i32>} : memref<1x18x18x4xf32, #tpu.memory_space<vmem>>, vector<1x18x1x4xf32>,
    %c0_11 = arith.constant 0 : index
    %c0_12 = arith.constant 0 : index
    %c17_13 = arith.constant 17 : index
    %c0_14 = arith.constant 0 : index
    %5 = vector.load %arg7[%c0_11, %c0_12, %c17_13, %c0_14] : memref<1x18x18x4xf32, #tpu.memory_space<vmem>>, vector<1x18x1x4xf32>
    tpu.vector_store %arg7[%c0_11, %c0_12, %c17_13, %c0_14], %1 {strides = array<i32>} : memref<1x18x18x4xf32, #tpu.memory_space<vmem>>, vector<1x18x1x4xf32>,
    %c0_15 = arith.constant 0 : index
    %c0_16 = arith.constant 0 : index
    %c0_17 = arith.constant 0 : index
    %c0_18 = arith.constant 0 : index
    %6 = vector.load %arg1[%c0_15, %c0_16, %c0_17, %c0_18] : memref<1x16x16x4xf32, #tpu.memory_space<vmem>>, vector<1x16x16x4xf32>
    %c0_19 = arith.constant 0 : index
    %c1 = arith.constant 1 : index
    %c1_20 = arith.constant 1 : index
    %c0_21 = arith.constant 0 : index
    %7 = vector.load %arg7[%c0_19, %c1, %c1_20, %c0_21] : memref<1x18x18x4xf32, #tpu.memory_space<vmem>>, vector<1x16x16x4xf32>
    tpu.vector_store %arg7[%c0_19, %c1, %c1_20, %c0_21], %6 {strides = array<i32>} : memref<1x18x18x4xf32, #tpu.memory_space<vmem>>, vector<1x16x16x4xf32>,
    %c0_22 = arith.constant 0 : index
    %c0_23 = arith.constant 0 : index
    %c0_24 = arith.constant 0 : index
    %c0_25 = arith.constant 0 : index
    %8 = vector.load %arg7[%c0_22, %c0_23, %c0_24, %c0_25] : memref<1x18x18x4xf32, #tpu.memory_space<vmem>>, vector<1x16x16x4xf32>
    %c0_26 = arith.constant 0 : index
    %c0_27 = arith.constant 0 : index
    %c1_28 = arith.constant 1 : index
    %c0_29 = arith.constant 0 : index
    %9 = vector.load %arg7[%c0_26, %c0_27, %c1_28, %c0_29] : memref<1x18x18x4xf32, #tpu.memory_space<vmem>>, vector<1x16x16x4xf32>
    %c0_30 = arith.constant 0 : index
    %c0_31 = arith.constant 0 : index
    %c2 = arith.constant 2 : index
    %c0_32 = arith.constant 0 : index
    %10 = vector.load %arg7[%c0_30, %c0_31, %c2, %c0_32] : memref<1x18x18x4xf32, #tpu.memory_space<vmem>>, vector<1x16x16x4xf32>
    %c0_33 = arith.constant 0 : index
    %c1_34 = arith.constant 1 : index
    %c0_35 = arith.constant 0 : index
    %c0_36 = arith.constant 0 : index
    %11 = vector.load %arg7[%c0_33, %c1_34, %c0_35, %c0_36] : memref<1x18x18x4xf32, #tpu.memory_space<vmem>>, vector<1x16x16x4xf32>
    %c0_37 = arith.constant 0 : index
    %c1_38 = arith.constant 1 : index
    %c1_39 = arith.constant 1 : index
    %c0_40 = arith.constant 0 : index
    %12 = vector.load %arg7[%c0_37, %c1_38, %c1_39, %c0_40] : memref<1x18x18x4xf32, #tpu.memory_space<vmem>>, vector<1x16x16x4xf32>
    %c0_41 = arith.constant 0 : index
    %c1_42 = arith.constant 1 : index
    %c2_43 = arith.constant 2 : index
    %c0_44 = arith.constant 0 : index
    %13 = vector.load %arg7[%c0_41, %c1_42, %c2_43, %c0_44] : memref<1x18x18x4xf32, #tpu.memory_space<vmem>>, vector<1x16x16x4xf32>
    %c0_45 = arith.constant 0 : index
    %c2_46 = arith.constant 2 : index
    %c0_47 = arith.constant 0 : index
    %c0_48 = arith.constant 0 : index
    %14 = vector.load %arg7[%c0_45, %c2_46, %c0_47, %c0_48] : memref<1x18x18x4xf32, #tpu.memory_space<vmem>>, vector<1x16x16x4xf32>
    %c0_49 = arith.constant 0 : index
    %c2_50 = arith.constant 2 : index
    %c1_51 = arith.constant 1 : index
    %c0_52 = arith.constant 0 : index
    %15 = vector.load %arg7[%c0_49, %c2_50, %c1_51, %c0_52] : memref<1x18x18x4xf32, #tpu.memory_space<vmem>>, vector<1x16x16x4xf32>
    %c0_53 = arith.constant 0 : index
    %c2_54 = arith.constant 2 : index
    %c2_55 = arith.constant 2 : index
    %c0_56 = arith.constant 0 : index
    %16 = vector.load %arg7[%c0_53, %c2_54, %c2_55, %c0_56] : memref<1x18x18x4xf32, #tpu.memory_space<vmem>>, vector<1x16x16x4xf32>
    %17 = tpu.concatenate %8, %9, %10, %11, %12, %13, %14, %15, %16 in 3 : vector<1x16x16x4xf32>, vector<1x16x16x4xf32>, vector<1x16x16x4xf32>, vector<1x16x16x4xf32>, vector<1x16x16x4xf32>, vector<1x16x16x4xf32>, vector<1x16x16x4xf32>, vector<1x16x16x4xf32>, vector<1x16x16x4xf32> -> vector<1x16x16x36xf32>
    %18 = vector.shape_cast %17 : vector<1x16x16x36xf32> to vector<256x36xf32>
    %c0_57 = arith.constant 0 : index
    %c0_58 = arith.constant 0 : index
    %19 = vector.load %arg2[%c0_57, %c0_58] : memref<36x4xf32, #tpu.memory_space<vmem>>, vector<36x4xf32>
    %cst_59 = arith.constant dense<0.000000e+00> : vector<256x4xf32>
    %20 = tpu.matmul %18, %19, %cst_59 {dimension_numbers = #tpu.dot_dimension_numbers<[1], [0], [0], [1], [0, 0, 1, 1], [], []>} : vector<256x36xf32>, vector<36x4xf32>, vector<256x4xf32> -> vector<256x4xf32>
    %c0_60 = arith.constant 0 : index
    %c0_61 = arith.constant 0 : index
    %21 = vector.load %arg3[%c0_60, %c0_61] : memref<1x4xf32, #tpu.memory_space<vmem>>, vector<1x4xf32>
    %22 = vector.broadcast %21 : vector<1x4xf32> to vector<256x4xf32>
    %23 = arith.addf %20, %22 : vector<256x4xf32>
    %cst_62 = arith.constant 0.000000e+00 : f32
    %24 = vector.broadcast %cst_62 : f32 to vector<256x4xf32>
    %25 = arith.maximumf %23, %24 : vector<256x4xf32>
    %26 = vector.shape_cast %25 : vector<256x4xf32> to vector<1x16x16x4xf32>
    %c0_63 = arith.constant 0 : index
    %c1_64 = arith.constant 1 : index
    %c1_65 = arith.constant 1 : index
    %c0_66 = arith.constant 0 : index
    %27 = vector.load %arg7[%c0_63, %c1_64, %c1_65, %c0_66] : memref<1x18x18x4xf32, #tpu.memory_space<vmem>>, vector<1x16x16x4xf32>
    tpu.vector_store %arg7[%c0_63, %c1_64, %c1_65, %c0_66], %26 {strides = array<i32>} : memref<1x18x18x4xf32, #tpu.memory_space<vmem>>, vector<1x16x16x4xf32>,
    %c0_67 = arith.constant 0 : index
    %c0_68 = arith.constant 0 : index
    %c0_69 = arith.constant 0 : index
    %c0_70 = arith.constant 0 : index
    %28 = vector.load %arg7[%c0_67, %c0_68, %c0_69, %c0_70] : memref<1x18x18x4xf32, #tpu.memory_space<vmem>>, vector<1x16x16x4xf32>
    %c0_71 = arith.constant 0 : index
    %c0_72 = arith.constant 0 : index
    %c1_73 = arith.constant 1 : index
    %c0_74 = arith.constant 0 : index
    %29 = vector.load %arg7[%c0_71, %c0_72, %c1_73, %c0_74] : memref<1x18x18x4xf32, #tpu.memory_space<vmem>>, vector<1x16x16x4xf32>
    %c0_75 = arith.constant 0 : index
    %c0_76 = arith.constant 0 : index
    %c2_77 = arith.constant 2 : index
    %c0_78 = arith.constant 0 : index
    %30 = vector.load %arg7[%c0_75, %c0_76, %c2_77, %c0_78] : memref<1x18x18x4xf32, #tpu.memory_space<vmem>>, vector<1x16x16x4xf32>
    %c0_79 = arith.constant 0 : index
    %c1_80 = arith.constant 1 : index
    %c0_81 = arith.constant 0 : index
    %c0_82 = arith.constant 0 : index
    %31 = vector.load %arg7[%c0_79, %c1_80, %c0_81, %c0_82] : memref<1x18x18x4xf32, #tpu.memory_space<vmem>>, vector<1x16x16x4xf32>
    %c0_83 = arith.constant 0 : index
    %c1_84 = arith.constant 1 : index
    %c1_85 = arith.constant 1 : index
    %c0_86 = arith.constant 0 : index
    %32 = vector.load %arg7[%c0_83, %c1_84, %c1_85, %c0_86] : memref<1x18x18x4xf32, #tpu.memory_space<vmem>>, vector<1x16x16x4xf32>
    %c0_87 = arith.constant 0 : index
    %c1_88 = arith.constant 1 : index
    %c2_89 = arith.constant 2 : index
    %c0_90 = arith.constant 0 : index
    %33 = vector.load %arg7[%c0_87, %c1_88, %c2_89, %c0_90] : memref<1x18x18x4xf32, #tpu.memory_space<vmem>>, vector<1x16x16x4xf32>
    %c0_91 = arith.constant 0 : index
    %c2_92 = arith.constant 2 : index
    %c0_93 = arith.constant 0 : index
    %c0_94 = arith.constant 0 : index
    %34 = vector.load %arg7[%c0_91, %c2_92, %c0_93, %c0_94] : memref<1x18x18x4xf32, #tpu.memory_space<vmem>>, vector<1x16x16x4xf32>
    %c0_95 = arith.constant 0 : index
    %c2_96 = arith.constant 2 : index
    %c1_97 = arith.constant 1 : index
    %c0_98 = arith.constant 0 : index
    %35 = vector.load %arg7[%c0_95, %c2_96, %c1_97, %c0_98] : memref<1x18x18x4xf32, #tpu.memory_space<vmem>>, vector<1x16x16x4xf32>
    %c0_99 = arith.constant 0 : index
    %c2_100 = arith.constant 2 : index
    %c2_101 = arith.constant 2 : index
    %c0_102 = arith.constant 0 : index
    %36 = vector.load %arg7[%c0_99, %c2_100, %c2_101, %c0_102] : memref<1x18x18x4xf32, #tpu.memory_space<vmem>>, vector<1x16x16x4xf32>
    %37 = tpu.concatenate %28, %29, %30, %31, %32, %33, %34, %35, %36 in 3 : vector<1x16x16x4xf32>, vector<1x16x16x4xf32>, vector<1x16x16x4xf32>, vector<1x16x16x4xf32>, vector<1x16x16x4xf32>, vector<1x16x16x4xf32>, vector<1x16x16x4xf32>, vector<1x16x16x4xf32>, vector<1x16x16x4xf32> -> vector<1x16x16x36xf32>
    %38 = vector.shape_cast %37 : vector<1x16x16x36xf32> to vector<256x36xf32>
    %c0_103 = arith.constant 0 : index
    %c0_104 = arith.constant 0 : index
    %39 = vector.load %arg4[%c0_103, %c0_104] : memref<36x4xf32, #tpu.memory_space<vmem>>, vector<36x4xf32>
    %cst_105 = arith.constant dense<0.000000e+00> : vector<256x4xf32>
    %40 = tpu.matmul %38, %39, %cst_105 {dimension_numbers = #tpu.dot_dimension_numbers<[1], [0], [0], [1], [0, 0, 1, 1], [], []>} : vector<256x36xf32>, vector<36x4xf32>, vector<256x4xf32> -> vector<256x4xf32>
    %c0_106 = arith.constant 0 : index
    %c0_107 = arith.constant 0 : index
    %41 = vector.load %arg5[%c0_106, %c0_107] : memref<1x4xf32, #tpu.memory_space<vmem>>, vector<1x4xf32>
    %42 = vector.broadcast %41 : vector<1x4xf32> to vector<256x4xf32>
    %43 = arith.addf %40, %42 : vector<256x4xf32>
    %44 = vector.shape_cast %43 : vector<256x4xf32> to vector<1x16x16x4xf32>
    %45 = arith.addf %44, %6 : vector<1x16x16x4xf32>
    %cst_108 = arith.constant 0.000000e+00 : f32
    %46 = vector.broadcast %cst_108 : f32 to vector<1x16x16x4xf32>
    %47 = arith.maximumf %45, %46 : vector<1x16x16x4xf32>
    %c0_109 = arith.constant 0 : index
    %c0_110 = arith.constant 0 : index
    %c0_111 = arith.constant 0 : index
    %c0_112 = arith.constant 0 : index
    %48 = vector.load %arg6[%c0_109, %c0_110, %c0_111, %c0_112] : memref<1x16x16x4xf32, #tpu.memory_space<vmem>>, vector<1x16x16x4xf32>
    tpu.vector_store %arg6[%c0_109, %c0_110, %c0_111, %c0_112], %47 {strides = array<i32>} : memref<1x16x16x4xf32, #tpu.memory_space<vmem>>, vector<1x16x16x4xf32>,
    return
  }
  func.func @transform_0(%arg0: i32) -> (i32, i32, i32, i32) {
    %c0_i32 = arith.constant 0 : i32
    %c0_i32_0 = arith.constant 0 : i32
    %c0_i32_1 = arith.constant 0 : i32
    %c0_i32_2 = arith.constant 0 : i32
    return %arg0, %c0_i32, %c0_i32_0, %c0_i32_1 : i32, i32, i32, i32
  }
  func.func @transform_1(%arg0: i32) -> (i32, i32) {
    %c0_i32 = arith.constant 0 : i32
    %c0_i32_0 = arith.constant 0 : i32
    %c0_i32_1 = arith.constant 0 : i32
    return %c0_i32, %c0_i32_0 : i32, i32
  }
  func.func @transform_2(%arg0: i32) -> (i32, i32) {
    %c0_i32 = arith.constant 0 : i32
    %c0_i32_0 = arith.constant 0 : i32
    %c0_i32_1 = arith.constant 0 : i32
    return %c0_i32, %c0_i32_0 : i32, i32
  }
  func.func @transform_3(%arg0: i32) -> (i32, i32) {
    %c0_i32 = arith.constant 0 : i32
    %c0_i32_0 = arith.constant 0 : i32
    %c0_i32_1 = arith.constant 0 : i32
    return %c0_i32, %c0_i32_0 : i32, i32
  }
  func.func @transform_4(%arg0: i32) -> (i32, i32) {
    %c0_i32 = arith.constant 0 : i32
    %c0_i32_0 = arith.constant 0 : i32
    %c0_i32_1 = arith.constant 0 : i32
    return %c0_i32, %c0_i32_0 : i32, i32
  }
  func.func @transform_5(%arg0: i32) -> (i32, i32, i32, i32) {
    %c0_i32 = arith.constant 0 : i32
    %c0_i32_0 = arith.constant 0 : i32
    %c0_i32_1 = arith.constant 0 : i32
    %c0_i32_2 = arith.constant 0 : i32
    return %arg0, %c0_i32, %c0_i32_0, %c0_i32_1 : i32, i32, i32, i32
  }
}

</mosaic_0001>

<llo_original>
// kernel: basic_block_forward.1
$region0: #{basic_block_forward.1}
  #allocation0 [shape = 'u32[]', space=smem, size = 0x4, offset = 0x4, fixed_abs, tag = 'smem constant byte address 0x4 - core index']
  #allocation1 [shape = 'u32[144,128]{1,0:T(1,128)}', space=vmem, size = 0x12000, scoped, tag = 'internal scratch']
  #allocation2 [shape = 'f32[1,18,18,4]{3,2,1,0:T(8,128)}', space=vmem, size = 0x36000, scoped, tag = 'scratch operand']
  %s0 = inlined_call_operand.vmem [shape: f32[2,16,16,4], index: 0, kind: input, shape index: {}]
  %s1 = inlined_call_operand.vmem [shape: f32[36,4], index: 1, kind: input, shape index: {}]
  %s2 = inlined_call_operand.vmem [shape: f32[1,4], index: 2, kind: input, shape index: {}]
  %s3 = inlined_call_operand.vmem [shape: f32[36,4], index: 3, kind: input, shape index: {}]
  %s4 = inlined_call_operand.vmem [shape: f32[1,4], index: 4, kind: input, shape index: {}]
  %s5 = inlined_call_operand.vmem [shape: f32[2,16,16,4], index: 5, kind: output, shape index: {}]
  %s6 = sld [smem:[#allocation0]]
  $region53: #{basic_block_forward.1} parent=0
    _
  %s8 = ssub.s32 1, %s6
  %s9 = scalar_select 0, %s8, %s6
  loop: start=0, step=1, limit=4
  $region2: #{basic_block_forward.1} parent=0 // loop_pre_header
    _
  $region3: #{basic_block_forward.1} parent=0 // loop_header
    %s11 = sphi 0, %s15
    %p12 = scmp.ge.s32.totalorder %s11, 4
    %s21 = sphi 0, %s23
    %s24 = sphi 0, %s21
    %s25 = sphi 0, %s24
    %s41 = sphi 0, %s25
    %s45 = sphi 0, %s45
    %s47 = sphi 0, %s45
    %s48 = sphi 0, %s47
    %s62 = sphi 0, %s48
    %s66 = sphi 0, %s66
    %s68 = sphi 0, %s66
    %s69 = sphi 0, %s68
    %s83 = sphi 0, %s69
    %s87 = sphi 0, %s87
    %s89 = sphi 0, %s87
    %s90 = sphi 0, %s89
    %s104 = sphi 0, %s90
    %s108 = sphi 0, %s108
    %s110 = sphi 0, %s108
    %s111 = sphi 0, %s110
    %s125 = sphi 0, %s111
    %s131 = sphi 0, %s133
    %s134 = sphi 0, %s131
    %s135 = sphi 0, %s134
    %s151 = sphi 0, %s135
  $region4: #{basic_block_forward.1} parent=0 // loop_header_branch
    %14 = sbr.rel (%p12) target = $region8
  $region5: #{basic_block_forward.1} parent=0 // loop_body
    %s16 = ssub.s32 %s11, 1
    %s17 = ssub.s32 %s11, 2
    %s18 = sadd.s32 %s11, 1
    %s19 = ssub.s32 %s11, %s18
    %p20 = scmp.eq.s32.totalorder %s19, 0
    %s22 = sadd.s32 %s21, 1
    %s23 = scalar_select %p20, %s21, %s22
    %p26 = pneg %p20
    %p27 = scmp.eq.s32.totalorder %s11, 1
    %p28 = por %p26, %p27
    %p29 = scmp.ne.s32.totalorder %s21, %s24
    %p30 = scmp.eq.s32.totalorder %s11, 0
    %p31 = por %p29, %p30
    %p32 = scmp.ne.s32.totalorder %s21, %s24
    %p33 = scmp.eq.s32.totalorder %s16, 1
    %p34 = por %p32, %p33
    %p35 = scmp.ne.s32.totalorder %s24, %s25
    %p36 = scmp.eq.s32.totalorder %s16, 0
    %p37 = por %p35, %p36
    %p38 = scmp.ne.s32.totalorder %s24, %s25
    %p39 = scmp.eq.s32.totalorder %s17, 1
    %p40 = por %p38, %p39
    %p42 = scmp.ne.s32.totalorder %s25, %s41
    %p43 = scmp.eq.s32.totalorder %s17, 0
    %p44 = por %p42, %p43
    %s46 = sadd.s32 %s45, 1
    %p49 = scmp.eq.s32.totalorder %s11, 1
    %p50 = scmp.ne.s32.totalorder %s45, %s47
    %p51 = scmp.eq.s32.totalorder %s11, 0
    %p52 = por %p50, %p51
    %p53 = scmp.ne.s32.totalorder %s45, %s47
    %p54 = scmp.eq.s32.totalorder %s16, 1
    %p55 = por %p53, %p54
    %p56 = scmp.ne.s32.totalorder %s47, %s48
    %p57 = scmp.eq.s32.totalorder %s16, 0
    %p58 = por %p56, %p57
    %p59 = scmp.ne.s32.totalorder %s47, %s48
    %p60 = scmp.eq.s32.totalorder %s17, 1
    %p61 = por %p59, %p60
    %p63 = scmp.ne.s32.totalorder %s48, %s62
    %p64 = scmp.eq.s32.totalorder %s17, 0
    %p65 = por %p63, %p64
    %s67 = sadd.s32 %s66, 1
    %p70 = scmp.eq.s32.totalorder %s11, 1
    %p71 = scmp.ne.s32.totalorder %s66, %s68
    %p72 = scmp.eq.s32.totalorder %s11, 0
    %p73 = por %p71, %p72
    %p74 = scmp.ne.s32.totalorder %s66, %s68
    %p75 = scmp.eq.s32.totalorder %s16, 1
    %p76 = por %p74, %p75
    %p77 = scmp.ne.s32.totalorder %s68, %s69
    %p78 = scmp.eq.s32.totalorder %s16, 0
    %p79 = por %p77, %p78
    %p80 = scmp.ne.s32.totalorder %s68, %s69
    %p81 = scmp.eq.s32.totalorder %s17, 1
    %p82 = por %p80, %p81
    %p84 = scmp.ne.s32.totalorder %s69, %s83
    %p85 = scmp.eq.s32.totalorder %s17, 0
    %p86 = por %p84, %p85
    %s88 = sadd.s32 %s87, 1
    %p91 = scmp.eq.s32.totalorder %s11, 1
    %p92 = scmp.ne.s32.totalorder %s87, %s89
    %p93 = scmp.eq.s32.totalorder %s11, 0
    %p94 = por %p92, %p93
    %p95 = scmp.ne.s32.totalorder %s87, %s89
    %p96 = scmp.eq.s32.totalorder %s16, 1
    %p97 = por %p95, %p96
    %p98 = scmp.ne.s32.totalorder %s89, %s90
    %p99 = scmp.eq.s32.totalorder %s16, 0
    %p100 = por %p98, %p99
    %p101 = scmp.ne.s32.totalorder %s89, %s90
    %p102 = scmp.eq.s32.totalorder %s17, 1
    %p103 = por %p101, %p102
    %p105 = scmp.ne.s32.totalorder %s90, %s104
    %p106 = scmp.eq.s32.totalorder %s17, 0
    %p107 = por %p105, %p106
    %s109 = sadd.s32 %s108, 1
    %p112 = scmp.eq.s32.totalorder %s11, 1
    %p113 = scmp.ne.s32.totalorder %s108, %s110
    %p114 = scmp.eq.s32.totalorder %s11, 0
    %p115 = por %p113, %p114
    %p116 = scmp.ne.s32.totalorder %s108, %s110
    %p117 = scmp.eq.s32.totalorder %s16, 1
    %p118 = por %p116, %p117
    %p119 = scmp.ne.s32.totalorder %s110, %s111
    %p120 = scmp.eq.s32.totalorder %s16, 0
    %p121 = por %p119, %p120
    %p122 = scmp.ne.s32.totalorder %s110, %s111
    %p123 = scmp.eq.s32.totalorder %s17, 1
    %p124 = por %p122, %p123
    %p126 = scmp.ne.s32.totalorder %s111, %s125
    %p127 = scmp.eq.s32.totalorder %s17, 0
    %p128 = por %p126, %p127
    %s129 = ssub.s32 %s11, %s18
    %p130 = scmp.eq.s32.totalorder %s129, 0
    %s132 = sadd.s32 %s131, 1
    %s133 = scalar_select %p130, %s131, %s132
    %p136 = pneg %p130
    %p137 = scmp.eq.s32.totalorder %s11, 1
    %p138 = por %p136, %p137
    %p139 = scmp.ne.s32.totalorder %s131, %s134
    %p140 = scmp.eq.s32.totalorder %s11, 0
    %p141 = por %p139, %p140
    %p142 = scmp.ne.s32.totalorder %s131, %s134
    %p143 = scmp.eq.s32.totalorder %s16, 1
    %p144 = por %p142, %p143
    %p145 = scmp.ne.s32.totalorder %s134, %s135
    %p146 = scmp.eq.s32.totalorder %s16, 0
    %p147 = por %p145, %p146
    %p148 = scmp.ne.s32.totalorder %s134, %s135
    %p149 = scmp.eq.s32.totalorder %s17, 1
    %p150 = por %p148, %p149
    %p152 = scmp.ne.s32.totalorder %s135, %s151
    %p153 = scmp.eq.s32.totalorder %s17, 0
    %p154 = por %p152, %p153
    %p155 = scmp.le.s32.totalorder 1, %s11
    %p156 = scmp.lt.s32.totalorder %s11, 3
    %p157 = pnand %p155, %p156
    %p158 = pneg %p157
    // Predicated region
    $region9: #{basic_block_forward.1} parent=5 // pred_check
      _
    $region10: #{basic_block_forward.1} parent=5 // pred_check_branch
      %160 = sbr.rel (%p157) target = $region12
    $region11: #{basic_block_forward.1} parent=5 // pred_region
      %s161 = ssub.s32 %s11, 1
      // Predicated region
      $region13: #{basic_block_forward.1} parent=11 // pred_check
        %p162 = pneg %p58
      $region14: #{basic_block_forward.1} parent=11 // pred_check_branch
        %164 = sbr.rel (%p162) target = $region16
      $region15: #{basic_block_forward.1} parent=11 // pred_region
        _
      $region16: #{basic_block_forward.1} parent=11 // pred_fallthru
        _
      // Predicated region
      $region17: #{basic_block_forward.1} parent=11 // pred_check
        %p165 = pneg %p79
      $region18: #{basic_block_forward.1} parent=11 // pred_check_branch
        %167 = sbr.rel (%p165) target = $region20
      $region19: #{basic_block_forward.1} parent=11 // pred_region
        _
      $region20: #{basic_block_forward.1} parent=11 // pred_fallthru
        _
      // Predicated region
      $region21: #{basic_block_forward.1} parent=11 // pred_check
        %p168 = pneg %p100
      $region22: #{basic_block_forward.1} parent=11 // pred_check_branch
        %170 = sbr.rel (%p168) target = $region24
      $region23: #{basic_block_forward.1} parent=11 // pred_region
        _
      $region24: #{basic_block_forward.1} parent=11 // pred_fallthru
        _
      // Predicated region
      $region25: #{basic_block_forward.1} parent=11 // pred_check
        %p171 = pneg %p121
      $region26: #{basic_block_forward.1} parent=11 // pred_check_branch
        %173 = sbr.rel (%p171) target = $region28
      $region27: #{basic_block_forward.1} parent=11 // pred_region
        _
      $region28: #{basic_block_forward.1} parent=11 // pred_fallthru
        _
    $region12: #{basic_block_forward.1} parent=5 // pred_fallthru
      _
    %p174 = scmp.lt.s32.totalorder %s11, 2
    // Predicated region
    $region29: #{basic_block_forward.1} parent=5 // pred_check
      %p175 = pneg %p174
    $region30: #{basic_block_forward.1} parent=5 // pred_check_branch
      %177 = sbr.rel (%p175) target = $region32
    $region31: #{basic_block_forward.1} parent=5 // pred_region
      // Predicated region
      $region33: #{basic_block_forward.1} parent=31 // pred_check
        %p178 = pneg %p31
      $region34: #{basic_block_forward.1} parent=31 // pred_check_branch
        %180 = sbr.rel (%p178) target = $region36
      $region35: #{basic_block_forward.1} parent=31 // pred_region
        %p181 = scmp.lt.s32.totalorder %s11, 1
        %s182 = scalar_select %p181, %s11, 1
        %s183 = smul.addr %s182, 32
        %s184 = smul.addr %s183, 8
        %s185 = scalar_lea.vmem %s0, %s184
      $region36: #{basic_block_forward.1} parent=31 // pred_fallthru
        _
    $region32: #{basic_block_forward.1} parent=5 // pred_fallthru
      _
    %p186 = scmp.le.s32.totalorder 1, %s11
    %p187 = scmp.lt.s32.totalorder %s11, 3
    %p188 = pnand %p186, %p187
    %p189 = pneg %p188
    // Predicated region
    $region37: #{basic_block_forward.1} parent=5 // pred_check
      _
    $region38: #{basic_block_forward.1} parent=5 // pred_check_branch
      %191 = sbr.rel (%p188) target = $region40
    $region39: #{basic_block_forward.1} parent=5 // pred_region
      %s192 = ssub.s32 %s11, 1
      %p193 = scmp.lt.s32.totalorder %s16, 1
      %s194 = scalar_select %p193, %s16, 1
      %s195 = smul.addr %s194, 32
      %s196 = smul.addr %s195, 8
      %s197 = scalar_lea.vmem %s0, %s196
      %p198 = pneg %p37
      %p199 = pneg %p34
      %p200 = pneg %p58
      %p201 = pneg %p55
      %p202 = pneg %p79
      %p203 = pneg %p76
      %p204 = pneg %p100
      %p205 = pneg %p97
      %p206 = pneg %p121
      %p207 = pneg %p118
      %p208 = pneg %p147
      %p209 = pneg %p144
      %p210 = scmp.lt.s32.totalorder %s16, 1
      %s211 = scalar_select %p210, %s16, 1
      %s212 = smul.addr %s211, 32
      %s213 = smul.addr %s212, 8
      %s214 = scalar_lea.vmem %s5, %s213
      %p215 = scmp.lt.s32.totalorder %s16, 1
      %s216 = scalar_select %p215, %s16, 1
      %s217 = smul.addr %s216, 32
      %s218 = smul.addr %s217, 8
      %s219 = scalar_lea.vmem %s0, %s218
      %p220 = scmp.lt.s32.totalorder %s16, 1
      %s221 = scalar_select %p220, %s16, 1
      %s222 = smul.addr %s221, 32
      %s223 = smul.addr %s222, 8
      %s224 = scalar_lea.vmem %s5, %s223
      %vm225 = vcmask 31744
      %226 = vst.msk [vmem:[#allocation2] sm:$0xff] %vm225, 0.0
      %227 = vst.msk [vmem:[#allocation2 + $0x8] sm:$0xff] %vm225, 0.0
      %vm228 = vcmask 25600
      %229 = vst.msk [vmem:[#allocation2 + $0x10] sm:$0x3] %vm228, 0.0
      %s230 = scalar_lea.vmem [#allocation2], 408
      %231 = vst.msk [vmem:[%s230] sm:$0xff] %vm225, 0.0
      %232 = vst.msk [vmem:[%s230 + $0x8] sm:$0xff] %vm225, 0.0
      %233 = vst.msk [vmem:[%s230 + $0x10] sm:$0x3] %vm228, 0.0
      %vm234 = vcmask 24576
      %235 = vst.msk [vmem:[#allocation2] sm:$0x1] %vm234, 0.0
      %236 = vst.msk [vmem:[#allocation2 + $0x18] sm:$0x1] %vm234, 0.0
      %237 = vst.msk [vmem:[#allocation2 + $0x30] sm:$0x1] %vm234, 0.0
      %238 = vst.msk [vmem:[#allocation2 + $0x48] sm:$0x1] %vm234, 0.0
      %239 = vst.msk [vmem:[#allocation2 + $0x60] sm:$0x1] %vm234, 0.0
      %240 = vst.msk [vmem:[#allocation2 + $0x78] sm:$0x1] %vm234, 0.0
      %241 = vst.msk [vmem:[#allocation2 + $0x90] sm:$0x1] %vm234, 0.0
      %242 = vst.msk [vmem:[#allocation2 + $0xa8] sm:$0x1] %vm234, 0.0
      %243 = vst.msk [vmem:[#allocation2 + $0xc0] sm:$0x1] %vm234, 0.0
      %244 = vst.msk [vmem:[#allocation2 + $0xd8] sm:$0x1] %vm234, 0.0
      %245 = vst.msk [vmem:[#allocation2 + $0xf0] sm:$0x1] %vm234, 0.0
      %246 = vst.msk [vmem:[#allocation2 + $0x108] sm:$0x1] %vm234, 0.0
      %247 = vst.msk [vmem:[#allocation2 + $0x120] sm:$0x1] %vm234, 0.0
      %248 = vst.msk [vmem:[#allocation2 + $0x138] sm:$0x1] %vm234, 0.0
      %249 = vst.msk [vmem:[#allocation2 + $0x150] sm:$0x1] %vm234, 0.0
      %250 = vst.msk [vmem:[#allocation2 + $0x168] sm:$0x1] %vm234, 0.0
      %251 = vst.msk [vmem:[#allocation2 + $0x180] sm:$0x1] %vm234, 0.0
      %252 = vst.msk [vmem:[#allocation2 + $0x198] sm:$0x1] %vm234, 0.0
      %253 = vst.msk [vmem:[#allocation2 + $0x11] sm:$0x1] %vm234, 0.0
      %254 = vst.msk [vmem:[#allocation2 + $0x29] sm:$0x1] %vm234, 0.0
      %255 = vst.msk [vmem:[#allocation2 + $0x41] sm:$0x1] %vm234, 0.0
      %256 = vst.msk [vmem:[#allocation2 + $0x59] sm:$0x1] %vm234, 0.0
      %257 = vst.msk [vmem:[#allocation2 + $0x71] sm:$0x1] %vm234, 0.0
      %258 = vst.msk [vmem:[#allocation2 + $0x89] sm:$0x1] %vm234, 0.0
      %259 = vst.msk [vmem:[#allocation2 + $0xa1] sm:$0x1] %vm234, 0.0
      %260 = vst.msk [vmem:[#allocation2 + $0xb9] sm:$0x1] %vm234, 0.0
      %261 = vst.msk [vmem:[#allocation2 + $0xd1] sm:$0x1] %vm234, 0.0
      %262 = vst.msk [vmem:[#allocation2 + $0xe9] sm:$0x1] %vm234, 0.0
      %263 = vst.msk [vmem:[#allocation2 + $0x101] sm:$0x1] %vm234, 0.0
      %264 = vst.msk [vmem:[#allocation2 + $0x119] sm:$0x1] %vm234, 0.0
      %265 = vst.msk [vmem:[#allocation2 + $0x131] sm:$0x1] %vm234, 0.0
      %266 = vst.msk [vmem:[#allocation2 + $0x149] sm:$0x1] %vm234, 0.0
      %267 = vst.msk [vmem:[#allocation2 + $0x161] sm:$0x1] %vm234, 0.0
      %268 = vst.msk [vmem:[#allocation2 + $0x179] sm:$0x1] %vm234, 0.0
      %269 = vst.msk [vmem:[#allocation2 + $0x191] sm:$0x1] %vm234, 0.0
      %270 = vst.msk [vmem:[#allocation2 + $0x1a9] sm:$0x1] %vm234, 0.0
      %v271 = vld [vmem:[%s219] sm:$0xff]
      %v272 = vld [vmem:[%s219 + $0x8] sm:$0xff]
      %v273 = vld [vmem:[%s219 + $0x10] sm:$0xff]
      %v274 = vld [vmem:[%s219 + $0x18] sm:$0xff]
      %v275 = vld [vmem:[%s219 + $0x20] sm:$0xff]
      %v276 = vld [vmem:[%s219 + $0x28] sm:$0xff]
      %v277 = vld [vmem:[%s219 + $0x30] sm:$0xff]
      %v278 = vld [vmem:[%s219 + $0x38] sm:$0xff]
      %v279 = vld [vmem:[%s219 + $0x40] sm:$0xff]
      %v280 = vld [vmem:[%s219 + $0x48] sm:$0xff]
      %v281 = vld [vmem:[%s219 + $0x50] sm:$0xff]
      %v282 = vld [vmem:[%s219 + $0x58] sm:$0xff]
      %v283 = vld [vmem:[%s219 + $0x60] sm:$0xff]
      %v284 = vld [vmem:[%s219 + $0x68] sm:$0xff]
      %v285 = vld [vmem:[%s219 + $0x70] sm:$0xff]
      %v286 = vld [vmem:[%s219 + $0x78] sm:$0xff]
      %v287 = vld [vmem:[%s219 + $0x80] sm:$0xff]
      %v288 = vld [vmem:[%s219 + $0x88] sm:$0xff]
      %v289 = vld [vmem:[%s219 + $0x90] sm:$0xff]
      %v290 = vld [vmem:[%s219 + $0x98] sm:$0xff]
      %v291 = vld [vmem:[%s219 + $0xa0] sm:$0xff]
      %v292 = vld [vmem:[%s219 + $0xa8] sm:$0xff]
      %v293 = vld [vmem:[%s219 + $0xb0] sm:$0xff]
      %v294 = vld [vmem:[%s219 + $0xb8] sm:$0xff]
      %v295 = vld [vmem:[%s219 + $0xc0] sm:$0xff]
      %v296 = vld [vmem:[%s219 + $0xc8] sm:$0xff]
      %v297 = vld [vmem:[%s219 + $0xd0] sm:$0xff]
      %v298 = vld [vmem:[%s219 + $0xd8] sm:$0xff]
      %v299 = vld [vmem:[%s219 + $0xe0] sm:$0xff]
      %v300 = vld [vmem:[%s219 + $0xe8] sm:$0xff]
      %v301 = vld [vmem:[%s219 + $0xf0] sm:$0xff]
      %v302 = vld [vmem:[%s219 + $0xf8] sm:$0xff]
      %s303 = scalar_lea.vmem [#allocation2], 24
      %304 = vst.msk [vmem:[%s303 + $0x1] sm:$0xff] %vm225, %v271
      %305 = vst.msk [vmem:[%s303 + $0x9] sm:$0xff] %vm225, %v272
      %306 = vst.msk [vmem:[%s303 + $0x19] sm:$0xff] %vm225, %v273
      %307 = vst.msk [vmem:[%s303 + $0x21] sm:$0xff] %vm225, %v274
      %308 = vst.msk [vmem:[%s303 + $0x31] sm:$0xff] %vm225, %v275
      %309 = vst.msk [vmem:[%s303 + $0x39] sm:$0xff] %vm225, %v276
      %310 = vst.msk [vmem:[%s303 + $0x49] sm:$0xff] %vm225, %v277
      %311 = vst.msk [vmem:[%s303 + $0x51] sm:$0xff] %vm225, %v278
      %312 = vst.msk [vmem:[%s303 + $0x61] sm:$0xff] %vm225, %v279
      %313 = vst.msk [vmem:[%s303 + $0x69] sm:$0xff] %vm225, %v280
      %314 = vst.msk [vmem:[%s303 + $0x79] sm:$0xff] %vm225, %v281
      %315 = vst.msk [vmem:[%s303 + $0x81] sm:$0xff] %vm225, %v282
      %316 = vst.msk [vmem:[%s303 + $0x91] sm:$0xff] %vm225, %v283
      %317 = vst.msk [vmem:[%s303 + $0x99] sm:$0xff] %vm225, %v284
      %318 = vst.msk [vmem:[%s303 + $0xa9] sm:$0xff] %vm225, %v285
      %319 = vst.msk [vmem:[%s303 + $0xb1] sm:$0xff] %vm225, %v286
      %320 = vst.msk [vmem:[%s303 + $0xc1] sm:$0xff] %vm225, %v287
      %321 = vst.msk [vmem:[%s303 + $0xc9] sm:$0xff] %vm225, %v288
      %322 = vst.msk [vmem:[%s303 + $0xd9] sm:$0xff] %vm225, %v289
      %323 = vst.msk [vmem:[%s303 + $0xe1] sm:$0xff] %vm225, %v290
      %324 = vst.msk [vmem:[%s303 + $0xf1] sm:$0xff] %vm225, %v291
      %325 = vst.msk [vmem:[%s303 + $0xf9] sm:$0xff] %vm225, %v292
      %326 = vst.msk [vmem:[%s303 + $0x109] sm:$0xff] %vm225, %v293
      %327 = vst.msk [vmem:[%s303 + $0x111] sm:$0xff] %vm225, %v294
      %328 = vst.msk [vmem:[%s303 + $0x121] sm:$0xff] %vm225, %v295
      %329 = vst.msk [vmem:[%s303 + $0x129] sm:$0xff] %vm225, %v296
      %330 = vst.msk [vmem:[%s303 + $0x139] sm:$0xff] %vm225, %v297
      %331 = vst.msk [vmem:[%s303 + $0x141] sm:$0xff] %vm225, %v298
      %332 = vst.msk [vmem:[%s303 + $0x151] sm:$0xff] %vm225, %v299
      %333 = vst.msk [vmem:[%s303 + $0x159] sm:$0xff] %vm225, %v300
      %334 = vst.msk [vmem:[%s303 + $0x169] sm:$0xff] %vm225, %v301
      %335 = vst.msk [vmem:[%s303 + $0x171] sm:$0xff] %vm225, %v302
      %v336 = vld [vmem:[#allocation2] sm:$0xff]
      %v337 = vld [vmem:[#allocation2 + $0x8] sm:$0xff]
      %v338 = vld [vmem:[#allocation2 + $0x18] sm:$0xff]
      %v339 = vld [vmem:[#allocation2 + $0x20] sm:$0xff]
      %v340 = vld [vmem:[#allocation2 + $0x30] sm:$0xff]
      %v341 = vld [vmem:[#allocation2 + $0x38] sm:$0xff]
      %v342 = vld [vmem:[#allocation2 + $0x48] sm:$0xff]
      %v343 = vld [vmem:[#allocation2 + $0x50] sm:$0xff]
      %v344 = vld [vmem:[#allocation2 + $0x60] sm:$0xff]
      %v345 = vld [vmem:[#allocation2 + $0x68] sm:$0xff]
      %v346 = vld [vmem:[#allocation2 + $0x78] sm:$0xff]
      %v347 = vld [vmem:[#allocation2 + $0x80] sm:$0xff]
      %v348 = vld [vmem:[#allocation2 + $0x90] sm:$0xff]
      %v349 = vld [vmem:[#allocation2 + $0x98] sm:$0xff]
      %v350 = vld [vmem:[#allocation2 + $0xa8] sm:$0xff]
      %v351 = vld [vmem:[#allocation2 + $0xb0] sm:$0xff]
      %v352 = vld [vmem:[#allocation2 + $0xc0] sm:$0xff]
      %v353 = vld [vmem:[#allocation2 + $0xc8] sm:$0xff]
      %v354 = vld [vmem:[#allocation2 + $0xd8] sm:$0xff]
      %v355 = vld [vmem:[#allocation2 + $0xe0] sm:$0xff]
      %v356 = vld [vmem:[#allocation2 + $0xf0] sm:$0xff]
      %v357 = vld [vmem:[#allocation2 + $0xf8] sm:$0xff]
      %v358 = vld [vmem:[#allocation2 + $0x108] sm:$0xff]
      %v359 = vld [vmem:[#allocation2 + $0x110] sm:$0xff]
      %v360 = vld [vmem:[#allocation2 + $0x120] sm:$0xff]
      %v361 = vld [vmem:[#allocation2 + $0x128] sm:$0xff]
      %v362 = vld [vmem:[#allocation2 + $0x138] sm:$0xff]
      %v363 = vld [vmem:[#allocation2 + $0x140] sm:$0xff]
      %v364 = vld [vmem:[#allocation2 + $0x150] sm:$0xff]
      %v365 = vld [vmem:[#allocation2 + $0x158] sm:$0xff]
      %v366 = vld [vmem:[#allocation2 + $0x168] sm:$0xff]
      %v367 = vld [vmem:[#allocation2 + $0x170] sm:$0xff]
      %v368 = vld [vmem:[#allocation2 + $0x1] sm:$0xff]
      %v369 = vld [vmem:[#allocation2 + $0x9] sm:$0xff]
      %v370 = vld [vmem:[#allocation2 + $0x19] sm:$0xff]
      %v371 = vld [vmem:[#allocation2 + $0x21] sm:$0xff]
      %v372 = vld [vmem:[#allocation2 + $0x31] sm:$0xff]
      %v373 = vld [vmem:[#allocation2 + $0x39] sm:$0xff]
      %v374 = vld [vmem:[#allocation2 + $0x49] sm:$0xff]
      %v375 = vld [vmem:[#allocation2 + $0x51] sm:$0xff]
      %v376 = vld [vmem:[#allocation2 + $0x61] sm:$0xff]
      %v377 = vld [vmem:[#allocation2 + $0x69] sm:$0xff]
      %v378 = vld [vmem:[#allocation2 + $0x79] sm:$0xff]
      %v379 = vld [vmem:[#allocation2 + $0x81] sm:$0xff]
      %v380 = vld [vmem:[#allocation2 + $0x91] sm:$0xff]
      %v381 = vld [vmem:[#allocation2 + $0x99] sm:$0xff]
      %v382 = vld [vmem:[#allocation2 + $0xa9] sm:$0xff]
      %v383 = vld [vmem:[#allocation2 + $0xb1] sm:$0xff]
      %v384 = vld [vmem:[#allocation2 + $0xc1] sm:$0xff]
      %v385 = vld [vmem:[#allocation2 + $0xc9] sm:$0xff]
      %v386 = vld [vmem:[#allocation2 + $0xd9] sm:$0xff]
      %v387 = vld [vmem:[#allocation2 + $0xe1] sm:$0xff]
      %v388 = vld [vmem:[#allocation2 + $0xf1] sm:$0xff]
      %v389 = vld [vmem:[#allocation2 + $0xf9] sm:$0xff]
      %v390 = vld [vmem:[#allocation2 + $0x109] sm:$0xff]
      %v391 = vld [vmem:[#allocation2 + $0x111] sm:$0xff]
      %v392 = vld [vmem:[#allocation2 + $0x121] sm:$0xff]
      %v393 = vld [vmem:[#allocation2 + $0x129] sm:$0xff]
      %v394 = vld [vmem:[#allocation2 + $0x139] sm:$0xff]
      %v395 = vld [vmem:[#allocation2 + $0x141] sm:$0xff]
      %v396 = vld [vmem:[#allocation2 + $0x151] sm:$0xff]
      %v397 = vld [vmem:[#allocation2 + $0x159] sm:$0xff]
      %v398 = vld [vmem:[#allocation2 + $0x169] sm:$0xff]
      %v399 = vld [vmem:[#allocation2 + $0x171] sm:$0xff]
      %v400 = vld [vmem:[#allocation2 + $0x2] sm:$0xff]
      %v401 = vld [vmem:[#allocation2 + $0xa] sm:$0xff]
      %v402 = vld [vmem:[#allocation2 + $0x1a] sm:$0xff]
      %v403 = vld [vmem:[#allocation2 + $0x22] sm:$0xff]
      %v404 = vld [vmem:[#allocation2 + $0x32] sm:$0xff]
      %v405 = vld [vmem:[#allocation2 + $0x3a] sm:$0xff]
      %v406 = vld [vmem:[#allocation2 + $0x4a] sm:$0xff]
      %v407 = vld [vmem:[#allocation2 + $0x52] sm:$0xff]
      %v408 = vld [vmem:[#allocation2 + $0x62] sm:$0xff]
      %v409 = vld [vmem:[#allocation2 + $0x6a] sm:$0xff]
      %v410 = vld [vmem:[#allocation2 + $0x7a] sm:$0xff]
      %v411 = vld [vmem:[#allocation2 + $0x82] sm:$0xff]
      %v412 = vld [vmem:[#allocation2 + $0x92] sm:$0xff]
      %v413 = vld [vmem:[#allocation2 + $0x9a] sm:$0xff]
      %v414 = vld [vmem:[#allocation2 + $0xaa] sm:$0xff]
      %v415 = vld [vmem:[#allocation2 + $0xb2] sm:$0xff]
      %v416 = vld [vmem:[#allocation2 + $0xc2] sm:$0xff]
      %v417 = vld [vmem:[#allocation2 + $0xca] sm:$0xff]
      %v418 = vld [vmem:[#allocation2 + $0xda] sm:$0xff]
      %v419 = vld [vmem:[#allocation2 + $0xe2] sm:$0xff]
      %v420 = vld [vmem:[#allocation2 + $0xf2] sm:$0xff]
      %v421 = vld [vmem:[#allocation2 + $0xfa] sm:$0xff]
      %v422 = vld [vmem:[#allocation2 + $0x10a] sm:$0xff]
      %v423 = vld [vmem:[#allocation2 + $0x112] sm:$0xff]
      %v424 = vld [vmem:[#allocation2 + $0x122] sm:$0xff]
      %v425 = vld [vmem:[#allocation2 + $0x12a] sm:$0xff]
      %v426 = vld [vmem:[#allocation2 + $0x13a] sm:$0xff]
      %v427 = vld [vmem:[#allocation2 + $0x142] sm:$0xff]
      %v428 = vld [vmem:[#allocation2 + $0x152] sm:$0xff]
      %v429 = vld [vmem:[#allocation2 + $0x15a] sm:$0xff]
      %v430 = vld [vmem:[#allocation2 + $0x16a] sm:$0xff]
      %v431 = vld [vmem:[#allocation2 + $0x172] sm:$0xff]
      %v432 = vld [vmem:[%s303] sm:$0xff]
      %v433 = vld [vmem:[%s303 + $0x8] sm:$0xff]
      %v434 = vld [vmem:[%s303 + $0x18] sm:$0xff]
      %v435 = vld [vmem:[%s303 + $0x20] sm:$0xff]
      %v436 = vld [vmem:[%s303 + $0x30] sm:$0xff]
      %v437 = vld [vmem:[%s303 + $0x38] sm:$0xff]
      %v438 = vld [vmem:[%s303 + $0x48] sm:$0xff]
      %v439 = vld [vmem:[%s303 + $0x50] sm:$0xff]
      %v440 = vld [vmem:[%s303 + $0x60] sm:$0xff]
      %v441 = vld [vmem:[%s303 + $0x68] sm:$0xff]
      %v442 = vld [vmem:[%s303 + $0x78] sm:$0xff]
      %v443 = vld [vmem:[%s303 + $0x80] sm:$0xff]
      %v444 = vld [vmem:[%s303 + $0x90] sm:$0xff]
      %v445 = vld [vmem:[%s303 + $0x98] sm:$0xff]
      %v446 = vld [vmem:[%s303 + $0xa8] sm:$0xff]
      %v447 = vld [vmem:[%s303 + $0xb0] sm:$0xff]
      %v448 = vld [vmem:[%s303 + $0xc0] sm:$0xff]
      %v449 = vld [vmem:[%s303 + $0xc8] sm:$0xff]
      %v450 = vld [vmem:[%s303 + $0xd8] sm:$0xff]
      %v451 = vld [vmem:[%s303 + $0xe0] sm:$0xff]
      %v452 = vld [vmem:[%s303 + $0xf0] sm:$0xff]
      %v453 = vld [vmem:[%s303 + $0xf8] sm:$0xff]
      %v454 = vld [vmem:[%s303 + $0x108] sm:$0xff]
      %v455 = vld [vmem:[%s303 + $0x110] sm:$0xff]
      %v456 = vld [vmem:[%s303 + $0x120] sm:$0xff]
      %v457 = vld [vmem:[%s303 + $0x128] sm:$0xff]
      %v458 = vld [vmem:[%s303 + $0x138] sm:$0xff]
      %v459 = vld [vmem:[%s303 + $0x140] sm:$0xff]
      %v460 = vld [vmem:[%s303 + $0x150] sm:$0xff]
      %v461 = vld [vmem:[%s303 + $0x158] sm:$0xff]
      %v462 = vld [vmem:[%s303 + $0x168] sm:$0xff]
      %v463 = vld [vmem:[%s303 + $0x170] sm:$0xff]
      %v464 = vld [vmem:[%s303 + $0x1] sm:$0xff]
      %v465 = vld [vmem:[%s303 + $0x9] sm:$0xff]
      %v466 = vld [vmem:[%s303 + $0x19] sm:$0xff]
      %v467 = vld [vmem:[%s303 + $0x21] sm:$0xff]
      %v468 = vld [vmem:[%s303 + $0x31] sm:$0xff]
      %v469 = vld [vmem:[%s303 + $0x39] sm:$0xff]
      %v470 = vld [vmem:[%s303 + $0x49] sm:$0xff]
      %v471 = vld [vmem:[%s303 + $0x51] sm:$0xff]
      %v472 = vld [vmem:[%s303 + $0x61] sm:$0xff]
      %v473 = vld [vmem:[%s303 + $0x69] sm:$0xff]
      %v474 = vld [vmem:[%s303 + $0x79] sm:$0xff]
      %v475 = vld [vmem:[%s303 + $0x81] sm:$0xff]
      %v476 = vld [vmem:[%s303 + $0x91] sm:$0xff]
      %v477 = vld [vmem:[%s303 + $0x99] sm:$0xff]
      %v478 = vld [vmem:[%s303 + $0xa9] sm:$0xff]
      %v479 = vld [vmem:[%s303 + $0xb1] sm:$0xff]
      %v480 = vld [vmem:[%s303 + $0xc1] sm:$0xff]
      %v481 = vld [vmem:[%s303 + $0xc9] sm:$0xff]
      %v482 = vld [vmem:[%s303 + $0xd9] sm:$0xff]
      %v483 = vld [vmem:[%s303 + $0xe1] sm:$0xff]
      %v484 = vld [vmem:[%s303 + $0xf1] sm:$0xff]
      %v485 = vld [vmem:[%s303 + $0xf9] sm:$0xff]
      %v486 = vld [vmem:[%s303 + $0x109] sm:$0xff]
      %v487 = vld [vmem:[%s303 + $0x111] sm:$0xff]
      %v488 = vld [vmem:[%s303 + $0x121] sm:$0xff]
      %v489 = vld [vmem:[%s303 + $0x129] sm:$0xff]
      %v490 = vld [vmem:[%s303 + $0x139] sm:$0xff]
      %v491 = vld [vmem:[%s303 + $0x141] sm:$0xff]
      %v492 = vld [vmem:[%s303 + $0x151] sm:$0xff]
      %v493 = vld [vmem:[%s303 + $0x159] sm:$0xff]
      %v494 = vld [vmem:[%s303 + $0x169] sm:$0xff]
      %v495 = vld [vmem:[%s303 + $0x171] sm:$0xff]
      %v496 = vld [vmem:[%s303 + $0x2] sm:$0xff]
      %v497 = vld [vmem:[%s303 + $0xa] sm:$0xff]
      %v498 = vld [vmem:[%s303 + $0x1a] sm:$0xff]
      %v499 = vld [vmem:[%s303 + $0x22] sm:$0xff]
      %v500 = vld [vmem:[%s303 + $0x32] sm:$0xff]
      %v501 = vld [vmem:[%s303 + $0x3a] sm:$0xff]
      %v502 = vld [vmem:[%s303 + $0x4a] sm:$0xff]
      %v503 = vld [vmem:[%s303 + $0x52] sm:$0xff]
      %v504 = vld [vmem:[%s303 + $0x62] sm:$0xff]
      %v505 = vld [vmem:[%s303 + $0x6a] sm:$0xff]
      %v506 = vld [vmem:[%s303 + $0x7a] sm:$0xff]
      %v507 = vld [vmem:[%s303 + $0x82] sm:$0xff]
      %v508 = vld [vmem:[%s303 + $0x92] sm:$0xff]
      %v509 = vld [vmem:[%s303 + $0x9a] sm:$0xff]
      %v510 = vld [vmem:[%s303 + $0xaa] sm:$0xff]
      %v511 = vld [vmem:[%s303 + $0xb2] sm:$0xff]
      %v512 = vld [vmem:[%s303 + $0xc2] sm:$0xff]
      %v513 = vld [vmem:[%s303 + $0xca] sm:$0xff]
      %v514 = vld [vmem:[%s303 + $0xda] sm:$0xff]
      %v515 = vld [vmem:[%s303 + $0xe2] sm:$0xff]
      %v516 = vld [vmem:[%s303 + $0xf2] sm:$0xff]
      %v517 = vld [vmem:[%s303 + $0xfa] sm:$0xff]
      %v518 = vld [vmem:[%s303 + $0x10a] sm:$0xff]
      %v519 = vld [vmem:[%s303 + $0x112] sm:$0xff]
      %v520 = vld [vmem:[%s303 + $0x122] sm:$0xff]
      %v521 = vld [vmem:[%s303 + $0x12a] sm:$0xff]
      %v522 = vld [vmem:[%s303 + $0x13a] sm:$0xff]
      %v523 = vld [vmem:[%s303 + $0x142] sm:$0xff]
      %v524 = vld [vmem:[%s303 + $0x152] sm:$0xff]
      %v525 = vld [vmem:[%s303 + $0x15a] sm:$0xff]
      %v526 = vld [vmem:[%s303 + $0x16a] sm:$0xff]
      %v527 = vld [vmem:[%s303 + $0x172] sm:$0xff]
      %s528 = scalar_lea.vmem [#allocation2], 48
      %v529 = vld [vmem:[%s528] sm:$0xff]
      %v530 = vld [vmem:[%s528 + $0x8] sm:$0xff]
      %v531 = vld [vmem:[%s528 + $0x18] sm:$0xff]
      %v532 = vld [vmem:[%s528 + $0x20] sm:$0xff]
      %v533 = vld [vmem:[%s528 + $0x30] sm:$0xff]
      %v534 = vld [vmem:[%s528 + $0x38] sm:$0xff]
      %v535 = vld [vmem:[%s528 + $0x48] sm:$0xff]
      %v536 = vld [vmem:[%s528 + $0x50] sm:$0xff]
      %v537 = vld [vmem:[%s528 + $0x60] sm:$0xff]
      %v538 = vld [vmem:[%s528 + $0x68] sm:$0xff]
      %v539 = vld [vmem:[%s528 + $0x78] sm:$0xff]
      %v540 = vld [vmem:[%s528 + $0x80] sm:$0xff]
      %v541 = vld [vmem:[%s528 + $0x90] sm:$0xff]
      %v542 = vld [vmem:[%s528 + $0x98] sm:$0xff]
      %v543 = vld [vmem:[%s528 + $0xa8] sm:$0xff]
      %v544 = vld [vmem:[%s528 + $0xb0] sm:$0xff]
      %v545 = vld [vmem:[%s528 + $0xc0] sm:$0xff]
      %v546 = vld [vmem:[%s528 + $0xc8] sm:$0xff]
      %v547 = vld [vmem:[%s528 + $0xd8] sm:$0xff]
      %v548 = vld [vmem:[%s528 + $0xe0] sm:$0xff]
      %v549 = vld [vmem:[%s528 + $0xf0] sm:$0xff]
      %v550 = vld [vmem:[%s528 + $0xf8] sm:$0xff]
      %v551 = vld [vmem:[%s528 + $0x108] sm:$0xff]
      %v552 = vld [vmem:[%s528 + $0x110] sm:$0xff]
      %v553 = vld [vmem:[%s528 + $0x120] sm:$0xff]
      %v554 = vld [vmem:[%s528 + $0x128] sm:$0xff]
      %v555 = vld [vmem:[%s528 + $0x138] sm:$0xff]
      %v556 = vld [vmem:[%s528 + $0x140] sm:$0xff]
      %v557 = vld [vmem:[%s528 + $0x150] sm:$0xff]
      %v558 = vld [vmem:[%s528 + $0x158] sm:$0xff]
      %v559 = vld [vmem:[%s528 + $0x168] sm:$0xff]
      %v560 = vld [vmem:[%s528 + $0x170] sm:$0xff]
      %v561 = vld [vmem:[%s528 + $0x1] sm:$0xff]
      %v562 = vld [vmem:[%s528 + $0x9] sm:$0xff]
      %v563 = vld [vmem:[%s528 + $0x19] sm:$0xff]
      %v564 = vld [vmem:[%s528 + $0x21] sm:$0xff]
      %v565 = vld [vmem:[%s528 + $0x31] sm:$0xff]
      %v566 = vld [vmem:[%s528 + $0x39] sm:$0xff]
      %v567 = vld [vmem:[%s528 + $0x49] sm:$0xff]
      %v568 = vld [vmem:[%s528 + $0x51] sm:$0xff]
      %v569 = vld [vmem:[%s528 + $0x61] sm:$0xff]
      %v570 = vld [vmem:[%s528 + $0x69] sm:$0xff]
      %v571 = vld [vmem:[%s528 + $0x79] sm:$0xff]
      %v572 = vld [vmem:[%s528 + $0x81] sm:$0xff]
      %v573 = vld [vmem:[%s528 + $0x91] sm:$0xff]
      %v574 = vld [vmem:[%s528 + $0x99] sm:$0xff]
      %v575 = vld [vmem:[%s528 + $0xa9] sm:$0xff]
      %v576 = vld [vmem:[%s528 + $0xb1] sm:$0xff]
      %v577 = vld [vmem:[%s528 + $0xc1] sm:$0xff]
      %v578 = vld [vmem:[%s528 + $0xc9] sm:$0xff]
      %v579 = vld [vmem:[%s528 + $0xd9] sm:$0xff]
      %v580 = vld [vmem:[%s528 + $0xe1] sm:$0xff]
      %v581 = vld [vmem:[%s528 + $0xf1] sm:$0xff]
      %v582 = vld [vmem:[%s528 + $0xf9] sm:$0xff]
      %v583 = vld [vmem:[%s528 + $0x109] sm:$0xff]
      %v584 = vld [vmem:[%s528 + $0x111] sm:$0xff]
      %v585 = vld [vmem:[%s528 + $0x121] sm:$0xff]
      %v586 = vld [vmem:[%s528 + $0x129] sm:$0xff]
      %v587 = vld [vmem:[%s528 + $0x139] sm:$0xff]
      %v588 = vld [vmem:[%s528 + $0x141] sm:$0xff]
      %v589 = vld [vmem:[%s528 + $0x151] sm:$0xff]
      %v590 = vld [vmem:[%s528 + $0x159] sm:$0xff]
      %v591 = vld [vmem:[%s528 + $0x169] sm:$0xff]
      %v592 = vld [vmem:[%s528 + $0x171] sm:$0xff]
      %v593 = vld [vmem:[%s528 + $0x2] sm:$0xff]
      %v594 = vld [vmem:[%s528 + $0xa] sm:$0xff]
      %v595 = vld [vmem:[%s528 + $0x1a] sm:$0xff]
      %v596 = vld [vmem:[%s528 + $0x22] sm:$0xff]
      %v597 = vld [vmem:[%s528 + $0x32] sm:$0xff]
      %v598 = vld [vmem:[%s528 + $0x3a] sm:$0xff]
      %v599 = vld [vmem:[%s528 + $0x4a] sm:$0xff]
      %v600 = vld [vmem:[%s528 + $0x52] sm:$0xff]
      %v601 = vld [vmem:[%s528 + $0x62] sm:$0xff]
      %v602 = vld [vmem:[%s528 + $0x6a] sm:$0xff]
      %v603 = vld [vmem:[%s528 + $0x7a] sm:$0xff]
      %v604 = vld [vmem:[%s528 + $0x82] sm:$0xff]
      %v605 = vld [vmem:[%s528 + $0x92] sm:$0xff]
      %v606 = vld [vmem:[%s528 + $0x9a] sm:$0xff]
      %v607 = vld [vmem:[%s528 + $0xaa] sm:$0xff]
      %v608 = vld [vmem:[%s528 + $0xb2] sm:$0xff]
      %v609 = vld [vmem:[%s528 + $0xc2] sm:$0xff]
      %v610 = vld [vmem:[%s528 + $0xca] sm:$0xff]
      %v611 = vld [vmem:[%s528 + $0xda] sm:$0xff]
      %v612 = vld [vmem:[%s528 + $0xe2] sm:$0xff]
      %v613 = vld [vmem:[%s528 + $0xf2] sm:$0xff]
      %v614 = vld [vmem:[%s528 + $0xfa] sm:$0xff]
      %v615 = vld [vmem:[%s528 + $0x10a] sm:$0xff]
      %v616 = vld [vmem:[%s528 + $0x112] sm:$0xff]
      %v617 = vld [vmem:[%s528 + $0x122] sm:$0xff]
      %v618 = vld [vmem:[%s528 + $0x12a] sm:$0xff]
      %v619 = vld [vmem:[%s528 + $0x13a] sm:$0xff]
      %v620 = vld [vmem:[%s528 + $0x142] sm:$0xff]
      %v621 = vld [vmem:[%s528 + $0x152] sm:$0xff]
      %v622 = vld [vmem:[%s528 + $0x15a] sm:$0xff]
      %v623 = vld [vmem:[%s528 + $0x16a] sm:$0xff]
      %v624 = vld [vmem:[%s528 + $0x172] sm:$0xff]
      %657 = vrot.lane.b32.xlu0 %v368, 4
      %v658 = vpop.permute.xlu0 %657
      %659 = vrot.lane.b32.xlu0 %v369, 4
      %v660 = vpop.permute.xlu0 %659
      %661 = vrot.lane.b32.xlu0 %v370, 4
      %v662 = vpop.permute.xlu0 %661
      %663 = vrot.lane.b32.xlu0 %v371, 4
      %v664 = vpop.permute.xlu0 %663
      %665 = vrot.lane.b32.xlu0 %v372, 4
      %v666 = vpop.permute.xlu0 %665
      %667 = vrot.lane.b32.xlu0 %v373, 4
      %v668 = vpop.permute.xlu0 %667
      %669 = vrot.lane.b32.xlu0 %v374, 4
      %v670 = vpop.permute.xlu0 %669
      %671 = vrot.lane.b32.xlu0 %v375, 4
      %v672 = vpop.permute.xlu0 %671
      %673 = vrot.lane.b32.xlu0 %v376, 4
      %v674 = vpop.permute.xlu0 %673
      %675 = vrot.lane.b32.xlu0 %v377, 4
      %v676 = vpop.permute.xlu0 %675
      %677 = vrot.lane.b32.xlu0 %v378, 4
      %v678 = vpop.permute.xlu0 %677
      %679 = vrot.lane.b32.xlu0 %v379, 4
      %v680 = vpop.permute.xlu0 %679
      %681 = vrot.lane.b32.xlu0 %v380, 4
      %v682 = vpop.permute.xlu0 %681
      %683 = vrot.lane.b32.xlu0 %v381, 4
      %v684 = vpop.permute.xlu0 %683
      %685 = vrot.lane.b32.xlu0 %v382, 4
      %v686 = vpop.permute.xlu0 %685
      %687 = vrot.lane.b32.xlu0 %v383, 4
      %v688 = vpop.permute.xlu0 %687
      %689 = vrot.lane.b32.xlu0 %v384, 4
      %v690 = vpop.permute.xlu0 %689
      %691 = vrot.lane.b32.xlu0 %v385, 4
      %v692 = vpop.permute.xlu0 %691
      %693 = vrot.lane.b32.xlu0 %v386, 4
      %v694 = vpop.permute.xlu0 %693
      %695 = vrot.lane.b32.xlu0 %v387, 4
      %v696 = vpop.permute.xlu0 %695
      %697 = vrot.lane.b32.xlu0 %v388, 4
      %v698 = vpop.permute.xlu0 %697
      %699 = vrot.lane.b32.xlu0 %v389, 4
      %v700 = vpop.permute.xlu0 %699
      %701 = vrot.lane.b32.xlu0 %v390, 4
      %v702 = vpop.permute.xlu0 %701
      %703 = vrot.lane.b32.xlu0 %v391, 4
      %v704 = vpop.permute.xlu0 %703
      %705 = vrot.lane.b32.xlu0 %v392, 4
      %v706 = vpop.permute.xlu0 %705
      %707 = vrot.lane.b32.xlu0 %v393, 4
      %v708 = vpop.permute.xlu0 %707
      %709 = vrot.lane.b32.xlu0 %v394, 4
      %v710 = vpop.permute.xlu0 %709
      %711 = vrot.lane.b32.xlu0 %v395, 4
      %v712 = vpop.permute.xlu0 %711
      %713 = vrot.lane.b32.xlu0 %v396, 4
      %v714 = vpop.permute.xlu0 %713
      %715 = vrot.lane.b32.xlu0 %v397, 4
      %v716 = vpop.permute.xlu0 %715
      %717 = vrot.lane.b32.xlu0 %v398, 4
      %v718 = vpop.permute.xlu0 %717
      %719 = vrot.lane.b32.xlu0 %v399, 4
      %v720 = vpop.permute.xlu0 %719
      %785 = vrot.lane.b32.xlu0 %v400, 8
      %v786 = vpop.permute.xlu0 %785
      %787 = vrot.lane.b32.xlu0 %v401, 8
      %v788 = vpop.permute.xlu0 %787
      %789 = vrot.lane.b32.xlu0 %v402, 8
      %v790 = vpop.permute.xlu0 %789
      %791 = vrot.lane.b32.xlu0 %v403, 8
      %v792 = vpop.permute.xlu0 %791
      %793 = vrot.lane.b32.xlu0 %v404, 8
      %v794 = vpop.permute.xlu0 %793
      %795 = vrot.lane.b32.xlu0 %v405, 8
      %v796 = vpop.permute.xlu0 %795
      %797 = vrot.lane.b32.xlu0 %v406, 8
      %v798 = vpop.permute.xlu0 %797
      %799 = vrot.lane.b32.xlu0 %v407, 8
      %v800 = vpop.permute.xlu0 %799
      %801 = vrot.lane.b32.xlu0 %v408, 8
      %v802 = vpop.permute.xlu0 %801
      %803 = vrot.lane.b32.xlu0 %v409, 8
      %v804 = vpop.permute.xlu0 %803
      %805 = vrot.lane.b32.xlu0 %v410, 8
      %v806 = vpop.permute.xlu0 %805
      %807 = vrot.lane.b32.xlu0 %v411, 8
      %v808 = vpop.permute.xlu0 %807
      %809 = vrot.lane.b32.xlu0 %v412, 8
      %v810 = vpop.permute.xlu0 %809
      %811 = vrot.lane.b32.xlu0 %v413, 8
      %v812 = vpop.permute.xlu0 %811
      %813 = vrot.lane.b32.xlu0 %v414, 8
      %v814 = vpop.permute.xlu0 %813
      %815 = vrot.lane.b32.xlu0 %v415, 8
      %v816 = vpop.permute.xlu0 %815
      %817 = vrot.lane.b32.xlu0 %v416, 8
      %v818 = vpop.permute.xlu0 %817
      %819 = vrot.lane.b32.xlu0 %v417, 8
      %v820 = vpop.permute.xlu0 %819
      %821 = vrot.lane.b32.xlu0 %v418, 8
      %v822 = vpop.permute.xlu0 %821
      %823 = vrot.lane.b32.xlu0 %v419, 8
      %v824 = vpop.permute.xlu0 %823
      %825 = vrot.lane.b32.xlu0 %v420, 8
      %v826 = vpop.permute.xlu0 %825
      %827 = vrot.lane.b32.xlu0 %v421, 8
      %v828 = vpop.permute.xlu0 %827
      %829 = vrot.lane.b32.xlu0 %v422, 8
      %v830 = vpop.permute.xlu0 %829
      %831 = vrot.lane.b32.xlu0 %v423, 8
      %v832 = vpop.permute.xlu0 %831
      %833 = vrot.lane.b32.xlu0 %v424, 8
      %v834 = vpop.permute.xlu0 %833
      %835 = vrot.lane.b32.xlu0 %v425, 8
      %v836 = vpop.permute.xlu0 %835
      %837 = vrot.lane.b32.xlu0 %v426, 8
      %v838 = vpop.permute.xlu0 %837
      %839 = vrot.lane.b32.xlu0 %v427, 8
      %v840 = vpop.permute.xlu0 %839
      %841 = vrot.lane.b32.xlu0 %v428, 8
      %v842 = vpop.permute.xlu0 %841
      %843 = vrot.lane.b32.xlu0 %v429, 8
      %v844 = vpop.permute.xlu0 %843
      %845 = vrot.lane.b32.xlu0 %v430, 8
      %v846 = vpop.permute.xlu0 %845
      %847 = vrot.lane.b32.xlu0 %v431, 8
      %v848 = vpop.permute.xlu0 %847
      %913 = vrot.lane.b32.xlu0 %v432, 12
      %v914 = vpop.permute.xlu0 %913
      %915 = vrot.lane.b32.xlu0 %v433, 12
      %v916 = vpop.permute.xlu0 %915
      %917 = vrot.lane.b32.xlu0 %v434, 12
      %v918 = vpop.permute.xlu0 %917
      %919 = vrot.lane.b32.xlu0 %v435, 12
      %v920 = vpop.permute.xlu0 %919
      %921 = vrot.lane.b32.xlu0 %v436, 12
      %v922 = vpop.permute.xlu0 %921
      %923 = vrot.lane.b32.xlu0 %v437, 12
      %v924 = vpop.permute.xlu0 %923
      %925 = vrot.lane.b32.xlu0 %v438, 12
      %v926 = vpop.permute.xlu0 %925
      %927 = vrot.lane.b32.xlu0 %v439, 12
      %v928 = vpop.permute.xlu0 %927
      %929 = vrot.lane.b32.xlu0 %v440, 12
      %v930 = vpop.permute.xlu0 %929
      %931 = vrot.lane.b32.xlu0 %v441, 12
      %v932 = vpop.permute.xlu0 %931
      %933 = vrot.lane.b32.xlu0 %v442, 12
      %v934 = vpop.permute.xlu0 %933
      %935 = vrot.lane.b32.xlu0 %v443, 12
      %v936 = vpop.permute.xlu0 %935
      %937 = vrot.lane.b32.xlu0 %v444, 12
      %v938 = vpop.permute.xlu0 %937
      %939 = vrot.lane.b32.xlu0 %v445, 12
      %v940 = vpop.permute.xlu0 %939
      %941 = vrot.lane.b32.xlu0 %v446, 12
      %v942 = vpop.permute.xlu0 %941
      %943 = vrot.lane.b32.xlu0 %v447, 12
      %v944 = vpop.permute.xlu0 %943
      %945 = vrot.lane.b32.xlu0 %v448, 12
      %v946 = vpop.permute.xlu0 %945
      %947 = vrot.lane.b32.xlu0 %v449, 12
      %v948 = vpop.permute.xlu0 %947
      %949 = vrot.lane.b32.xlu0 %v450, 12
      %v950 = vpop.permute.xlu0 %949
      %951 = vrot.lane.b32.xlu0 %v451, 12
      %v952 = vpop.permute.xlu0 %951
      %953 = vrot.lane.b32.xlu0 %v452, 12
      %v954 = vpop.permute.xlu0 %953
      %955 = vrot.lane.b32.xlu0 %v453, 12
      %v956 = vpop.permute.xlu0 %955
      %957 = vrot.lane.b32.xlu0 %v454, 12
      %v958 = vpop.permute.xlu0 %957
      %959 = vrot.lane.b32.xlu0 %v455, 12
      %v960 = vpop.permute.xlu0 %959
      %961 = vrot.lane.b32.xlu0 %v456, 12
      %v962 = vpop.permute.xlu0 %961
      %963 = vrot.lane.b32.xlu0 %v457, 12
      %v964 = vpop.permute.xlu0 %963
      %965 = vrot.lane.b32.xlu0 %v458, 12
      %v966 = vpop.permute.xlu0 %965
      %967 = vrot.lane.b32.xlu0 %v459, 12
      %v968 = vpop.permute.xlu0 %967
      %969 = vrot.lane.b32.xlu0 %v460, 12
      %v970 = vpop.permute.xlu0 %969
      %971 = vrot.lane.b32.xlu0 %v461, 12
      %v972 = vpop.permute.xlu0 %971
      %973 = vrot.lane.b32.xlu0 %v462, 12
      %v974 = vpop.permute.xlu0 %973
      %975 = vrot.lane.b32.xlu0 %v463, 12
      %v976 = vpop.permute.xlu0 %975
      %1041 = vrot.lane.b32.xlu0 %v464, 16
      %v1042 = vpop.permute.xlu0 %1041
      %1043 = vrot.lane.b32.xlu0 %v465, 16
      %v1044 = vpop.permute.xlu0 %1043
      %1045 = vrot.lane.b32.xlu0 %v466, 16
      %v1046 = vpop.permute.xlu0 %1045
      %1047 = vrot.lane.b32.xlu0 %v467, 16
      %v1048 = vpop.permute.xlu0 %1047
      %1049 = vrot.lane.b32.xlu0 %v468, 16
      %v1050 = vpop.permute.xlu0 %1049
      %1051 = vrot.lane.b32.xlu0 %v469, 16
      %v1052 = vpop.permute.xlu0 %1051
      %1053 = vrot.lane.b32.xlu0 %v470, 16
      %v1054 = vpop.permute.xlu0 %1053
      %1055 = vrot.lane.b32.xlu0 %v471, 16
      %v1056 = vpop.permute.xlu0 %1055
      %1057 = vrot.lane.b32.xlu0 %v472, 16
      %v1058 = vpop.permute.xlu0 %1057
      %1059 = vrot.lane.b32.xlu0 %v473, 16
      %v1060 = vpop.permute.xlu0 %1059
      %1061 = vrot.lane.b32.xlu0 %v474, 16
      %v1062 = vpop.permute.xlu0 %1061
      %1063 = vrot.lane.b32.xlu0 %v475, 16
      %v1064 = vpop.permute.xlu0 %1063
      %1065 = vrot.lane.b32.xlu0 %v476, 16
      %v1066 = vpop.permute.xlu0 %1065
      %1067 = vrot.lane.b32.xlu0 %v477, 16
      %v1068 = vpop.permute.xlu0 %1067
      %1069 = vrot.lane.b32.xlu0 %v478, 16
      %v1070 = vpop.permute.xlu0 %1069
      %1071 = vrot.lane.b32.xlu0 %v479, 16
      %v1072 = vpop.permute.xlu0 %1071
      %1073 = vrot.lane.b32.xlu0 %v480, 16
      %v1074 = vpop.permute.xlu0 %1073
      %1075 = vrot.lane.b32.xlu0 %v481, 16
      %v1076 = vpop.permute.xlu0 %1075
      %1077 = vrot.lane.b32.xlu0 %v482, 16
      %v1078 = vpop.permute.xlu0 %1077
      %1079 = vrot.lane.b32.xlu0 %v483, 16
      %v1080 = vpop.permute.xlu0 %1079
      %1081 = vrot.lane.b32.xlu0 %v484, 16
      %v1082 = vpop.permute.xlu0 %1081
      %1083 = vrot.lane.b32.xlu0 %v485, 16
      %v1084 = vpop.permute.xlu0 %1083
      %1085 = vrot.lane.b32.xlu0 %v486, 16
      %v1086 = vpop.permute.xlu0 %1085
      %1087 = vrot.lane.b32.xlu0 %v487, 16
      %v1088 = vpop.permute.xlu0 %1087
      %1089 = vrot.lane.b32.xlu0 %v488, 16
      %v1090 = vpop.permute.xlu0 %1089
      %1091 = vrot.lane.b32.xlu0 %v489, 16
      %v1092 = vpop.permute.xlu0 %1091
      %1093 = vrot.lane.b32.xlu0 %v490, 16
      %v1094 = vpop.permute.xlu0 %1093
      %1095 = vrot.lane.b32.xlu0 %v491, 16
      %v1096 = vpop.permute.xlu0 %1095
      %1097 = vrot.lane.b32.xlu0 %v492, 16
      %v1098 = vpop.permute.xlu0 %1097
      %1099 = vrot.lane.b32.xlu0 %v493, 16
      %v1100 = vpop.permute.xlu0 %1099
      %1101 = vrot.lane.b32.xlu0 %v494, 16
      %v1102 = vpop.permute.xlu0 %1101
      %1103 = vrot.lane.b32.xlu0 %v495, 16
      %v1104 = vpop.permute.xlu0 %1103
      %1169 = vrot.lane.b32.xlu0 %v496, 20
      %v1170 = vpop.permute.xlu0 %1169
      %1171 = vrot.lane.b32.xlu0 %v497, 20
      %v1172 = vpop.permute.xlu0 %1171
      %1173 = vrot.lane.b32.xlu0 %v498, 20
      %v1174 = vpop.permute.xlu0 %1173
      %1175 = vrot.lane.b32.xlu0 %v499, 20
      %v1176 = vpop.permute.xlu0 %1175
      %1177 = vrot.lane.b32.xlu0 %v500, 20
      %v1178 = vpop.permute.xlu0 %1177
      %1179 = vrot.lane.b32.xlu0 %v501, 20
      %v1180 = vpop.permute.xlu0 %1179
      %1181 = vrot.lane.b32.xlu0 %v502, 20
      %v1182 = vpop.permute.xlu0 %1181
      %1183 = vrot.lane.b32.xlu0 %v503, 20
      %v1184 = vpop.permute.xlu0 %1183
      %1185 = vrot.lane.b32.xlu0 %v504, 20
      %v1186 = vpop.permute.xlu0 %1185
      %1187 = vrot.lane.b32.xlu0 %v505, 20
      %v1188 = vpop.permute.xlu0 %1187
      %1189 = vrot.lane.b32.xlu0 %v506, 20
      %v1190 = vpop.permute.xlu0 %1189
      %1191 = vrot.lane.b32.xlu0 %v507, 20
      %v1192 = vpop.permute.xlu0 %1191
      %1193 = vrot.lane.b32.xlu0 %v508, 20
      %v1194 = vpop.permute.xlu0 %1193
      %1195 = vrot.lane.b32.xlu0 %v509, 20
      %v1196 = vpop.permute.xlu0 %1195
      %1197 = vrot.lane.b32.xlu0 %v510, 20
      %v1198 = vpop.permute.xlu0 %1197
      %1199 = vrot.lane.b32.xlu0 %v511, 20
      %v1200 = vpop.permute.xlu0 %1199
      %1201 = vrot.lane.b32.xlu0 %v512, 20
      %v1202 = vpop.permute.xlu0 %1201
      %1203 = vrot.lane.b32.xlu0 %v513, 20
      %v1204 = vpop.permute.xlu0 %1203
      %1205 = vrot.lane.b32.xlu0 %v514, 20
      %v1206 = vpop.permute.xlu0 %1205
      %1207 = vrot.lane.b32.xlu0 %v515, 20
      %v1208 = vpop.permute.xlu0 %1207
      %1209 = vrot.lane.b32.xlu0 %v516, 20
      %v1210 = vpop.permute.xlu0 %1209
      %1211 = vrot.lane.b32.xlu0 %v517, 20
      %v1212 = vpop.permute.xlu0 %1211
      %1213 = vrot.lane.b32.xlu0 %v518, 20
      %v1214 = vpop.permute.xlu0 %1213
      %1215 = vrot.lane.b32.xlu0 %v519, 20
      %v1216 = vpop.permute.xlu0 %1215
      %1217 = vrot.lane.b32.xlu0 %v520, 20
      %v1218 = vpop.permute.xlu0 %1217
      %1219 = vrot.lane.b32.xlu0 %v521, 20
      %v1220 = vpop.permute.xlu0 %1219
      %1221 = vrot.lane.b32.xlu0 %v522, 20
      %v1222 = vpop.permute.xlu0 %1221
      %1223 = vrot.lane.b32.xlu0 %v523, 20
      %v1224 = vpop.permute.xlu0 %1223
      %1225 = vrot.lane.b32.xlu0 %v524, 20
      %v1226 = vpop.permute.xlu0 %1225
      %1227 = vrot.lane.b32.xlu0 %v525, 20
      %v1228 = vpop.permute.xlu0 %1227
      %1229 = vrot.lane.b32.xlu0 %v526, 20
      %v1230 = vpop.permute.xlu0 %1229
      %1231 = vrot.lane.b32.xlu0 %v527, 20
      %v1232 = vpop.permute.xlu0 %1231
      %1297 = vrot.lane.b32.xlu0 %v529, 24
      %v1298 = vpop.permute.xlu0 %1297
      %1299 = vrot.lane.b32.xlu0 %v530, 24
      %v1300 = vpop.permute.xlu0 %1299
      %1301 = vrot.lane.b32.xlu0 %v531, 24
      %v1302 = vpop.permute.xlu0 %1301
      %1303 = vrot.lane.b32.xlu0 %v532, 24
      %v1304 = vpop.permute.xlu0 %1303
      %1305 = vrot.lane.b32.xlu0 %v533, 24
      %v1306 = vpop.permute.xlu0 %1305
      %1307 = vrot.lane.b32.xlu0 %v534, 24
      %v1308 = vpop.permute.xlu0 %1307
      %1309 = vrot.lane.b32.xlu0 %v535, 24
      %v1310 = vpop.permute.xlu0 %1309
      %1311 = vrot.lane.b32.xlu0 %v536, 24
      %v1312 = vpop.permute.xlu0 %1311
      %1313 = vrot.lane.b32.xlu0 %v537, 24
      %v1314 = vpop.permute.xlu0 %1313
      %1315 = vrot.lane.b32.xlu0 %v538, 24
      %v1316 = vpop.permute.xlu0 %1315
      %1317 = vrot.lane.b32.xlu0 %v539, 24
      %v1318 = vpop.permute.xlu0 %1317
      %1319 = vrot.lane.b32.xlu0 %v540, 24
      %v1320 = vpop.permute.xlu0 %1319
      %1321 = vrot.lane.b32.xlu0 %v541, 24
      %v1322 = vpop.permute.xlu0 %1321
      %1323 = vrot.lane.b32.xlu0 %v542, 24
      %v1324 = vpop.permute.xlu0 %1323
      %1325 = vrot.lane.b32.xlu0 %v543, 24
      %v1326 = vpop.permute.xlu0 %1325
      %1327 = vrot.lane.b32.xlu0 %v544, 24
      %v1328 = vpop.permute.xlu0 %1327
      %1329 = vrot.lane.b32.xlu0 %v545, 24
      %v1330 = vpop.permute.xlu0 %1329
      %1331 = vrot.lane.b32.xlu0 %v546, 24
      %v1332 = vpop.permute.xlu0 %1331
      %1333 = vrot.lane.b32.xlu0 %v547, 24
      %v1334 = vpop.permute.xlu0 %1333
      %1335 = vrot.lane.b32.xlu0 %v548, 24
      %v1336 = vpop.permute.xlu0 %1335
      %1337 = vrot.lane.b32.xlu0 %v549, 24
      %v1338 = vpop.permute.xlu0 %1337
      %1339 = vrot.lane.b32.xlu0 %v550, 24
      %v1340 = vpop.permute.xlu0 %1339
      %1341 = vrot.lane.b32.xlu0 %v551, 24
      %v1342 = vpop.permute.xlu0 %1341
      %1343 = vrot.lane.b32.xlu0 %v552, 24
      %v1344 = vpop.permute.xlu0 %1343
      %1345 = vrot.lane.b32.xlu0 %v553, 24
      %v1346 = vpop.permute.xlu0 %1345
      %1347 = vrot.lane.b32.xlu0 %v554, 24
      %v1348 = vpop.permute.xlu0 %1347
      %1349 = vrot.lane.b32.xlu0 %v555, 24
      %v1350 = vpop.permute.xlu0 %1349
      %1351 = vrot.lane.b32.xlu0 %v556, 24
      %v1352 = vpop.permute.xlu0 %1351
      %1353 = vrot.lane.b32.xlu0 %v557, 24
      %v1354 = vpop.permute.xlu0 %1353
      %1355 = vrot.lane.b32.xlu0 %v558, 24
      %v1356 = vpop.permute.xlu0 %1355
      %1357 = vrot.lane.b32.xlu0 %v559, 24
      %v1358 = vpop.permute.xlu0 %1357
      %1359 = vrot.lane.b32.xlu0 %v560, 24
      %v1360 = vpop.permute.xlu0 %1359
      %1425 = vrot.lane.b32.xlu0 %v561, 28
      %v1426 = vpop.permute.xlu0 %1425
      %1427 = vrot.lane.b32.xlu0 %v562, 28
      %v1428 = vpop.permute.xlu0 %1427
      %1429 = vrot.lane.b32.xlu0 %v563, 28
      %v1430 = vpop.permute.xlu0 %1429
      %1431 = vrot.lane.b32.xlu0 %v564, 28
      %v1432 = vpop.permute.xlu0 %1431
      %1433 = vrot.lane.b32.xlu0 %v565, 28
      %v1434 = vpop.permute.xlu0 %1433
      %1435 = vrot.lane.b32.xlu0 %v566, 28
      %v1436 = vpop.permute.xlu0 %1435
      %1437 = vrot.lane.b32.xlu0 %v567, 28
      %v1438 = vpop.permute.xlu0 %1437
      %1439 = vrot.lane.b32.xlu0 %v568, 28
      %v1440 = vpop.permute.xlu0 %1439
      %1441 = vrot.lane.b32.xlu0 %v569, 28
      %v1442 = vpop.permute.xlu0 %1441
      %1443 = vrot.lane.b32.xlu0 %v570, 28
      %v1444 = vpop.permute.xlu0 %1443
      %1445 = vrot.lane.b32.xlu0 %v571, 28
      %v1446 = vpop.permute.xlu0 %1445
      %1447 = vrot.lane.b32.xlu0 %v572, 28
      %v1448 = vpop.permute.xlu0 %1447
      %1449 = vrot.lane.b32.xlu0 %v573, 28
      %v1450 = vpop.permute.xlu0 %1449
      %1451 = vrot.lane.b32.xlu0 %v574, 28
      %v1452 = vpop.permute.xlu0 %1451
      %1453 = vrot.lane.b32.xlu0 %v575, 28
      %v1454 = vpop.permute.xlu0 %1453
      %1455 = vrot.lane.b32.xlu0 %v576, 28
      %v1456 = vpop.permute.xlu0 %1455
      %1457 = vrot.lane.b32.xlu0 %v577, 28
      %v1458 = vpop.permute.xlu0 %1457
      %1459 = vrot.lane.b32.xlu0 %v578, 28
      %v1460 = vpop.permute.xlu0 %1459
      %1461 = vrot.lane.b32.xlu0 %v579, 28
      %v1462 = vpop.permute.xlu0 %1461
      %1463 = vrot.lane.b32.xlu0 %v580, 28
      %v1464 = vpop.permute.xlu0 %1463
      %1465 = vrot.lane.b32.xlu0 %v581, 28
      %v1466 = vpop.permute.xlu0 %1465
      %1467 = vrot.lane.b32.xlu0 %v582, 28
      %v1468 = vpop.permute.xlu0 %1467
      %1469 = vrot.lane.b32.xlu0 %v583, 28
      %v1470 = vpop.permute.xlu0 %1469
      %1471 = vrot.lane.b32.xlu0 %v584, 28
      %v1472 = vpop.permute.xlu0 %1471
      %1473 = vrot.lane.b32.xlu0 %v585, 28
      %v1474 = vpop.permute.xlu0 %1473
      %1475 = vrot.lane.b32.xlu0 %v586, 28
      %v1476 = vpop.permute.xlu0 %1475
      %1477 = vrot.lane.b32.xlu0 %v587, 28
      %v1478 = vpop.permute.xlu0 %1477
      %1479 = vrot.lane.b32.xlu0 %v588, 28
      %v1480 = vpop.permute.xlu0 %1479
      %1481 = vrot.lane.b32.xlu0 %v589, 28
      %v1482 = vpop.permute.xlu0 %1481
      %1483 = vrot.lane.b32.xlu0 %v590, 28
      %v1484 = vpop.permute.xlu0 %1483
      %1485 = vrot.lane.b32.xlu0 %v591, 28
      %v1486 = vpop.permute.xlu0 %1485
      %1487 = vrot.lane.b32.xlu0 %v592, 28
      %v1488 = vpop.permute.xlu0 %1487
      %1553 = vrot.lane.b32.xlu0 %v593, 32
      %v1554 = vpop.permute.xlu0 %1553
      %1555 = vrot.lane.b32.xlu0 %v594, 32
      %v1556 = vpop.permute.xlu0 %1555
      %1557 = vrot.lane.b32.xlu0 %v595, 32
      %v1558 = vpop.permute.xlu0 %1557
      %1559 = vrot.lane.b32.xlu0 %v596, 32
      %v1560 = vpop.permute.xlu0 %1559
      %1561 = vrot.lane.b32.xlu0 %v597, 32
      %v1562 = vpop.permute.xlu0 %1561
      %1563 = vrot.lane.b32.xlu0 %v598, 32
      %v1564 = vpop.permute.xlu0 %1563
      %1565 = vrot.lane.b32.xlu0 %v599, 32
      %v1566 = vpop.permute.xlu0 %1565
      %1567 = vrot.lane.b32.xlu0 %v600, 32
      %v1568 = vpop.permute.xlu0 %1567
      %1569 = vrot.lane.b32.xlu0 %v601, 32
      %v1570 = vpop.permute.xlu0 %1569
      %1571 = vrot.lane.b32.xlu0 %v602, 32
      %v1572 = vpop.permute.xlu0 %1571
      %1573 = vrot.lane.b32.xlu0 %v603, 32
      %v1574 = vpop.permute.xlu0 %1573
      %1575 = vrot.lane.b32.xlu0 %v604, 32
      %v1576 = vpop.permute.xlu0 %1575
      %1577 = vrot.lane.b32.xlu0 %v605, 32
      %v1578 = vpop.permute.xlu0 %1577
      %1579 = vrot.lane.b32.xlu0 %v606, 32
      %v1580 = vpop.permute.xlu0 %1579
      %1581 = vrot.lane.b32.xlu0 %v607, 32
      %v1582 = vpop.permute.xlu0 %1581
      %1583 = vrot.lane.b32.xlu0 %v608, 32
      %v1584 = vpop.permute.xlu0 %1583
      %1585 = vrot.lane.b32.xlu0 %v609, 32
      %v1586 = vpop.permute.xlu0 %1585
      %1587 = vrot.lane.b32.xlu0 %v610, 32
      %v1588 = vpop.permute.xlu0 %1587
      %1589 = vrot.lane.b32.xlu0 %v611, 32
      %v1590 = vpop.permute.xlu0 %1589
      %1591 = vrot.lane.b32.xlu0 %v612, 32
      %v1592 = vpop.permute.xlu0 %1591
      %1593 = vrot.lane.b32.xlu0 %v613, 32
      %v1594 = vpop.permute.xlu0 %1593
      %1595 = vrot.lane.b32.xlu0 %v614, 32
      %v1596 = vpop.permute.xlu0 %1595
      %1597 = vrot.lane.b32.xlu0 %v615, 32
      %v1598 = vpop.permute.xlu0 %1597
      %1599 = vrot.lane.b32.xlu0 %v616, 32
      %v1600 = vpop.permute.xlu0 %1599
      %1601 = vrot.lane.b32.xlu0 %v617, 32
      %v1602 = vpop.permute.xlu0 %1601
      %1603 = vrot.lane.b32.xlu0 %v618, 32
      %v1604 = vpop.permute.xlu0 %1603
      %1605 = vrot.lane.b32.xlu0 %v619, 32
      %v1606 = vpop.permute.xlu0 %1605
      %1607 = vrot.lane.b32.xlu0 %v620, 32
      %v1608 = vpop.permute.xlu0 %1607
      %1609 = vrot.lane.b32.xlu0 %v621, 32
      %v1610 = vpop.permute.xlu0 %1609
      %1611 = vrot.lane.b32.xlu0 %v622, 32
      %v1612 = vpop.permute.xlu0 %1611
      %1613 = vrot.lane.b32.xlu0 %v623, 32
      %v1614 = vpop.permute.xlu0 %1613
      %1615 = vrot.lane.b32.xlu0 %v624, 32
      %v1616 = vpop.permute.xlu0 %1615
      %v1649 = vsel %vm225, %v336, %v658
      %v1650 = vsel %vm225, %v337, %v660
      %v1651 = vsel %vm225, %v338, %v662
      %v1652 = vsel %vm225, %v339, %v664
      %v1653 = vsel %vm225, %v340, %v666
      %v1654 = vsel %vm225, %v341, %v668
      %v1655 = vsel %vm225, %v342, %v670
      %v1656 = vsel %vm225, %v343, %v672
      %v1657 = vsel %vm225, %v344, %v674
      %v1658 = vsel %vm225, %v345, %v676
      %v1659 = vsel %vm225, %v346, %v678
      %v1660 = vsel %vm225, %v347, %v680
      %v1661 = vsel %vm225, %v348, %v682
      %v1662 = vsel %vm225, %v349, %v684
      %v1663 = vsel %vm225, %v350, %v686
      %v1664 = vsel %vm225, %v351, %v688
      %v1665 = vsel %vm225, %v352, %v690
      %v1666 = vsel %vm225, %v353, %v692
      %v1667 = vsel %vm225, %v354, %v694
      %v1668 = vsel %vm225, %v355, %v696
      %v1669 = vsel %vm225, %v356, %v698
      %v1670 = vsel %vm225, %v357, %v700
      %v1671 = vsel %vm225, %v358, %v702
      %v1672 = vsel %vm225, %v359, %v704
      %v1673 = vsel %vm225, %v360, %v706
      %v1674 = vsel %vm225, %v361, %v708
      %v1675 = vsel %vm225, %v362, %v710
      %v1676 = vsel %vm225, %v363, %v712
      %v1677 = vsel %vm225, %v364, %v714
      %v1678 = vsel %vm225, %v365, %v716
      %v1679 = vsel %vm225, %v366, %v718
      %v1680 = vsel %vm225, %v367, %v720
      %vm1681 = vcmask 64512
      %v1682 = vsel %vm1681, %v1649, %v786
      %v1683 = vsel %vm1681, %v1650, %v788
      %v1684 = vsel %vm1681, %v1651, %v790
      %v1685 = vsel %vm1681, %v1652, %v792
      %v1686 = vsel %vm1681, %v1653, %v794
      %v1687 = vsel %vm1681, %v1654, %v796
      %v1688 = vsel %vm1681, %v1655, %v798
      %v1689 = vsel %vm1681, %v1656, %v800
      %v1690 = vsel %vm1681, %v1657, %v802
      %v1691 = vsel %vm1681, %v1658, %v804
      %v1692 = vsel %vm1681, %v1659, %v806
      %v1693 = vsel %vm1681, %v1660, %v808
      %v1694 = vsel %vm1681, %v1661, %v810
      %v1695 = vsel %vm1681, %v1662, %v812
      %v1696 = vsel %vm1681, %v1663, %v814
      %v1697 = vsel %vm1681, %v1664, %v816
      %v1698 = vsel %vm1681, %v1665, %v818
      %v1699 = vsel %vm1681, %v1666, %v820
      %v1700 = vsel %vm1681, %v1667, %v822
      %v1701 = vsel %vm1681, %v1668, %v824
      %v1702 = vsel %vm1681, %v1669, %v826
      %v1703 = vsel %vm1681, %v1670, %v828
      %v1704 = vsel %vm1681, %v1671, %v830
      %v1705 = vsel %vm1681, %v1672, %v832
      %v1706 = vsel %vm1681, %v1673, %v834
      %v1707 = vsel %vm1681, %v1674, %v836
      %v1708 = vsel %vm1681, %v1675, %v838
      %v1709 = vsel %vm1681, %v1676, %v840
      %v1710 = vsel %vm1681, %v1677, %v842
      %v1711 = vsel %vm1681, %v1678, %v844
      %v1712 = vsel %vm1681, %v1679, %v846
      %v1713 = vsel %vm1681, %v1680, %v848
      %vm1714 = vcmask 97280
      %v1715 = vsel %vm1714, %v1682, %v914
      %v1716 = vsel %vm1714, %v1683, %v916
      %v1717 = vsel %vm1714, %v1684, %v918
      %v1718 = vsel %vm1714, %v1685, %v920
      %v1719 = vsel %vm1714, %v1686, %v922
      %v1720 = vsel %vm1714, %v1687, %v924
      %v1721 = vsel %vm1714, %v1688, %v926
      %v1722 = vsel %vm1714, %v1689, %v928
      %v1723 = vsel %vm1714, %v1690, %v930
      %v1724 = vsel %vm1714, %v1691, %v932
      %v1725 = vsel %vm1714, %v1692, %v934
      %v1726 = vsel %vm1714, %v1693, %v936
      %v1727 = vsel %vm1714, %v1694, %v938
      %v1728 = vsel %vm1714, %v1695, %v940
      %v1729 = vsel %vm1714, %v1696, %v942
      %v1730 = vsel %vm1714, %v1697, %v944
      %v1731 = vsel %vm1714, %v1698, %v946
      %v1732 = vsel %vm1714, %v1699, %v948
      %v1733 = vsel %vm1714, %v1700, %v950
      %v1734 = vsel %vm1714, %v1701, %v952
      %v1735 = vsel %vm1714, %v1702, %v954
      %v1736 = vsel %vm1714, %v1703, %v956
      %v1737 = vsel %vm1714, %v1704, %v958
      %v1738 = vsel %vm1714, %v1705, %v960
      %v1739 = vsel %vm1714, %v1706, %v962
      %v1740 = vsel %vm1714, %v1707, %v964
      %v1741 = vsel %vm1714, %v1708, %v966
      %v1742 = vsel %vm1714, %v1709, %v968
      %v1743 = vsel %vm1714, %v1710, %v970
      %v1744 = vsel %vm1714, %v1711, %v972
      %v1745 = vsel %vm1714, %v1712, %v974
      %v1746 = vsel %vm1714, %v1713, %v976
      %vm1747 = vcmask 130048
      %v1748 = vsel %vm1747, %v1715, %v1042
      %v1749 = vsel %vm1747, %v1716, %v1044
      %v1750 = vsel %vm1747, %v1717, %v1046
      %v1751 = vsel %vm1747, %v1718, %v1048
      %v1752 = vsel %vm1747, %v1719, %v1050
      %v1753 = vsel %vm1747, %v1720, %v1052
      %v1754 = vsel %vm1747, %v1721, %v1054
      %v1755 = vsel %vm1747, %v1722, %v1056
      %v1756 = vsel %vm1747, %v1723, %v1058
      %v1757 = vsel %vm1747, %v1724, %v1060
      %v1758 = vsel %vm1747, %v1725, %v1062
      %v1759 = vsel %vm1747, %v1726, %v1064
      %v1760 = vsel %vm1747, %v1727, %v1066
      %v1761 = vsel %vm1747, %v1728, %v1068
      %v1762 = vsel %vm1747, %v1729, %v1070
      %v1763 = vsel %vm1747, %v1730, %v1072
      %v1764 = vsel %vm1747, %v1731, %v1074
      %v1765 = vsel %vm1747, %v1732, %v1076
      %v1766 = vsel %vm1747, %v1733, %v1078
      %v1767 = vsel %vm1747, %v1734, %v1080
      %v1768 = vsel %vm1747, %v1735, %v1082
      %v1769 = vsel %vm1747, %v1736, %v1084
      %v1770 = vsel %vm1747, %v1737, %v1086
      %v1771 = vsel %vm1747, %v1738, %v1088
      %v1772 = vsel %vm1747, %v1739, %v1090
      %v1773 = vsel %vm1747, %v1740, %v1092
      %v1774 = vsel %vm1747, %v1741, %v1094
      %v1775 = vsel %vm1747, %v1742, %v1096
      %v1776 = vsel %vm1747, %v1743, %v1098
      %v1777 = vsel %vm1747, %v1744, %v1100
      %v1778 = vsel %vm1747, %v1745, %v1102
      %v1779 = vsel %vm1747, %v1746, %v1104
      %vm1780 = vcmask 162816
      %v1781 = vsel %vm1780, %v1748, %v1170
      %v1782 = vsel %vm1780, %v1749, %v1172
      %v1783 = vsel %vm1780, %v1750, %v1174
      %v1784 = vsel %vm1780, %v1751, %v1176
      %v1785 = vsel %vm1780, %v1752, %v1178
      %v1786 = vsel %vm1780, %v1753, %v1180
      %v1787 = vsel %vm1780, %v1754, %v1182
      %v1788 = vsel %vm1780, %v1755, %v1184
      %v1789 = vsel %vm1780, %v1756, %v1186
      %v1790 = vsel %vm1780, %v1757, %v1188
      %v1791 = vsel %vm1780, %v1758, %v1190
      %v1792 = vsel %vm1780, %v1759, %v1192
      %v1793 = vsel %vm1780, %v1760, %v1194
      %v1794 = vsel %vm1780, %v1761, %v1196
      %v1795 = vsel %vm1780, %v1762, %v1198
      %v1796 = vsel %vm1780, %v1763, %v1200
      %v1797 = vsel %vm1780, %v1764, %v1202
      %v1798 = vsel %vm1780, %v1765, %v1204
      %v1799 = vsel %vm1780, %v1766, %v1206
      %v1800 = vsel %vm1780, %v1767, %v1208
      %v1801 = vsel %vm1780, %v1768, %v1210
      %v1802 = vsel %vm1780, %v1769, %v1212
      %v1803 = vsel %vm1780, %v1770, %v1214
      %v1804 = vsel %vm1780, %v1771, %v1216
      %v1805 = vsel %vm1780, %v1772, %v1218
      %v1806 = vsel %vm1780, %v1773, %v1220
      %v1807 = vsel %vm1780, %v1774, %v1222
      %v1808 = vsel %vm1780, %v1775, %v1224
      %v1809 = vsel %vm1780, %v1776, %v1226
      %v1810 = vsel %vm1780, %v1777, %v1228
      %v1811 = vsel %vm1780, %v1778, %v1230
      %v1812 = vsel %vm1780, %v1779, %v1232
      %vm1813 = vcmask 195584
      %v1814 = vsel %vm1813, %v1781, %v1298
      %v1815 = vsel %vm1813, %v1782, %v1300
      %v1816 = vsel %vm1813, %v1783, %v1302
      %v1817 = vsel %vm1813, %v1784, %v1304
      %v1818 = vsel %vm1813, %v1785, %v1306
      %v1819 = vsel %vm1813, %v1786, %v1308
      %v1820 = vsel %vm1813, %v1787, %v1310
      %v1821 = vsel %vm1813, %v1788, %v1312
      %v1822 = vsel %vm1813, %v1789, %v1314
      %v1823 = vsel %vm1813, %v1790, %v1316
      %v1824 = vsel %vm1813, %v1791, %v1318
      %v1825 = vsel %vm1813, %v1792, %v1320
      %v1826 = vsel %vm1813, %v1793, %v1322
      %v1827 = vsel %vm1813, %v1794, %v1324
      %v1828 = vsel %vm1813, %v1795, %v1326
      %v1829 = vsel %vm1813, %v1796, %v1328
      %v1830 = vsel %vm1813, %v1797, %v1330
      %v1831 = vsel %vm1813, %v1798, %v1332
      %v1832 = vsel %vm1813, %v1799, %v1334
      %v1833 = vsel %vm1813, %v1800, %v1336
      %v1834 = vsel %vm1813, %v1801, %v1338
      %v1835 = vsel %vm1813, %v1802, %v1340
      %v1836 = vsel %vm1813, %v1803, %v1342
      %v1837 = vsel %vm1813, %v1804, %v1344
      %v1838 = vsel %vm1813, %v1805, %v1346
      %v1839 = vsel %vm1813, %v1806, %v1348
      %v1840 = vsel %vm1813, %v1807, %v1350
      %v1841 = vsel %vm1813, %v1808, %v1352
      %v1842 = vsel %vm1813, %v1809, %v1354
      %v1843 = vsel %vm1813, %v1810, %v1356
      %v1844 = vsel %vm1813, %v1811, %v1358
      %v1845 = vsel %vm1813, %v1812, %v1360
      %vm1846 = vcmask 228352
      %v1847 = vsel %vm1846, %v1814, %v1426
      %v1848 = vsel %vm1846, %v1815, %v1428
      %v1849 = vsel %vm1846, %v1816, %v1430
      %v1850 = vsel %vm1846, %v1817, %v1432
      %v1851 = vsel %vm1846, %v1818, %v1434
      %v1852 = vsel %vm1846, %v1819, %v1436
      %v1853 = vsel %vm1846, %v1820, %v1438
      %v1854 = vsel %vm1846, %v1821, %v1440
      %v1855 = vsel %vm1846, %v1822, %v1442
      %v1856 = vsel %vm1846, %v1823, %v1444
      %v1857 = vsel %vm1846, %v1824, %v1446
      %v1858 = vsel %vm1846, %v1825, %v1448
      %v1859 = vsel %vm1846, %v1826, %v1450
      %v1860 = vsel %vm1846, %v1827, %v1452
      %v1861 = vsel %vm1846, %v1828, %v1454
      %v1862 = vsel %vm1846, %v1829, %v1456
      %v1863 = vsel %vm1846, %v1830, %v1458
      %v1864 = vsel %vm1846, %v1831, %v1460
      %v1865 = vsel %vm1846, %v1832, %v1462
      %v1866 = vsel %vm1846, %v1833, %v1464
      %v1867 = vsel %vm1846, %v1834, %v1466
      %v1868 = vsel %vm1846, %v1835, %v1468
      %v1869 = vsel %vm1846, %v1836, %v1470
      %v1870 = vsel %vm1846, %v1837, %v1472
      %v1871 = vsel %vm1846, %v1838, %v1474
      %v1872 = vsel %vm1846, %v1839, %v1476
      %v1873 = vsel %vm1846, %v1840, %v1478
      %v1874 = vsel %vm1846, %v1841, %v1480
      %v1875 = vsel %vm1846, %v1842, %v1482
      %v1876 = vsel %vm1846, %v1843, %v1484
      %v1877 = vsel %vm1846, %v1844, %v1486
      %v1878 = vsel %vm1846, %v1845, %v1488
      %vm1879 = vcmask 261120
      %v1880 = vsel %vm1879, %v1847, %v1554
      %v1881 = vsel %vm1879, %v1848, %v1556
      %v1882 = vsel %vm1879, %v1849, %v1558
      %v1883 = vsel %vm1879, %v1850, %v1560
      %v1884 = vsel %vm1879, %v1851, %v1562
      %v1885 = vsel %vm1879, %v1852, %v1564
      %v1886 = vsel %vm1879, %v1853, %v1566
      %v1887 = vsel %vm1879, %v1854, %v1568
      %v1888 = vsel %vm1879, %v1855, %v1570
      %v1889 = vsel %vm1879, %v1856, %v1572
      %v1890 = vsel %vm1879, %v1857, %v1574
      %v1891 = vsel %vm1879, %v1858, %v1576
      %v1892 = vsel %vm1879, %v1859, %v1578
      %v1893 = vsel %vm1879, %v1860, %v1580
      %v1894 = vsel %vm1879, %v1861, %v1582
      %v1895 = vsel %vm1879, %v1862, %v1584
      %v1896 = vsel %vm1879, %v1863, %v1586
      %v1897 = vsel %vm1879, %v1864, %v1588
      %v1898 = vsel %vm1879, %v1865, %v1590
      %v1899 = vsel %vm1879, %v1866, %v1592
      %v1900 = vsel %vm1879, %v1867, %v1594
      %v1901 = vsel %vm1879, %v1868, %v1596
      %v1902 = vsel %vm1879, %v1869, %v1598
      %v1903 = vsel %vm1879, %v1870, %v1600
      %v1904 = vsel %vm1879, %v1871, %v1602
      %v1905 = vsel %vm1879, %v1872, %v1604
      %v1906 = vsel %vm1879, %v1873, %v1606
      %v1907 = vsel %vm1879, %v1874, %v1608
      %v1908 = vsel %vm1879, %v1875, %v1610
      %v1909 = vsel %vm1879, %v1876, %v1612
      %v1910 = vsel %vm1879, %v1877, %v1614
      %v1911 = vsel %vm1879, %v1878, %v1616
      %v1912 = vld [vmem:[%s1] sm:$0xff]
      %v1913 = vld [vmem:[%s1 + $0x8] sm:$0xff]
      %v1914 = vld [vmem:[%s1 + $0x10] sm:$0xff]
      %v1915 = vld [vmem:[%s1 + $0x18] sm:$0xff]
      %v1916 = vld [vmem:[%s1 + $0x20] sm:$0xf]
      %v1917 = vld [vmem:[%s2] sm:$0x1]
      %v1919 = vlaneseq
      %v1920 = vshrl.u32 %v1919, 7
      %v1921 = vsub.s32 0, %v1920
      %v1922 = vrot.slane %v1917, %v1921
      %vm1924 = vcmask 293888
      %v1926 = vsel %vm1924, %v1880, 0
      %v1929 = vsel %vm1924, %v1881, 0
      %v1932 = vsel %vm1924, %v1882, 0
      %v1935 = vsel %vm1924, %v1883, 0
      %v1938 = vsel %vm1924, %v1884, 0
      %v1941 = vsel %vm1924, %v1885, 0
      %v1944 = vsel %vm1924, %v1886, 0
      %v1947 = vsel %vm1924, %v1887, 0
      %v1950 = vsel %vm1924, %v1888, 0
      %v1953 = vsel %vm1924, %v1889, 0
      %v1956 = vsel %vm1924, %v1890, 0
      %v1959 = vsel %vm1924, %v1891, 0
      %v1962 = vsel %vm1924, %v1892, 0
      %v1965 = vsel %vm1924, %v1893, 0
      %v1968 = vsel %vm1924, %v1894, 0
      %v1971 = vsel %vm1924, %v1895, 0
      %v1974 = vsel %vm1924, %v1896, 0
      %v1977 = vsel %vm1924, %v1897, 0
      %v1980 = vsel %vm1924, %v1898, 0
      %v1983 = vsel %vm1924, %v1899, 0
      %v1986 = vsel %vm1924, %v1900, 0
      %v1989 = vsel %vm1924, %v1901, 0
      %v1992 = vsel %vm1924, %v1902, 0
      %v1995 = vsel %vm1924, %v1903, 0
      %v1998 = vsel %vm1924, %v1904, 0
      %v2001 = vsel %vm1924, %v1905, 0
      %v2004 = vsel %vm1924, %v1906, 0
      %v2007 = vsel %vm1924, %v1907, 0
      %v2010 = vsel %vm1924, %v1908, 0
      %v2013 = vsel %vm1924, %v1909, 0
      %v2016 = vsel %vm1924, %v1910, 0
      %v2019 = vsel %vm1924, %v1911, 0
      %vm2021 = vcmask 1043456
      %v2023 = vsel %vm2021, %v1916, 0
      %2025 = vmatprep.subr.mxu0 0.0
      %2026 = vmatpush1.msra.mxu0 %v1912
      %2027 = vmatprep.subr.mxu0 0.0
      %2028 = vmatpush1.msra.mxu0 %v1913
      %2029 = vmatprep.subr.mxu0 0.0
      %2030 = vmatpush1.msra.mxu0 %v1914
      %2031 = vmatprep.subr.mxu0 0.0
      %2032 = vmatpush1.msra.mxu0 %v1915
      %2033 = vmatprep.subr.mxu0 0.0
      %2034 = vmatpush1.msra.mxu0 %v2023
      %2035 = vmatprep.subr.mxu0 0.0
      %2036 = vmatpush1.msra.mxu0 0.0
      %2037 = vmatprep.subr.mxu0 0.0
      %2038 = vmatpush1.msra.mxu0 0.0
      %2039 = vmatprep.subr.mxu0 0.0
      %2040 = vmatpush1.msra.mxu0 0.0
      %2041 = vmatprep.subr.mxu0 0.0
      %2042 = vmatpush1.msra.mxu0 0.0
      %2043 = vmatprep.subr.mxu0 0.0
      %2044 = vmatpush1.msra.mxu0 0.0
      %2045 = vmatprep.subr.mxu0 0.0
      %2046 = vmatpush1.msra.mxu0 0.0
      %2047 = vmatprep.subr.mxu0 0.0
      %2048 = vmatpush1.msra.mxu0 0.0
      %2049 = vmatprep.subr.mxu0 0.0
      %2050 = vmatpush1.msra.mxu0 0.0
      %2051 = vmatprep.subr.mxu0 0.0
      %2052 = vmatpush1.msra.mxu0 0.0
      %2053 = vmatprep.subr.mxu0 0.0
      %2054 = vmatpush1.msra.mxu0 0.0
      %2055 = vmatprep.subr.mxu0 0.0
      %2056 = vmatpush1.msra.mxu0 0.0
      %2057 = vmatprep.subr.mxu0 0.0
      %2058 = vmatpush1.msra.mxu0 0.0
      %2059 = vmatprep.subr.mxu0 0.0
      %2060 = vmatpush1.msra.mxu0 0.0
      %2061 = vmatprep.subr.mxu0 0.0
      %2062 = vmatpush1.msra.mxu0 0.0
      %2063 = vmatprep.subr.mxu0 0.0
      %2064 = vmatpush1.msra.mxu0 0.0
      %2065 = vmatprep.subr.mxu0 0.0
      %2066 = vmatpush1.msra.mxu0 0.0
      %2067 = vmatprep.subr.mxu0 0.0
      %2068 = vmatpush1.msra.mxu0 0.0
      %2069 = vmatprep.subr.mxu0 0.0
      %2070 = vmatpush1.msra.mxu0 0.0
      %2071 = vmatprep.subr.mxu0 0.0
      %2072 = vmatpush1.msra.mxu0 0.0
      %2073 = vmatprep.subr.mxu0 0.0
      %2074 = vmatpush1.msra.mxu0 0.0
      %2075 = vmatprep.subr.mxu0 0.0
      %2076 = vmatpush1.msra.mxu0 0.0
      %2077 = vmatprep.subr.mxu0 0.0
      %2078 = vmatpush1.msra.mxu0 0.0
      %2079 = vmatprep.subr.mxu0 0.0
      %2080 = vmatpush1.msra.mxu0 0.0
      %2081 = vmatprep.subr.mxu0 0.0
      %2082 = vmatpush1.msra.mxu0 0.0
      %2083 = vmatprep.subr.mxu0 0.0
      %2084 = vmatpush1.msra.mxu0 0.0
      %2085 = vmatprep.subr.mxu0 0.0
      %2086 = vmatpush1.msra.mxu0 0.0
      %2087 = vmatprep.subr.mxu0 0.0
      %2088 = vmatpush1.msra.mxu0 0.0
      %2089 = vmatprep.mubr.f32.mxu0 0.0
      %2090 = vmatmul.mubr.f32.gmra.mrb[0].mxu0 %v1926
      %v2091 = vpop.f32.mrb[0].mxu0
      %v2092 = vadd.f32 %v1922, %v2091
      %v2093 = vpop.f32.mrb[0].mxu0
      %2094 = vmatprep.mubr.f32.mxu0 0.0
      %2095 = vmatmul.mubr.f32.gmra.mrb[0].mxu0 %v1929
      %v2096 = vpop.f32.mrb[0].mxu0
      %v2097 = vadd.f32 %v1922, %v2096
      %v2098 = vpop.f32.mrb[0].mxu0
      %2099 = vmatprep.mubr.f32.mxu0 0.0
      %2100 = vmatmul.mubr.f32.gmra.mrb[0].mxu0 %v1932
      %v2101 = vpop.f32.mrb[0].mxu0
      %v2102 = vadd.f32 %v1922, %v2101
      %v2103 = vpop.f32.mrb[0].mxu0
      %2104 = vmatprep.mubr.f32.mxu0 0.0
      %2105 = vmatmul.mubr.f32.gmra.mrb[0].mxu0 %v1935
      %v2106 = vpop.f32.mrb[0].mxu0
      %v2107 = vadd.f32 %v1922, %v2106
      %v2108 = vpop.f32.mrb[0].mxu0
      %2109 = vmatprep.mubr.f32.mxu0 0.0
      %2110 = vmatmul.mubr.f32.gmra.mrb[0].mxu0 %v1938
      %v2111 = vpop.f32.mrb[0].mxu0
      %v2112 = vadd.f32 %v1922, %v2111
      %v2113 = vpop.f32.mrb[0].mxu0
      %2114 = vmatprep.mubr.f32.mxu0 0.0
      %2115 = vmatmul.mubr.f32.gmra.mrb[0].mxu0 %v1941
      %v2116 = vpop.f32.mrb[0].mxu0
      %v2117 = vadd.f32 %v1922, %v2116
      %v2118 = vpop.f32.mrb[0].mxu0
      %2119 = vmatprep.mubr.f32.mxu0 0.0
      %2120 = vmatmul.mubr.f32.gmra.mrb[0].mxu0 %v1944
      %v2121 = vpop.f32.mrb[0].mxu0
      %v2122 = vadd.f32 %v1922, %v2121
      %v2123 = vpop.f32.mrb[0].mxu0
      %2124 = vmatprep.mubr.f32.mxu0 0.0
      %2125 = vmatmul.mubr.f32.gmra.mrb[0].mxu0 %v1947
      %v2126 = vpop.f32.mrb[0].mxu0
      %v2127 = vadd.f32 %v1922, %v2126
      %v2128 = vpop.f32.mrb[0].mxu0
      %2129 = vmatprep.mubr.f32.mxu0 0.0
      %2130 = vmatmul.mubr.f32.gmra.mrb[0].mxu0 %v1950
      %v2131 = vpop.f32.mrb[0].mxu0
      %v2132 = vadd.f32 %v1922, %v2131
      %v2133 = vpop.f32.mrb[0].mxu0
      %2134 = vmatprep.mubr.f32.mxu0 0.0
      %2135 = vmatmul.mubr.f32.gmra.mrb[0].mxu0 %v1953
      %v2136 = vpop.f32.mrb[0].mxu0
      %v2137 = vadd.f32 %v1922, %v2136
      %v2138 = vpop.f32.mrb[0].mxu0
      %2139 = vmatprep.mubr.f32.mxu0 0.0
      %2140 = vmatmul.mubr.f32.gmra.mrb[0].mxu0 %v1956
      %v2141 = vpop.f32.mrb[0].mxu0
      %v2142 = vadd.f32 %v1922, %v2141
      %v2143 = vpop.f32.mrb[0].mxu0
      %2144 = vmatprep.mubr.f32.mxu0 0.0
      %2145 = vmatmul.mubr.f32.gmra.mrb[0].mxu0 %v1959
      %v2146 = vpop.f32.mrb[0].mxu0
      %v2147 = vadd.f32 %v1922, %v2146
      %v2148 = vpop.f32.mrb[0].mxu0
      %2149 = vmatprep.mubr.f32.mxu0 0.0
      %2150 = vmatmul.mubr.f32.gmra.mrb[0].mxu0 %v1962
      %v2151 = vpop.f32.mrb[0].mxu0
      %v2152 = vadd.f32 %v1922, %v2151
      %v2153 = vpop.f32.mrb[0].mxu0
      %2154 = vmatprep.mubr.f32.mxu0 0.0
      %2155 = vmatmul.mubr.f32.gmra.mrb[0].mxu0 %v1965
      %v2156 = vpop.f32.mrb[0].mxu0
      %v2157 = vadd.f32 %v1922, %v2156
      %v2158 = vpop.f32.mrb[0].mxu0
      %2159 = vmatprep.mubr.f32.mxu0 0.0
      %2160 = vmatmul.mubr.f32.gmra.mrb[0].mxu0 %v1968
      %v2161 = vpop.f32.mrb[0].mxu0
      %v2162 = vadd.f32 %v1922, %v2161
      %v2163 = vpop.f32.mrb[0].mxu0
      %2164 = vmatprep.mubr.f32.mxu0 0.0
      %2165 = vmatmul.mubr.f32.gmra.mrb[0].mxu0 %v1971
      %v2166 = vpop.f32.mrb[0].mxu0
      %v2167 = vadd.f32 %v1922, %v2166
      %v2168 = vpop.f32.mrb[0].mxu0
      %2169 = vmatprep.mubr.f32.mxu0 0.0
      %2170 = vmatmul.mubr.f32.gmra.mrb[0].mxu0 %v1974
      %v2171 = vpop.f32.mrb[0].mxu0
      %v2172 = vadd.f32 %v1922, %v2171
      %v2173 = vpop.f32.mrb[0].mxu0
      %2174 = vmatprep.mubr.f32.mxu0 0.0
      %2175 = vmatmul.mubr.f32.gmra.mrb[0].mxu0 %v1977
      %v2176 = vpop.f32.mrb[0].mxu0
      %v2177 = vadd.f32 %v1922, %v2176
      %v2178 = vpop.f32.mrb[0].mxu0
      %2179 = vmatprep.mubr.f32.mxu0 0.0
      %2180 = vmatmul.mubr.f32.gmra.mrb[0].mxu0 %v1980
      %v2181 = vpop.f32.mrb[0].mxu0
      %v2182 = vadd.f32 %v1922, %v2181
      %v2183 = vpop.f32.mrb[0].mxu0
      %2184 = vmatprep.mubr.f32.mxu0 0.0
      %2185 = vmatmul.mubr.f32.gmra.mrb[0].mxu0 %v1983
      %v2186 = vpop.f32.mrb[0].mxu0
      %v2187 = vadd.f32 %v1922, %v2186
      %v2188 = vpop.f32.mrb[0].mxu0
      %2189 = vmatprep.mubr.f32.mxu0 0.0
      %2190 = vmatmul.mubr.f32.gmra.mrb[0].mxu0 %v1986
      %v2191 = vpop.f32.mrb[0].mxu0
      %v2192 = vadd.f32 %v1922, %v2191
      %v2193 = vpop.f32.mrb[0].mxu0
      %2194 = vmatprep.mubr.f32.mxu0 0.0
      %2195 = vmatmul.mubr.f32.gmra.mrb[0].mxu0 %v1989
      %v2196 = vpop.f32.mrb[0].mxu0
      %v2197 = vadd.f32 %v1922, %v2196
      %v2198 = vpop.f32.mrb[0].mxu0
      %2199 = vmatprep.mubr.f32.mxu0 0.0
      %2200 = vmatmul.mubr.f32.gmra.mrb[0].mxu0 %v1992
      %v2201 = vpop.f32.mrb[0].mxu0
      %v2202 = vadd.f32 %v1922, %v2201
      %v2203 = vpop.f32.mrb[0].mxu0
      %2204 = vmatprep.mubr.f32.mxu0 0.0
      %2205 = vmatmul.mubr.f32.gmra.mrb[0].mxu0 %v1995
      %v2206 = vpop.f32.mrb[0].mxu0
      %v2207 = vadd.f32 %v1922, %v2206
      %v2208 = vpop.f32.mrb[0].mxu0
      %2209 = vmatprep.mubr.f32.mxu0 0.0
      %2210 = vmatmul.mubr.f32.gmra.mrb[0].mxu0 %v1998
      %v2211 = vpop.f32.mrb[0].mxu0
      %v2212 = vadd.f32 %v1922, %v2211
      %v2213 = vpop.f32.mrb[0].mxu0
      %2214 = vmatprep.mubr.f32.mxu0 0.0
      %2215 = vmatmul.mubr.f32.gmra.mrb[0].mxu0 %v2001
      %v2216 = vpop.f32.mrb[0].mxu0
      %v2217 = vadd.f32 %v1922, %v2216
      %v2218 = vpop.f32.mrb[0].mxu0
      %2219 = vmatprep.mubr.f32.mxu0 0.0
      %2220 = vmatmul.mubr.f32.gmra.mrb[0].mxu0 %v2004
      %v2221 = vpop.f32.mrb[0].mxu0
      %v2222 = vadd.f32 %v1922, %v2221
      %v2223 = vpop.f32.mrb[0].mxu0
      %2224 = vmatprep.mubr.f32.mxu0 0.0
      %2225 = vmatmul.mubr.f32.gmra.mrb[0].mxu0 %v2007
      %v2226 = vpop.f32.mrb[0].mxu0
      %v2227 = vadd.f32 %v1922, %v2226
      %v2228 = vpop.f32.mrb[0].mxu0
      %2229 = vmatprep.mubr.f32.mxu0 0.0
      %2230 = vmatmul.mubr.f32.gmra.mrb[0].mxu0 %v2010
      %v2231 = vpop.f32.mrb[0].mxu0
      %v2232 = vadd.f32 %v1922, %v2231
      %v2233 = vpop.f32.mrb[0].mxu0
      %2234 = vmatprep.mubr.f32.mxu0 0.0
      %2235 = vmatmul.mubr.f32.gmra.mrb[0].mxu0 %v2013
      %v2236 = vpop.f32.mrb[0].mxu0
      %v2237 = vadd.f32 %v1922, %v2236
      %v2238 = vpop.f32.mrb[0].mxu0
      %2239 = vmatprep.mubr.f32.mxu0 0.0
      %2240 = vmatmul.mubr.f32.gmra.mrb[0].mxu0 %v2016
      %v2241 = vpop.f32.mrb[0].mxu0
      %v2242 = vadd.f32 %v1922, %v2241
      %v2243 = vpop.f32.mrb[0].mxu0
      %2244 = vmatprep.mubr.f32.mxu0 0.0
      %2245 = vmatmul.mubr.f32.gmra.mrb[0].mxu0 %v2019
      %v2246 = vpop.f32.mrb[0].mxu0
      %v2247 = vadd.f32 %v1922, %v2246
      %v2248 = vpop.f32.mrb[0].mxu0
      %2249 = vdwg.mxu0
      %v2250 = vmax.f32 %v2092, 0.0
      %v2251 = vmax.f32 %v2097, 0.0
      %v2252 = vmax.f32 %v2102, 0.0
      %v2253 = vmax.f32 %v2107, 0.0
      %v2254 = vmax.f32 %v2112, 0.0
      %v2255 = vmax.f32 %v2117, 0.0
      %v2256 = vmax.f32 %v2122, 0.0
      %v2257 = vmax.f32 %v2127, 0.0
      %v2258 = vmax.f32 %v2132, 0.0
      %v2259 = vmax.f32 %v2137, 0.0
      %v2260 = vmax.f32 %v2142, 0.0
      %v2261 = vmax.f32 %v2147, 0.0
      %v2262 = vmax.f32 %v2152, 0.0
      %v2263 = vmax.f32 %v2157, 0.0
      %v2264 = vmax.f32 %v2162, 0.0
      %v2265 = vmax.f32 %v2167, 0.0
      %v2266 = vmax.f32 %v2172, 0.0
      %v2267 = vmax.f32 %v2177, 0.0
      %v2268 = vmax.f32 %v2182, 0.0
      %v2269 = vmax.f32 %v2187, 0.0
      %v2270 = vmax.f32 %v2192, 0.0
      %v2271 = vmax.f32 %v2197, 0.0
      %v2272 = vmax.f32 %v2202, 0.0
      %v2273 = vmax.f32 %v2207, 0.0
      %v2274 = vmax.f32 %v2212, 0.0
      %v2275 = vmax.f32 %v2217, 0.0
      %v2276 = vmax.f32 %v2222, 0.0
      %v2277 = vmax.f32 %v2227, 0.0
      %v2278 = vmax.f32 %v2232, 0.0
      %v2279 = vmax.f32 %v2237, 0.0
      %v2280 = vmax.f32 %v2242, 0.0
      %v2281 = vmax.f32 %v2247, 0.0
      %2282 = vst.msk [vmem:[%s303 + $0x1] sm:$0xff] %vm225, %v2250
      %2283 = vst.msk [vmem:[%s303 + $0x9] sm:$0xff] %vm225, %v2251
      %2284 = vst.msk [vmem:[%s303 + $0x19] sm:$0xff] %vm225, %v2252
      %2285 = vst.msk [vmem:[%s303 + $0x21] sm:$0xff] %vm225, %v2253
      %2286 = vst.msk [vmem:[%s303 + $0x31] sm:$0xff] %vm225, %v2254
      %2287 = vst.msk [vmem:[%s303 + $0x39] sm:$0xff] %vm225, %v2255
      %2288 = vst.msk [vmem:[%s303 + $0x49] sm:$0xff] %vm225, %v2256
      %2289 = vst.msk [vmem:[%s303 + $0x51] sm:$0xff] %vm225, %v2257
      %2290 = vst.msk [vmem:[%s303 + $0x61] sm:$0xff] %vm225, %v2258
      %2291 = vst.msk [vmem:[%s303 + $0x69] sm:$0xff] %vm225, %v2259
      %2292 = vst.msk [vmem:[%s303 + $0x79] sm:$0xff] %vm225, %v2260
      %2293 = vst.msk [vmem:[%s303 + $0x81] sm:$0xff] %vm225, %v2261
      %2294 = vst.msk [vmem:[%s303 + $0x91] sm:$0xff] %vm225, %v2262
      %2295 = vst.msk [vmem:[%s303 + $0x99] sm:$0xff] %vm225, %v2263
      %2296 = vst.msk [vmem:[%s303 + $0xa9] sm:$0xff] %vm225, %v2264
      %2297 = vst.msk [vmem:[%s303 + $0xb1] sm:$0xff] %vm225, %v2265
      %2298 = vst.msk [vmem:[%s303 + $0xc1] sm:$0xff] %vm225, %v2266
      %2299 = vst.msk [vmem:[%s303 + $0xc9] sm:$0xff] %vm225, %v2267
      %2300 = vst.msk [vmem:[%s303 + $0xd9] sm:$0xff] %vm225, %v2268
      %2301 = vst.msk [vmem:[%s303 + $0xe1] sm:$0xff] %vm225, %v2269
      %2302 = vst.msk [vmem:[%s303 + $0xf1] sm:$0xff] %vm225, %v2270
      %2303 = vst.msk [vmem:[%s303 + $0xf9] sm:$0xff] %vm225, %v2271
      %2304 = vst.msk [vmem:[%s303 + $0x109] sm:$0xff] %vm225, %v2272
      %2305 = vst.msk [vmem:[%s303 + $0x111] sm:$0xff] %vm225, %v2273
      %2306 = vst.msk [vmem:[%s303 + $0x121] sm:$0xff] %vm225, %v2274
      %2307 = vst.msk [vmem:[%s303 + $0x129] sm:$0xff] %vm225, %v2275
      %2308 = vst.msk [vmem:[%s303 + $0x139] sm:$0xff] %vm225, %v2276
      %2309 = vst.msk [vmem:[%s303 + $0x141] sm:$0xff] %vm225, %v2277
      %2310 = vst.msk [vmem:[%s303 + $0x151] sm:$0xff] %vm225, %v2278
      %2311 = vst.msk [vmem:[%s303 + $0x159] sm:$0xff] %vm225, %v2279
      %2312 = vst.msk [vmem:[%s303 + $0x169] sm:$0xff] %vm225, %v2280
      %2313 = vst.msk [vmem:[%s303 + $0x171] sm:$0xff] %vm225, %v2281
      %v2314 = vld [vmem:[#allocation2] sm:$0xff]
      %v2315 = vld [vmem:[#allocation2 + $0x8] sm:$0xff]
      %v2316 = vld [vmem:[#allocation2 + $0x18] sm:$0xff]
      %v2317 = vld [vmem:[#allocation2 + $0x20] sm:$0xff]
      %v2318 = vld [vmem:[#allocation2 + $0x30] sm:$0xff]
      %v2319 = vld [vmem:[#allocation2 + $0x38] sm:$0xff]
      %v2320 = vld [vmem:[#allocation2 + $0x48] sm:$0xff]
      %v2321 = vld [vmem:[#allocation2 + $0x50] sm:$0xff]
      %v2322 = vld [vmem:[#allocation2 + $0x60] sm:$0xff]
      %v2323 = vld [vmem:[#allocation2 + $0x68] sm:$0xff]
      %v2324 = vld [vmem:[#allocation2 + $0x78] sm:$0xff]
      %v2325 = vld [vmem:[#allocation2 + $0x80] sm:$0xff]
      %v2326 = vld [vmem:[#allocation2 + $0x90] sm:$0xff]
      %v2327 = vld [vmem:[#allocation2 + $0x98] sm:$0xff]
      %v2328 = vld [vmem:[#allocation2 + $0xa8] sm:$0xff]
      %v2329 = vld [vmem:[#allocation2 + $0xb0] sm:$0xff]
      %v2330 = vld [vmem:[#allocation2 + $0xc0] sm:$0xff]
      %v2331 = vld [vmem:[#allocation2 + $0xc8] sm:$0xff]
      %v2332 = vld [vmem:[#allocation2 + $0xd8] sm:$0xff]
      %v2333 = vld [vmem:[#allocation2 + $0xe0] sm:$0xff]
      %v2334 = vld [vmem:[#allocation2 + $0xf0] sm:$0xff]
      %v2335 = vld [vmem:[#allocation2 + $0xf8] sm:$0xff]
      %v2336 = vld [vmem:[#allocation2 + $0x108] sm:$0xff]
      %v2337 = vld [vmem:[#allocation2 + $0x110] sm:$0xff]
      %v2338 = vld [vmem:[#allocation2 + $0x120] sm:$0xff]
      %v2339 = vld [vmem:[#allocation2 + $0x128] sm:$0xff]
      %v2340 = vld [vmem:[#allocation2 + $0x138] sm:$0xff]
      %v2341 = vld [vmem:[#allocation2 + $0x140] sm:$0xff]
      %v2342 = vld [vmem:[#allocation2 + $0x150] sm:$0xff]
      %v2343 = vld [vmem:[#allocation2 + $0x158] sm:$0xff]
      %v2344 = vld [vmem:[#allocation2 + $0x168] sm:$0xff]
      %v2345 = vld [vmem:[#allocation2 + $0x170] sm:$0xff]
      %v2346 = vld [vmem:[#allocation2 + $0x1] sm:$0xff]
      %v2347 = vld [vmem:[#allocation2 + $0x9] sm:$0xff]
      %v2348 = vld [vmem:[#allocation2 + $0x19] sm:$0xff]
      %v2349 = vld [vmem:[#allocation2 + $0x21] sm:$0xff]
      %v2350 = vld [vmem:[#allocation2 + $0x31] sm:$0xff]
      %v2351 = vld [vmem:[#allocation2 + $0x39] sm:$0xff]
      %v2352 = vld [vmem:[#allocation2 + $0x49] sm:$0xff]
      %v2353 = vld [vmem:[#allocation2 + $0x51] sm:$0xff]
      %v2354 = vld [vmem:[#allocation2 + $0x61] sm:$0xff]
      %v2355 = vld [vmem:[#allocation2 + $0x69] sm:$0xff]
      %v2356 = vld [vmem:[#allocation2 + $0x79] sm:$0xff]
      %v2357 = vld [vmem:[#allocation2 + $0x81] sm:$0xff]
      %v2358 = vld [vmem:[#allocation2 + $0x91] sm:$0xff]
      %v2359 = vld [vmem:[#allocation2 + $0x99] sm:$0xff]
      %v2360 = vld [vmem:[#allocation2 + $0xa9] sm:$0xff]
      %v2361 = vld [vmem:[#allocation2 + $0xb1] sm:$0xff]
      %v2362 = vld [vmem:[#allocation2 + $0xc1] sm:$0xff]
      %v2363 = vld [vmem:[#allocation2 + $0xc9] sm:$0xff]
      %v2364 = vld [vmem:[#allocation2 + $0xd9] sm:$0xff]
      %v2365 = vld [vmem:[#allocation2 + $0xe1] sm:$0xff]
      %v2366 = vld [vmem:[#allocation2 + $0xf1] sm:$0xff]
      %v2367 = vld [vmem:[#allocation2 + $0xf9] sm:$0xff]
      %v2368 = vld [vmem:[#allocation2 + $0x109] sm:$0xff]
      %v2369 = vld [vmem:[#allocation2 + $0x111] sm:$0xff]
      %v2370 = vld [vmem:[#allocation2 + $0x121] sm:$0xff]
      %v2371 = vld [vmem:[#allocation2 + $0x129] sm:$0xff]
      %v2372 = vld [vmem:[#allocation2 + $0x139] sm:$0xff]
      %v2373 = vld [vmem:[#allocation2 + $0x141] sm:$0xff]
      %v2374 = vld [vmem:[#allocation2 + $0x151] sm:$0xff]
      %v2375 = vld [vmem:[#allocation2 + $0x159] sm:$0xff]
      %v2376 = vld [vmem:[#allocation2 + $0x169] sm:$0xff]
      %v2377 = vld [vmem:[#allocation2 + $0x171] sm:$0xff]
      %v2378 = vld [vmem:[#allocation2 + $0x2] sm:$0xff]
      %v2379 = vld [vmem:[#allocation2 + $0xa] sm:$0xff]
      %v2380 = vld [vmem:[#allocation2 + $0x1a] sm:$0xff]
      %v2381 = vld [vmem:[#allocation2 + $0x22] sm:$0xff]
      %v2382 = vld [vmem:[#allocation2 + $0x32] sm:$0xff]
      %v2383 = vld [vmem:[#allocation2 + $0x3a] sm:$0xff]
      %v2384 = vld [vmem:[#allocation2 + $0x4a] sm:$0xff]
      %v2385 = vld [vmem:[#allocation2 + $0x52] sm:$0xff]
      %v2386 = vld [vmem:[#allocation2 + $0x62] sm:$0xff]
      %v2387 = vld [vmem:[#allocation2 + $0x6a] sm:$0xff]
      %v2388 = vld [vmem:[#allocation2 + $0x7a] sm:$0xff]
      %v2389 = vld [vmem:[#allocation2 + $0x82] sm:$0xff]
      %v2390 = vld [vmem:[#allocation2 + $0x92] sm:$0xff]
      %v2391 = vld [vmem:[#allocation2 + $0x9a] sm:$0xff]
      %v2392 = vld [vmem:[#allocation2 + $0xaa] sm:$0xff]
      %v2393 = vld [vmem:[#allocation2 + $0xb2] sm:$0xff]
      %v2394 = vld [vmem:[#allocation2 + $0xc2] sm:$0xff]
      %v2395 = vld [vmem:[#allocation2 + $0xca] sm:$0xff]
      %v2396 = vld [vmem:[#allocation2 + $0xda] sm:$0xff]
      %v2397 = vld [vmem:[#allocation2 + $0xe2] sm:$0xff]
      %v2398 = vld [vmem:[#allocation2 + $0xf2] sm:$0xff]
      %v2399 = vld [vmem:[#allocation2 + $0xfa] sm:$0xff]
      %v2400 = vld [vmem:[#allocation2 + $0x10a] sm:$0xff]
      %v2401 = vld [vmem:[#allocation2 + $0x112] sm:$0xff]
      %v2402 = vld [vmem:[#allocation2 + $0x122] sm:$0xff]
      %v2403 = vld [vmem:[#allocation2 + $0x12a] sm:$0xff]
      %v2404 = vld [vmem:[#allocation2 + $0x13a] sm:$0xff]
      %v2405 = vld [vmem:[#allocation2 + $0x142] sm:$0xff]
      %v2406 = vld [vmem:[#allocation2 + $0x152] sm:$0xff]
      %v2407 = vld [vmem:[#allocation2 + $0x15a] sm:$0xff]
      %v2408 = vld [vmem:[#allocation2 + $0x16a] sm:$0xff]
      %v2409 = vld [vmem:[#allocation2 + $0x172] sm:$0xff]
      %v2410 = vld [vmem:[%s303] sm:$0xff]
      %v2411 = vld [vmem:[%s303 + $0x8] sm:$0xff]
      %v2412 = vld [vmem:[%s303 + $0x18] sm:$0xff]
      %v2413 = vld [vmem:[%s303 + $0x20] sm:$0xff]
      %v2414 = vld [vmem:[%s303 + $0x30] sm:$0xff]
      %v2415 = vld [vmem:[%s303 + $0x38] sm:$0xff]
      %v2416 = vld [vmem:[%s303 + $0x48] sm:$0xff]
      %v2417 = vld [vmem:[%s303 + $0x50] sm:$0xff]
      %v2418 = vld [vmem:[%s303 + $0x60] sm:$0xff]
      %v2419 = vld [vmem:[%s303 + $0x68] sm:$0xff]
      %v2420 = vld [vmem:[%s303 + $0x78] sm:$0xff]
      %v2421 = vld [vmem:[%s303 + $0x80] sm:$0xff]
      %v2422 = vld [vmem:[%s303 + $0x90] sm:$0xff]
      %v2423 = vld [vmem:[%s303 + $0x98] sm:$0xff]
      %v2424 = vld [vmem:[%s303 + $0xa8] sm:$0xff]
      %v2425 = vld [vmem:[%s303 + $0xb0] sm:$0xff]
      %v2426 = vld [vmem:[%s303 + $0xc0] sm:$0xff]
      %v2427 = vld [vmem:[%s303 + $0xc8] sm:$0xff]
      %v2428 = vld [vmem:[%s303 + $0xd8] sm:$0xff]
      %v2429 = vld [vmem:[%s303 + $0xe0] sm:$0xff]
      %v2430 = vld [vmem:[%s303 + $0xf0] sm:$0xff]
      %v2431 = vld [vmem:[%s303 + $0xf8] sm:$0xff]
      %v2432 = vld [vmem:[%s303 + $0x108] sm:$0xff]
      %v2433 = vld [vmem:[%s303 + $0x110] sm:$0xff]
      %v2434 = vld [vmem:[%s303 + $0x120] sm:$0xff]
      %v2435 = vld [vmem:[%s303 + $0x128] sm:$0xff]
      %v2436 = vld [vmem:[%s303 + $0x138] sm:$0xff]
      %v2437 = vld [vmem:[%s303 + $0x140] sm:$0xff]
      %v2438 = vld [vmem:[%s303 + $0x150] sm:$0xff]
      %v2439 = vld [vmem:[%s303 + $0x158] sm:$0xff]
      %v2440 = vld [vmem:[%s303 + $0x168] sm:$0xff]
      %v2441 = vld [vmem:[%s303 + $0x170] sm:$0xff]
      %v2442 = vld [vmem:[%s303 + $0x1] sm:$0xff]
      %v2443 = vld [vmem:[%s303 + $0x9] sm:$0xff]
      %v2444 = vld [vmem:[%s303 + $0x19] sm:$0xff]
      %v2445 = vld [vmem:[%s303 + $0x21] sm:$0xff]
      %v2446 = vld [vmem:[%s303 + $0x31] sm:$0xff]
      %v2447 = vld [vmem:[%s303 + $0x39] sm:$0xff]
      %v2448 = vld [vmem:[%s303 + $0x49] sm:$0xff]
      %v2449 = vld [vmem:[%s303 + $0x51] sm:$0xff]
      %v2450 = vld [vmem:[%s303 + $0x61] sm:$0xff]
      %v2451 = vld [vmem:[%s303 + $0x69] sm:$0xff]
      %v2452 = vld [vmem:[%s303 + $0x79] sm:$0xff]
      %v2453 = vld [vmem:[%s303 + $0x81] sm:$0xff]
      %v2454 = vld [vmem:[%s303 + $0x91] sm:$0xff]
      %v2455 = vld [vmem:[%s303 + $0x99] sm:$0xff]
      %v2456 = vld [vmem:[%s303 + $0xa9] sm:$0xff]
      %v2457 = vld [vmem:[%s303 + $0xb1] sm:$0xff]
      %v2458 = vld [vmem:[%s303 + $0xc1] sm:$0xff]
      %v2459 = vld [vmem:[%s303 + $0xc9] sm:$0xff]
      %v2460 = vld [vmem:[%s303 + $0xd9] sm:$0xff]
      %v2461 = vld [vmem:[%s303 + $0xe1] sm:$0xff]
      %v2462 = vld [vmem:[%s303 + $0xf1] sm:$0xff]
      %v2463 = vld [vmem:[%s303 + $0xf9] sm:$0xff]
      %v2464 = vld [vmem:[%s303 + $0x109] sm:$0xff]
      %v2465 = vld [vmem:[%s303 + $0x111] sm:$0xff]
      %v2466 = vld [vmem:[%s303 + $0x121] sm:$0xff]
      %v2467 = vld [vmem:[%s303 + $0x129] sm:$0xff]
      %v2468 = vld [vmem:[%s303 + $0x139] sm:$0xff]
      %v2469 = vld [vmem:[%s303 + $0x141] sm:$0xff]
      %v2470 = vld [vmem:[%s303 + $0x151] sm:$0xff]
      %v2471 = vld [vmem:[%s303 + $0x159] sm:$0xff]
      %v2472 = vld [vmem:[%s303 + $0x169] sm:$0xff]
      %v2473 = vld [vmem:[%s303 + $0x171] sm:$0xff]
      %v2474 = vld [vmem:[%s303 + $0x2] sm:$0xff]
      %v2475 = vld [vmem:[%s303 + $0xa] sm:$0xff]
      %v2476 = vld [vmem:[%s303 + $0x1a] sm:$0xff]
      %v2477 = vld [vmem:[%s303 + $0x22] sm:$0xff]
      %v2478 = vld [vmem:[%s303 + $0x32] sm:$0xff]
      %v2479 = vld [vmem:[%s303 + $0x3a] sm:$0xff]
      %v2480 = vld [vmem:[%s303 + $0x4a] sm:$0xff]
      %v2481 = vld [vmem:[%s303 + $0x52] sm:$0xff]
      %v2482 = vld [vmem:[%s303 + $0x62] sm:$0xff]
      %v2483 = vld [vmem:[%s303 + $0x6a] sm:$0xff]
      %v2484 = vld [vmem:[%s303 + $0x7a] sm:$0xff]
      %v2485 = vld [vmem:[%s303 + $0x82] sm:$0xff]
      %v2486 = vld [vmem:[%s303 + $0x92] sm:$0xff]
      %v2487 = vld [vmem:[%s303 + $0x9a] sm:$0xff]
      %v2488 = vld [vmem:[%s303 + $0xaa] sm:$0xff]
      %v2489 = vld [vmem:[%s303 + $0xb2] sm:$0xff]
      %v2490 = vld [vmem:[%s303 + $0xc2] sm:$0xff]
      %v2491 = vld [vmem:[%s303 + $0xca] sm:$0xff]
      %v2492 = vld [vmem:[%s303 + $0xda] sm:$0xff]
      %v2493 = vld [vmem:[%s303 + $0xe2] sm:$0xff]
      %v2494 = vld [vmem:[%s303 + $0xf2] sm:$0xff]
      %v2495 = vld [vmem:[%s303 + $0xfa] sm:$0xff]
      %v2496 = vld [vmem:[%s303 + $0x10a] sm:$0xff]
      %v2497 = vld [vmem:[%s303 + $0x112] sm:$0xff]
      %v2498 = vld [vmem:[%s303 + $0x122] sm:$0xff]
      %v2499 = vld [vmem:[%s303 + $0x12a] sm:$0xff]
      %v2500 = vld [vmem:[%s303 + $0x13a] sm:$0xff]
      %v2501 = vld [vmem:[%s303 + $0x142] sm:$0xff]
      %v2502 = vld [vmem:[%s303 + $0x152] sm:$0xff]
      %v2503 = vld [vmem:[%s303 + $0x15a] sm:$0xff]
      %v2504 = vld [vmem:[%s303 + $0x16a] sm:$0xff]
      %v2505 = vld [vmem:[%s303 + $0x172] sm:$0xff]
      %v2506 = vld [vmem:[%s528] sm:$0xff]
      %v2507 = vld [vmem:[%s528 + $0x8] sm:$0xff]
      %v2508 = vld [vmem:[%s528 + $0x18] sm:$0xff]
      %v2509 = vld [vmem:[%s528 + $0x20] sm:$0xff]
      %v2510 = vld [vmem:[%s528 + $0x30] sm:$0xff]
      %v2511 = vld [vmem:[%s528 + $0x38] sm:$0xff]
      %v2512 = vld [vmem:[%s528 + $0x48] sm:$0xff]
      %v2513 = vld [vmem:[%s528 + $0x50] sm:$0xff]
      %v2514 = vld [vmem:[%s528 + $0x60] sm:$0xff]
      %v2515 = vld [vmem:[%s528 + $0x68] sm:$0xff]
      %v2516 = vld [vmem:[%s528 + $0x78] sm:$0xff]
      %v2517 = vld [vmem:[%s528 + $0x80] sm:$0xff]
      %v2518 = vld [vmem:[%s528 + $0x90] sm:$0xff]
      %v2519 = vld [vmem:[%s528 + $0x98] sm:$0xff]
      %v2520 = vld [vmem:[%s528 + $0xa8] sm:$0xff]
      %v2521 = vld [vmem:[%s528 + $0xb0] sm:$0xff]
      %v2522 = vld [vmem:[%s528 + $0xc0] sm:$0xff]
      %v2523 = vld [vmem:[%s528 + $0xc8] sm:$0xff]
      %v2524 = vld [vmem:[%s528 + $0xd8] sm:$0xff]
      %v2525 = vld [vmem:[%s528 + $0xe0] sm:$0xff]
      %v2526 = vld [vmem:[%s528 + $0xf0] sm:$0xff]
      %v2527 = vld [vmem:[%s528 + $0xf8] sm:$0xff]
      %v2528 = vld [vmem:[%s528 + $0x108] sm:$0xff]
      %v2529 = vld [vmem:[%s528 + $0x110] sm:$0xff]
      %v2530 = vld [vmem:[%s528 + $0x120] sm:$0xff]
      %v2531 = vld [vmem:[%s528 + $0x128] sm:$0xff]
      %v2532 = vld [vmem:[%s528 + $0x138] sm:$0xff]
      %v2533 = vld [vmem:[%s528 + $0x140] sm:$0xff]
      %v2534 = vld [vmem:[%s528 + $0x150] sm:$0xff]
      %v2535 = vld [vmem:[%s528 + $0x158] sm:$0xff]
      %v2536 = vld [vmem:[%s528 + $0x168] sm:$0xff]
      %v2537 = vld [vmem:[%s528 + $0x170] sm:$0xff]
      %v2538 = vld [vmem:[%s528 + $0x1] sm:$0xff]
      %v2539 = vld [vmem:[%s528 + $0x9] sm:$0xff]
      %v2540 = vld [vmem:[%s528 + $0x19] sm:$0xff]
      %v2541 = vld [vmem:[%s528 + $0x21] sm:$0xff]
      %v2542 = vld [vmem:[%s528 + $0x31] sm:$0xff]
      %v2543 = vld [vmem:[%s528 + $0x39] sm:$0xff]
      %v2544 = vld [vmem:[%s528 + $0x49] sm:$0xff]
      %v2545 = vld [vmem:[%s528 + $0x51] sm:$0xff]
      %v2546 = vld [vmem:[%s528 + $0x61] sm:$0xff]
      %v2547 = vld [vmem:[%s528 + $0x69] sm:$0xff]
      %v2548 = vld [vmem:[%s528 + $0x79] sm:$0xff]
      %v2549 = vld [vmem:[%s528 + $0x81] sm:$0xff]
      %v2550 = vld [vmem:[%s528 + $0x91] sm:$0xff]
      %v2551 = vld [vmem:[%s528 + $0x99] sm:$0xff]
      %v2552 = vld [vmem:[%s528 + $0xa9] sm:$0xff]
      %v2553 = vld [vmem:[%s528 + $0xb1] sm:$0xff]
      %v2554 = vld [vmem:[%s528 + $0xc1] sm:$0xff]
      %v2555 = vld [vmem:[%s528 + $0xc9] sm:$0xff]
      %v2556 = vld [vmem:[%s528 + $0xd9] sm:$0xff]
      %v2557 = vld [vmem:[%s528 + $0xe1] sm:$0xff]
      %v2558 = vld [vmem:[%s528 + $0xf1] sm:$0xff]
      %v2559 = vld [vmem:[%s528 + $0xf9] sm:$0xff]
      %v2560 = vld [vmem:[%s528 + $0x109] sm:$0xff]
      %v2561 = vld [vmem:[%s528 + $0x111] sm:$0xff]
      %v2562 = vld [vmem:[%s528 + $0x121] sm:$0xff]
      %v2563 = vld [vmem:[%s528 + $0x129] sm:$0xff]
      %v2564 = vld [vmem:[%s528 + $0x139] sm:$0xff]
      %v2565 = vld [vmem:[%s528 + $0x141] sm:$0xff]
      %v2566 = vld [vmem:[%s528 + $0x151] sm:$0xff]
      %v2567 = vld [vmem:[%s528 + $0x159] sm:$0xff]
      %v2568 = vld [vmem:[%s528 + $0x169] sm:$0xff]
      %v2569 = vld [vmem:[%s528 + $0x171] sm:$0xff]
      %v2570 = vld [vmem:[%s528 + $0x2] sm:$0xff]
      %v2571 = vld [vmem:[%s528 + $0xa] sm:$0xff]
      %v2572 = vld [vmem:[%s528 + $0x1a] sm:$0xff]
      %v2573 = vld [vmem:[%s528 + $0x22] sm:$0xff]
      %v2574 = vld [vmem:[%s528 + $0x32] sm:$0xff]
      %v2575 = vld [vmem:[%s528 + $0x3a] sm:$0xff]
      %v2576 = vld [vmem:[%s528 + $0x4a] sm:$0xff]
      %v2577 = vld [vmem:[%s528 + $0x52] sm:$0xff]
      %v2578 = vld [vmem:[%s528 + $0x62] sm:$0xff]
      %v2579 = vld [vmem:[%s528 + $0x6a] sm:$0xff]
      %v2580 = vld [vmem:[%s528 + $0x7a] sm:$0xff]
      %v2581 = vld [vmem:[%s528 + $0x82] sm:$0xff]
      %v2582 = vld [vmem:[%s528 + $0x92] sm:$0xff]
      %v2583 = vld [vmem:[%s528 + $0x9a] sm:$0xff]
      %v2584 = vld [vmem:[%s528 + $0xaa] sm:$0xff]
      %v2585 = vld [vmem:[%s528 + $0xb2] sm:$0xff]
      %v2586 = vld [vmem:[%s528 + $0xc2] sm:$0xff]
      %v2587 = vld [vmem:[%s528 + $0xca] sm:$0xff]
      %v2588 = vld [vmem:[%s528 + $0xda] sm:$0xff]
      %v2589 = vld [vmem:[%s528 + $0xe2] sm:$0xff]
      %v2590 = vld [vmem:[%s528 + $0xf2] sm:$0xff]
      %v2591 = vld [vmem:[%s528 + $0xfa] sm:$0xff]
      %v2592 = vld [vmem:[%s528 + $0x10a] sm:$0xff]
      %v2593 = vld [vmem:[%s528 + $0x112] sm:$0xff]
      %v2594 = vld [vmem:[%s528 + $0x122] sm:$0xff]
      %v2595 = vld [vmem:[%s528 + $0x12a] sm:$0xff]
      %v2596 = vld [vmem:[%s528 + $0x13a] sm:$0xff]
      %v2597 = vld [vmem:[%s528 + $0x142] sm:$0xff]
      %v2598 = vld [vmem:[%s528 + $0x152] sm:$0xff]
      %v2599 = vld [vmem:[%s528 + $0x15a] sm:$0xff]
      %v2600 = vld [vmem:[%s528 + $0x16a] sm:$0xff]
      %v2601 = vld [vmem:[%s528 + $0x172] sm:$0xff]
      %2634 = vrot.lane.b32.xlu0 %v2346, 4
      %v2635 = vpop.permute.xlu0 %2634
      %2636 = vrot.lane.b32.xlu0 %v2347, 4
      %v2637 = vpop.permute.xlu0 %2636
      %2638 = vrot.lane.b32.xlu0 %v2348, 4
      %v2639 = vpop.permute.xlu0 %2638
      %2640 = vrot.lane.b32.xlu0 %v2349, 4
      %v2641 = vpop.permute.xlu0 %2640
      %2642 = vrot.lane.b32.xlu0 %v2350, 4
      %v2643 = vpop.permute.xlu0 %2642
      %2644 = vrot.lane.b32.xlu0 %v2351, 4
      %v2645 = vpop.permute.xlu0 %2644
      %2646 = vrot.lane.b32.xlu0 %v2352, 4
      %v2647 = vpop.permute.xlu0 %2646
      %2648 = vrot.lane.b32.xlu0 %v2353, 4
      %v2649 = vpop.permute.xlu0 %2648
      %2650 = vrot.lane.b32.xlu0 %v2354, 4
      %v2651 = vpop.permute.xlu0 %2650
      %2652 = vrot.lane.b32.xlu0 %v2355, 4
      %v2653 = vpop.permute.xlu0 %2652
      %2654 = vrot.lane.b32.xlu0 %v2356, 4
      %v2655 = vpop.permute.xlu0 %2654
      %2656 = vrot.lane.b32.xlu0 %v2357, 4
      %v2657 = vpop.permute.xlu0 %2656
      %2658 = vrot.lane.b32.xlu0 %v2358, 4
      %v2659 = vpop.permute.xlu0 %2658
      %2660 = vrot.lane.b32.xlu0 %v2359, 4
      %v2661 = vpop.permute.xlu0 %2660
      %2662 = vrot.lane.b32.xlu0 %v2360, 4
      %v2663 = vpop.permute.xlu0 %2662
      %2664 = vrot.lane.b32.xlu0 %v2361, 4
      %v2665 = vpop.permute.xlu0 %2664
      %2666 = vrot.lane.b32.xlu0 %v2362, 4
      %v2667 = vpop.permute.xlu0 %2666
      %2668 = vrot.lane.b32.xlu0 %v2363, 4
      %v2669 = vpop.permute.xlu0 %2668
      %2670 = vrot.lane.b32.xlu0 %v2364, 4
      %v2671 = vpop.permute.xlu0 %2670
      %2672 = vrot.lane.b32.xlu0 %v2365, 4
      %v2673 = vpop.permute.xlu0 %2672
      %2674 = vrot.lane.b32.xlu0 %v2366, 4
      %v2675 = vpop.permute.xlu0 %2674
      %2676 = vrot.lane.b32.xlu0 %v2367, 4
      %v2677 = vpop.permute.xlu0 %2676
      %2678 = vrot.lane.b32.xlu0 %v2368, 4
      %v2679 = vpop.permute.xlu0 %2678
      %2680 = vrot.lane.b32.xlu0 %v2369, 4
      %v2681 = vpop.permute.xlu0 %2680
      %2682 = vrot.lane.b32.xlu0 %v2370, 4
      %v2683 = vpop.permute.xlu0 %2682
      %2684 = vrot.lane.b32.xlu0 %v2371, 4
      %v2685 = vpop.permute.xlu0 %2684
      %2686 = vrot.lane.b32.xlu0 %v2372, 4
      %v2687 = vpop.permute.xlu0 %2686
      %2688 = vrot.lane.b32.xlu0 %v2373, 4
      %v2689 = vpop.permute.xlu0 %2688
      %2690 = vrot.lane.b32.xlu0 %v2374, 4
      %v2691 = vpop.permute.xlu0 %2690
      %2692 = vrot.lane.b32.xlu0 %v2375, 4
      %v2693 = vpop.permute.xlu0 %2692
      %2694 = vrot.lane.b32.xlu0 %v2376, 4
      %v2695 = vpop.permute.xlu0 %2694
      %2696 = vrot.lane.b32.xlu0 %v2377, 4
      %v2697 = vpop.permute.xlu0 %2696
      %2762 = vrot.lane.b32.xlu0 %v2378, 8
      %v2763 = vpop.permute.xlu0 %2762
      %2764 = vrot.lane.b32.xlu0 %v2379, 8
      %v2765 = vpop.permute.xlu0 %2764
      %2766 = vrot.lane.b32.xlu0 %v2380, 8
      %v2767 = vpop.permute.xlu0 %2766
      %2768 = vrot.lane.b32.xlu0 %v2381, 8
      %v2769 = vpop.permute.xlu0 %2768
      %2770 = vrot.lane.b32.xlu0 %v2382, 8
      %v2771 = vpop.permute.xlu0 %2770
      %2772 = vrot.lane.b32.xlu0 %v2383, 8
      %v2773 = vpop.permute.xlu0 %2772
      %2774 = vrot.lane.b32.xlu0 %v2384, 8
      %v2775 = vpop.permute.xlu0 %2774
      %2776 = vrot.lane.b32.xlu0 %v2385, 8
      %v2777 = vpop.permute.xlu0 %2776
      %2778 = vrot.lane.b32.xlu0 %v2386, 8
      %v2779 = vpop.permute.xlu0 %2778
      %2780 = vrot.lane.b32.xlu0 %v2387, 8
      %v2781 = vpop.permute.xlu0 %2780
      %2782 = vrot.lane.b32.xlu0 %v2388, 8
      %v2783 = vpop.permute.xlu0 %2782
      %2784 = vrot.lane.b32.xlu0 %v2389, 8
      %v2785 = vpop.permute.xlu0 %2784
      %2786 = vrot.lane.b32.xlu0 %v2390, 8
      %v2787 = vpop.permute.xlu0 %2786
      %2788 = vrot.lane.b32.xlu0 %v2391, 8
      %v2789 = vpop.permute.xlu0 %2788
      %2790 = vrot.lane.b32.xlu0 %v2392, 8
      %v2791 = vpop.permute.xlu0 %2790
      %2792 = vrot.lane.b32.xlu0 %v2393, 8
      %v2793 = vpop.permute.xlu0 %2792
      %2794 = vrot.lane.b32.xlu0 %v2394, 8
      %v2795 = vpop.permute.xlu0 %2794
      %2796 = vrot.lane.b32.xlu0 %v2395, 8
      %v2797 = vpop.permute.xlu0 %2796
      %2798 = vrot.lane.b32.xlu0 %v2396, 8
      %v2799 = vpop.permute.xlu0 %2798
      %2800 = vrot.lane.b32.xlu0 %v2397, 8
      %v2801 = vpop.permute.xlu0 %2800
      %2802 = vrot.lane.b32.xlu0 %v2398, 8
      %v2803 = vpop.permute.xlu0 %2802
      %2804 = vrot.lane.b32.xlu0 %v2399, 8
      %v2805 = vpop.permute.xlu0 %2804
      %2806 = vrot.lane.b32.xlu0 %v2400, 8
      %v2807 = vpop.permute.xlu0 %2806
      %2808 = vrot.lane.b32.xlu0 %v2401, 8
      %v2809 = vpop.permute.xlu0 %2808
      %2810 = vrot.lane.b32.xlu0 %v2402, 8
      %v2811 = vpop.permute.xlu0 %2810
      %2812 = vrot.lane.b32.xlu0 %v2403, 8
      %v2813 = vpop.permute.xlu0 %2812
      %2814 = vrot.lane.b32.xlu0 %v2404, 8
      %v2815 = vpop.permute.xlu0 %2814
      %2816 = vrot.lane.b32.xlu0 %v2405, 8
      %v2817 = vpop.permute.xlu0 %2816
      %2818 = vrot.lane.b32.xlu0 %v2406, 8
      %v2819 = vpop.permute.xlu0 %2818
      %2820 = vrot.lane.b32.xlu0 %v2407, 8
      %v2821 = vpop.permute.xlu0 %2820
      %2822 = vrot.lane.b32.xlu0 %v2408, 8
      %v2823 = vpop.permute.xlu0 %2822
      %2824 = vrot.lane.b32.xlu0 %v2409, 8
      %v2825 = vpop.permute.xlu0 %2824
      %2890 = vrot.lane.b32.xlu0 %v2410, 12
      %v2891 = vpop.permute.xlu0 %2890
      %2892 = vrot.lane.b32.xlu0 %v2411, 12
      %v2893 = vpop.permute.xlu0 %2892
      %2894 = vrot.lane.b32.xlu0 %v2412, 12
      %v2895 = vpop.permute.xlu0 %2894
      %2896 = vrot.lane.b32.xlu0 %v2413, 12
      %v2897 = vpop.permute.xlu0 %2896
      %2898 = vrot.lane.b32.xlu0 %v2414, 12
      %v2899 = vpop.permute.xlu0 %2898
      %2900 = vrot.lane.b32.xlu0 %v2415, 12
      %v2901 = vpop.permute.xlu0 %2900
      %2902 = vrot.lane.b32.xlu0 %v2416, 12
      %v2903 = vpop.permute.xlu0 %2902
      %2904 = vrot.lane.b32.xlu0 %v2417, 12
      %v2905 = vpop.permute.xlu0 %2904
      %2906 = vrot.lane.b32.xlu0 %v2418, 12
      %v2907 = vpop.permute.xlu0 %2906
      %2908 = vrot.lane.b32.xlu0 %v2419, 12
      %v2909 = vpop.permute.xlu0 %2908
      %2910 = vrot.lane.b32.xlu0 %v2420, 12
      %v2911 = vpop.permute.xlu0 %2910
      %2912 = vrot.lane.b32.xlu0 %v2421, 12
      %v2913 = vpop.permute.xlu0 %2912
      %2914 = vrot.lane.b32.xlu0 %v2422, 12
      %v2915 = vpop.permute.xlu0 %2914
      %2916 = vrot.lane.b32.xlu0 %v2423, 12
      %v2917 = vpop.permute.xlu0 %2916
      %2918 = vrot.lane.b32.xlu0 %v2424, 12
      %v2919 = vpop.permute.xlu0 %2918
      %2920 = vrot.lane.b32.xlu0 %v2425, 12
      %v2921 = vpop.permute.xlu0 %2920
      %2922 = vrot.lane.b32.xlu0 %v2426, 12
      %v2923 = vpop.permute.xlu0 %2922
      %2924 = vrot.lane.b32.xlu0 %v2427, 12
      %v2925 = vpop.permute.xlu0 %2924
      %2926 = vrot.lane.b32.xlu0 %v2428, 12
      %v2927 = vpop.permute.xlu0 %2926
      %2928 = vrot.lane.b32.xlu0 %v2429, 12
      %v2929 = vpop.permute.xlu0 %2928
      %2930 = vrot.lane.b32.xlu0 %v2430, 12
      %v2931 = vpop.permute.xlu0 %2930
      %2932 = vrot.lane.b32.xlu0 %v2431, 12
      %v2933 = vpop.permute.xlu0 %2932
      %2934 = vrot.lane.b32.xlu0 %v2432, 12
      %v2935 = vpop.permute.xlu0 %2934
      %2936 = vrot.lane.b32.xlu0 %v2433, 12
      %v2937 = vpop.permute.xlu0 %2936
      %2938 = vrot.lane.b32.xlu0 %v2434, 12
      %v2939 = vpop.permute.xlu0 %2938
      %2940 = vrot.lane.b32.xlu0 %v2435, 12
      %v2941 = vpop.permute.xlu0 %2940
      %2942 = vrot.lane.b32.xlu0 %v2436, 12
      %v2943 = vpop.permute.xlu0 %2942
      %2944 = vrot.lane.b32.xlu0 %v2437, 12
      %v2945 = vpop.permute.xlu0 %2944
      %2946 = vrot.lane.b32.xlu0 %v2438, 12
      %v2947 = vpop.permute.xlu0 %2946
      %2948 = vrot.lane.b32.xlu0 %v2439, 12
      %v2949 = vpop.permute.xlu0 %2948
      %2950 = vrot.lane.b32.xlu0 %v2440, 12
      %v2951 = vpop.permute.xlu0 %2950
      %2952 = vrot.lane.b32.xlu0 %v2441, 12
      %v2953 = vpop.permute.xlu0 %2952
      %3018 = vrot.lane.b32.xlu0 %v2442, 16
      %v3019 = vpop.permute.xlu0 %3018
      %3020 = vrot.lane.b32.xlu0 %v2443, 16
      %v3021 = vpop.permute.xlu0 %3020
      %3022 = vrot.lane.b32.xlu0 %v2444, 16
      %v3023 = vpop.permute.xlu0 %3022
      %3024 = vrot.lane.b32.xlu0 %v2445, 16
      %v3025 = vpop.permute.xlu0 %3024
      %3026 = vrot.lane.b32.xlu0 %v2446, 16
      %v3027 = vpop.permute.xlu0 %3026
      %3028 = vrot.lane.b32.xlu0 %v2447, 16
      %v3029 = vpop.permute.xlu0 %3028
      %3030 = vrot.lane.b32.xlu0 %v2448, 16
      %v3031 = vpop.permute.xlu0 %3030
      %3032 = vrot.lane.b32.xlu0 %v2449, 16
      %v3033 = vpop.permute.xlu0 %3032
      %3034 = vrot.lane.b32.xlu0 %v2450, 16
      %v3035 = vpop.permute.xlu0 %3034
      %3036 = vrot.lane.b32.xlu0 %v2451, 16
      %v3037 = vpop.permute.xlu0 %3036
      %3038 = vrot.lane.b32.xlu0 %v2452, 16
      %v3039 = vpop.permute.xlu0 %3038
      %3040 = vrot.lane.b32.xlu0 %v2453, 16
      %v3041 = vpop.permute.xlu0 %3040
      %3042 = vrot.lane.b32.xlu0 %v2454, 16
      %v3043 = vpop.permute.xlu0 %3042
      %3044 = vrot.lane.b32.xlu0 %v2455, 16
      %v3045 = vpop.permute.xlu0 %3044
      %3046 = vrot.lane.b32.xlu0 %v2456, 16
      %v3047 = vpop.permute.xlu0 %3046
      %3048 = vrot.lane.b32.xlu0 %v2457, 16
      %v3049 = vpop.permute.xlu0 %3048
      %3050 = vrot.lane.b32.xlu0 %v2458, 16
      %v3051 = vpop.permute.xlu0 %3050
      %3052 = vrot.lane.b32.xlu0 %v2459, 16
      %v3053 = vpop.permute.xlu0 %3052
      %3054 = vrot.lane.b32.xlu0 %v2460, 16
      %v3055 = vpop.permute.xlu0 %3054
      %3056 = vrot.lane.b32.xlu0 %v2461, 16
      %v3057 = vpop.permute.xlu0 %3056
      %3058 = vrot.lane.b32.xlu0 %v2462, 16
      %v3059 = vpop.permute.xlu0 %3058
      %3060 = vrot.lane.b32.xlu0 %v2463, 16
      %v3061 = vpop.permute.xlu0 %3060
      %3062 = vrot.lane.b32.xlu0 %v2464, 16
      %v3063 = vpop.permute.xlu0 %3062
      %3064 = vrot.lane.b32.xlu0 %v2465, 16
      %v3065 = vpop.permute.xlu0 %3064
      %3066 = vrot.lane.b32.xlu0 %v2466, 16
      %v3067 = vpop.permute.xlu0 %3066
      %3068 = vrot.lane.b32.xlu0 %v2467, 16
      %v3069 = vpop.permute.xlu0 %3068
      %3070 = vrot.lane.b32.xlu0 %v2468, 16
      %v3071 = vpop.permute.xlu0 %3070
      %3072 = vrot.lane.b32.xlu0 %v2469, 16
      %v3073 = vpop.permute.xlu0 %3072
      %3074 = vrot.lane.b32.xlu0 %v2470, 16
      %v3075 = vpop.permute.xlu0 %3074
      %3076 = vrot.lane.b32.xlu0 %v2471, 16
      %v3077 = vpop.permute.xlu0 %3076
      %3078 = vrot.lane.b32.xlu0 %v2472, 16
      %v3079 = vpop.permute.xlu0 %3078
      %3080 = vrot.lane.b32.xlu0 %v2473, 16
      %v3081 = vpop.permute.xlu0 %3080
      %3146 = vrot.lane.b32.xlu0 %v2474, 20
      %v3147 = vpop.permute.xlu0 %3146
      %3148 = vrot.lane.b32.xlu0 %v2475, 20
      %v3149 = vpop.permute.xlu0 %3148
      %3150 = vrot.lane.b32.xlu0 %v2476, 20
      %v3151 = vpop.permute.xlu0 %3150
      %3152 = vrot.lane.b32.xlu0 %v2477, 20
      %v3153 = vpop.permute.xlu0 %3152
      %3154 = vrot.lane.b32.xlu0 %v2478, 20
      %v3155 = vpop.permute.xlu0 %3154
      %3156 = vrot.lane.b32.xlu0 %v2479, 20
      %v3157 = vpop.permute.xlu0 %3156
      %3158 = vrot.lane.b32.xlu0 %v2480, 20
      %v3159 = vpop.permute.xlu0 %3158
      %3160 = vrot.lane.b32.xlu0 %v2481, 20
      %v3161 = vpop.permute.xlu0 %3160
      %3162 = vrot.lane.b32.xlu0 %v2482, 20
      %v3163 = vpop.permute.xlu0 %3162
      %3164 = vrot.lane.b32.xlu0 %v2483, 20
      %v3165 = vpop.permute.xlu0 %3164
      %3166 = vrot.lane.b32.xlu0 %v2484, 20
      %v3167 = vpop.permute.xlu0 %3166
      %3168 = vrot.lane.b32.xlu0 %v2485, 20
      %v3169 = vpop.permute.xlu0 %3168
      %3170 = vrot.lane.b32.xlu0 %v2486, 20
      %v3171 = vpop.permute.xlu0 %3170
      %3172 = vrot.lane.b32.xlu0 %v2487, 20
      %v3173 = vpop.permute.xlu0 %3172
      %3174 = vrot.lane.b32.xlu0 %v2488, 20
      %v3175 = vpop.permute.xlu0 %3174
      %3176 = vrot.lane.b32.xlu0 %v2489, 20
      %v3177 = vpop.permute.xlu0 %3176
      %3178 = vrot.lane.b32.xlu0 %v2490, 20
      %v3179 = vpop.permute.xlu0 %3178
      %3180 = vrot.lane.b32.xlu0 %v2491, 20
      %v3181 = vpop.permute.xlu0 %3180
      %3182 = vrot.lane.b32.xlu0 %v2492, 20
      %v3183 = vpop.permute.xlu0 %3182
      %3184 = vrot.lane.b32.xlu0 %v2493, 20
      %v3185 = vpop.permute.xlu0 %3184
      %3186 = vrot.lane.b32.xlu0 %v2494, 20
      %v3187 = vpop.permute.xlu0 %3186
      %3188 = vrot.lane.b32.xlu0 %v2495, 20
      %v3189 = vpop.permute.xlu0 %3188
      %3190 = vrot.lane.b32.xlu0 %v2496, 20
      %v3191 = vpop.permute.xlu0 %3190
      %3192 = vrot.lane.b32.xlu0 %v2497, 20
      %v3193 = vpop.permute.xlu0 %3192
      %3194 = vrot.lane.b32.xlu0 %v2498, 20
      %v3195 = vpop.permute.xlu0 %3194
      %3196 = vrot.lane.b32.xlu0 %v2499, 20
      %v3197 = vpop.permute.xlu0 %3196
      %3198 = vrot.lane.b32.xlu0 %v2500, 20
      %v3199 = vpop.permute.xlu0 %3198
      %3200 = vrot.lane.b32.xlu0 %v2501, 20
      %v3201 = vpop.permute.xlu0 %3200
      %3202 = vrot.lane.b32.xlu0 %v2502, 20
      %v3203 = vpop.permute.xlu0 %3202
      %3204 = vrot.lane.b32.xlu0 %v2503, 20
      %v3205 = vpop.permute.xlu0 %3204
      %3206 = vrot.lane.b32.xlu0 %v2504, 20
      %v3207 = vpop.permute.xlu0 %3206
      %3208 = vrot.lane.b32.xlu0 %v2505, 20
      %v3209 = vpop.permute.xlu0 %3208
      %3274 = vrot.lane.b32.xlu0 %v2506, 24
      %v3275 = vpop.permute.xlu0 %3274
      %3276 = vrot.lane.b32.xlu0 %v2507, 24
      %v3277 = vpop.permute.xlu0 %3276
      %3278 = vrot.lane.b32.xlu0 %v2508, 24
      %v3279 = vpop.permute.xlu0 %3278
      %3280 = vrot.lane.b32.xlu0 %v2509, 24
      %v3281 = vpop.permute.xlu0 %3280
      %3282 = vrot.lane.b32.xlu0 %v2510, 24
      %v3283 = vpop.permute.xlu0 %3282
      %3284 = vrot.lane.b32.xlu0 %v2511, 24
      %v3285 = vpop.permute.xlu0 %3284
      %3286 = vrot.lane.b32.xlu0 %v2512, 24
      %v3287 = vpop.permute.xlu0 %3286
      %3288 = vrot.lane.b32.xlu0 %v2513, 24
      %v3289 = vpop.permute.xlu0 %3288
      %3290 = vrot.lane.b32.xlu0 %v2514, 24
      %v3291 = vpop.permute.xlu0 %3290
      %3292 = vrot.lane.b32.xlu0 %v2515, 24
      %v3293 = vpop.permute.xlu0 %3292
      %3294 = vrot.lane.b32.xlu0 %v2516, 24
      %v3295 = vpop.permute.xlu0 %3294
      %3296 = vrot.lane.b32.xlu0 %v2517, 24
      %v3297 = vpop.permute.xlu0 %3296
      %3298 = vrot.lane.b32.xlu0 %v2518, 24
      %v3299 = vpop.permute.xlu0 %3298
      %3300 = vrot.lane.b32.xlu0 %v2519, 24
      %v3301 = vpop.permute.xlu0 %3300
      %3302 = vrot.lane.b32.xlu0 %v2520, 24
      %v3303 = vpop.permute.xlu0 %3302
      %3304 = vrot.lane.b32.xlu0 %v2521, 24
      %v3305 = vpop.permute.xlu0 %3304
      %3306 = vrot.lane.b32.xlu0 %v2522, 24
      %v3307 = vpop.permute.xlu0 %3306
      %3308 = vrot.lane.b32.xlu0 %v2523, 24
      %v3309 = vpop.permute.xlu0 %3308
      %3310 = vrot.lane.b32.xlu0 %v2524, 24
      %v3311 = vpop.permute.xlu0 %3310
      %3312 = vrot.lane.b32.xlu0 %v2525, 24
      %v3313 = vpop.permute.xlu0 %3312
      %3314 = vrot.lane.b32.xlu0 %v2526, 24
      %v3315 = vpop.permute.xlu0 %3314
      %3316 = vrot.lane.b32.xlu0 %v2527, 24
      %v3317 = vpop.permute.xlu0 %3316
      %3318 = vrot.lane.b32.xlu0 %v2528, 24
      %v3319 = vpop.permute.xlu0 %3318
      %3320 = vrot.lane.b32.xlu0 %v2529, 24
      %v3321 = vpop.permute.xlu0 %3320
      %3322 = vrot.lane.b32.xlu0 %v2530, 24
      %v3323 = vpop.permute.xlu0 %3322
      %3324 = vrot.lane.b32.xlu0 %v2531, 24
      %v3325 = vpop.permute.xlu0 %3324
      %3326 = vrot.lane.b32.xlu0 %v2532, 24
      %v3327 = vpop.permute.xlu0 %3326
      %3328 = vrot.lane.b32.xlu0 %v2533, 24
      %v3329 = vpop.permute.xlu0 %3328
      %3330 = vrot.lane.b32.xlu0 %v2534, 24
      %v3331 = vpop.permute.xlu0 %3330
      %3332 = vrot.lane.b32.xlu0 %v2535, 24
      %v3333 = vpop.permute.xlu0 %3332
      %3334 = vrot.lane.b32.xlu0 %v2536, 24
      %v3335 = vpop.permute.xlu0 %3334
      %3336 = vrot.lane.b32.xlu0 %v2537, 24
      %v3337 = vpop.permute.xlu0 %3336
      %3402 = vrot.lane.b32.xlu0 %v2538, 28
      %v3403 = vpop.permute.xlu0 %3402
      %3404 = vrot.lane.b32.xlu0 %v2539, 28
      %v3405 = vpop.permute.xlu0 %3404
      %3406 = vrot.lane.b32.xlu0 %v2540, 28
      %v3407 = vpop.permute.xlu0 %3406
      %3408 = vrot.lane.b32.xlu0 %v2541, 28
      %v3409 = vpop.permute.xlu0 %3408
      %3410 = vrot.lane.b32.xlu0 %v2542, 28
      %v3411 = vpop.permute.xlu0 %3410
      %3412 = vrot.lane.b32.xlu0 %v2543, 28
      %v3413 = vpop.permute.xlu0 %3412
      %3414 = vrot.lane.b32.xlu0 %v2544, 28
      %v3415 = vpop.permute.xlu0 %3414
      %3416 = vrot.lane.b32.xlu0 %v2545, 28
      %v3417 = vpop.permute.xlu0 %3416
      %3418 = vrot.lane.b32.xlu0 %v2546, 28
      %v3419 = vpop.permute.xlu0 %3418
      %3420 = vrot.lane.b32.xlu0 %v2547, 28
      %v3421 = vpop.permute.xlu0 %3420
      %3422 = vrot.lane.b32.xlu0 %v2548, 28
      %v3423 = vpop.permute.xlu0 %3422
      %3424 = vrot.lane.b32.xlu0 %v2549, 28
      %v3425 = vpop.permute.xlu0 %3424
      %3426 = vrot.lane.b32.xlu0 %v2550, 28
      %v3427 = vpop.permute.xlu0 %3426
      %3428 = vrot.lane.b32.xlu0 %v2551, 28
      %v3429 = vpop.permute.xlu0 %3428
      %3430 = vrot.lane.b32.xlu0 %v2552, 28
      %v3431 = vpop.permute.xlu0 %3430
      %3432 = vrot.lane.b32.xlu0 %v2553, 28
      %v3433 = vpop.permute.xlu0 %3432
      %3434 = vrot.lane.b32.xlu0 %v2554, 28
      %v3435 = vpop.permute.xlu0 %3434
      %3436 = vrot.lane.b32.xlu0 %v2555, 28
      %v3437 = vpop.permute.xlu0 %3436
      %3438 = vrot.lane.b32.xlu0 %v2556, 28
      %v3439 = vpop.permute.xlu0 %3438
      %3440 = vrot.lane.b32.xlu0 %v2557, 28
      %v3441 = vpop.permute.xlu0 %3440
      %3442 = vrot.lane.b32.xlu0 %v2558, 28
      %v3443 = vpop.permute.xlu0 %3442
      %3444 = vrot.lane.b32.xlu0 %v2559, 28
      %v3445 = vpop.permute.xlu0 %3444
      %3446 = vrot.lane.b32.xlu0 %v2560, 28
      %v3447 = vpop.permute.xlu0 %3446
      %3448 = vrot.lane.b32.xlu0 %v2561, 28
      %v3449 = vpop.permute.xlu0 %3448
      %3450 = vrot.lane.b32.xlu0 %v2562, 28
      %v3451 = vpop.permute.xlu0 %3450
      %3452 = vrot.lane.b32.xlu0 %v2563, 28
      %v3453 = vpop.permute.xlu0 %3452
      %3454 = vrot.lane.b32.xlu0 %v2564, 28
      %v3455 = vpop.permute.xlu0 %3454
      %3456 = vrot.lane.b32.xlu0 %v2565, 28
      %v3457 = vpop.permute.xlu0 %3456
      %3458 = vrot.lane.b32.xlu0 %v2566, 28
      %v3459 = vpop.permute.xlu0 %3458
      %3460 = vrot.lane.b32.xlu0 %v2567, 28
      %v3461 = vpop.permute.xlu0 %3460
      %3462 = vrot.lane.b32.xlu0 %v2568, 28
      %v3463 = vpop.permute.xlu0 %3462
      %3464 = vrot.lane.b32.xlu0 %v2569, 28
      %v3465 = vpop.permute.xlu0 %3464
      %3530 = vrot.lane.b32.xlu0 %v2570, 32
      %v3531 = vpop.permute.xlu0 %3530
      %3532 = vrot.lane.b32.xlu0 %v2571, 32
      %v3533 = vpop.permute.xlu0 %3532
      %3534 = vrot.lane.b32.xlu0 %v2572, 32
      %v3535 = vpop.permute.xlu0 %3534
      %3536 = vrot.lane.b32.xlu0 %v2573, 32
      %v3537 = vpop.permute.xlu0 %3536
      %3538 = vrot.lane.b32.xlu0 %v2574, 32
      %v3539 = vpop.permute.xlu0 %3538
      %3540 = vrot.lane.b32.xlu0 %v2575, 32
      %v3541 = vpop.permute.xlu0 %3540
      %3542 = vrot.lane.b32.xlu0 %v2576, 32
      %v3543 = vpop.permute.xlu0 %3542
      %3544 = vrot.lane.b32.xlu0 %v2577, 32
      %v3545 = vpop.permute.xlu0 %3544
      %3546 = vrot.lane.b32.xlu0 %v2578, 32
      %v3547 = vpop.permute.xlu0 %3546
      %3548 = vrot.lane.b32.xlu0 %v2579, 32
      %v3549 = vpop.permute.xlu0 %3548
      %3550 = vrot.lane.b32.xlu0 %v2580, 32
      %v3551 = vpop.permute.xlu0 %3550
      %3552 = vrot.lane.b32.xlu0 %v2581, 32
      %v3553 = vpop.permute.xlu0 %3552
      %3554 = vrot.lane.b32.xlu0 %v2582, 32
      %v3555 = vpop.permute.xlu0 %3554
      %3556 = vrot.lane.b32.xlu0 %v2583, 32
      %v3557 = vpop.permute.xlu0 %3556
      %3558 = vrot.lane.b32.xlu0 %v2584, 32
      %v3559 = vpop.permute.xlu0 %3558
      %3560 = vrot.lane.b32.xlu0 %v2585, 32
      %v3561 = vpop.permute.xlu0 %3560
      %3562 = vrot.lane.b32.xlu0 %v2586, 32
      %v3563 = vpop.permute.xlu0 %3562
      %3564 = vrot.lane.b32.xlu0 %v2587, 32
      %v3565 = vpop.permute.xlu0 %3564
      %3566 = vrot.lane.b32.xlu0 %v2588, 32
      %v3567 = vpop.permute.xlu0 %3566
      %3568 = vrot.lane.b32.xlu0 %v2589, 32
      %v3569 = vpop.permute.xlu0 %3568
      %3570 = vrot.lane.b32.xlu0 %v2590, 32
      %v3571 = vpop.permute.xlu0 %3570
      %3572 = vrot.lane.b32.xlu0 %v2591, 32
      %v3573 = vpop.permute.xlu0 %3572
      %3574 = vrot.lane.b32.xlu0 %v2592, 32
      %v3575 = vpop.permute.xlu0 %3574
      %3576 = vrot.lane.b32.xlu0 %v2593, 32
      %v3577 = vpop.permute.xlu0 %3576
      %3578 = vrot.lane.b32.xlu0 %v2594, 32
      %v3579 = vpop.permute.xlu0 %3578
      %3580 = vrot.lane.b32.xlu0 %v2595, 32
      %v3581 = vpop.permute.xlu0 %3580
      %3582 = vrot.lane.b32.xlu0 %v2596, 32
      %v3583 = vpop.permute.xlu0 %3582
      %3584 = vrot.lane.b32.xlu0 %v2597, 32
      %v3585 = vpop.permute.xlu0 %3584
      %3586 = vrot.lane.b32.xlu0 %v2598, 32
      %v3587 = vpop.permute.xlu0 %3586
      %3588 = vrot.lane.b32.xlu0 %v2599, 32
      %v3589 = vpop.permute.xlu0 %3588
      %3590 = vrot.lane.b32.xlu0 %v2600, 32
      %v3591 = vpop.permute.xlu0 %3590
      %3592 = vrot.lane.b32.xlu0 %v2601, 32
      %v3593 = vpop.permute.xlu0 %3592
      %v3626 = vsel %vm225, %v2314, %v2635
      %v3627 = vsel %vm225, %v2315, %v2637
      %v3628 = vsel %vm225, %v2316, %v2639
      %v3629 = vsel %vm225, %v2317, %v2641
      %v3630 = vsel %vm225, %v2318, %v2643
      %v3631 = vsel %vm225, %v2319, %v2645
      %v3632 = vsel %vm225, %v2320, %v2647
      %v3633 = vsel %vm225, %v2321, %v2649
      %v3634 = vsel %vm225, %v2322, %v2651
      %v3635 = vsel %vm225, %v2323, %v2653
      %v3636 = vsel %vm225, %v2324, %v2655
      %v3637 = vsel %vm225, %v2325, %v2657
      %v3638 = vsel %vm225, %v2326, %v2659
      %v3639 = vsel %vm225, %v2327, %v2661
      %v3640 = vsel %vm225, %v2328, %v2663
      %v3641 = vsel %vm225, %v2329, %v2665
      %v3642 = vsel %vm225, %v2330, %v2667
      %v3643 = vsel %vm225, %v2331, %v2669
      %v3644 = vsel %vm225, %v2332, %v2671
      %v3645 = vsel %vm225, %v2333, %v2673
      %v3646 = vsel %vm225, %v2334, %v2675
      %v3647 = vsel %vm225, %v2335, %v2677
      %v3648 = vsel %vm225, %v2336, %v2679
      %v3649 = vsel %vm225, %v2337, %v2681
      %v3650 = vsel %vm225, %v2338, %v2683
      %v3651 = vsel %vm225, %v2339, %v2685
      %v3652 = vsel %vm225, %v2340, %v2687
      %v3653 = vsel %vm225, %v2341, %v2689
      %v3654 = vsel %vm225, %v2342, %v2691
      %v3655 = vsel %vm225, %v2343, %v2693
      %v3656 = vsel %vm225, %v2344, %v2695
      %v3657 = vsel %vm225, %v2345, %v2697
      %v3658 = vsel %vm1681, %v3626, %v2763
      %v3659 = vsel %vm1681, %v3627, %v2765
      %v3660 = vsel %vm1681, %v3628, %v2767
      %v3661 = vsel %vm1681, %v3629, %v2769
      %v3662 = vsel %vm1681, %v3630, %v2771
      %v3663 = vsel %vm1681, %v3631, %v2773
      %v3664 = vsel %vm1681, %v3632, %v2775
      %v3665 = vsel %vm1681, %v3633, %v2777
      %v3666 = vsel %vm1681, %v3634, %v2779
      %v3667 = vsel %vm1681, %v3635, %v2781
      %v3668 = vsel %vm1681, %v3636, %v2783
      %v3669 = vsel %vm1681, %v3637, %v2785
      %v3670 = vsel %vm1681, %v3638, %v2787
      %v3671 = vsel %vm1681, %v3639, %v2789
      %v3672 = vsel %vm1681, %v3640, %v2791
      %v3673 = vsel %vm1681, %v3641, %v2793
      %v3674 = vsel %vm1681, %v3642, %v2795
      %v3675 = vsel %vm1681, %v3643, %v2797
      %v3676 = vsel %vm1681, %v3644, %v2799
      %v3677 = vsel %vm1681, %v3645, %v2801
      %v3678 = vsel %vm1681, %v3646, %v2803
      %v3679 = vsel %vm1681, %v3647, %v2805
      %v3680 = vsel %vm1681, %v3648, %v2807
      %v3681 = vsel %vm1681, %v3649, %v2809
      %v3682 = vsel %vm1681, %v3650, %v2811
      %v3683 = vsel %vm1681, %v3651, %v2813
      %v3684 = vsel %vm1681, %v3652, %v2815
      %v3685 = vsel %vm1681, %v3653, %v2817
      %v3686 = vsel %vm1681, %v3654, %v2819
      %v3687 = vsel %vm1681, %v3655, %v2821
      %v3688 = vsel %vm1681, %v3656, %v2823
      %v3689 = vsel %vm1681, %v3657, %v2825
      %v3690 = vsel %vm1714, %v3658, %v2891
      %v3691 = vsel %vm1714, %v3659, %v2893
      %v3692 = vsel %vm1714, %v3660, %v2895
      %v3693 = vsel %vm1714, %v3661, %v2897
      %v3694 = vsel %vm1714, %v3662, %v2899
      %v3695 = vsel %vm1714, %v3663, %v2901
      %v3696 = vsel %vm1714, %v3664, %v2903
      %v3697 = vsel %vm1714, %v3665, %v2905
      %v3698 = vsel %vm1714, %v3666, %v2907
      %v3699 = vsel %vm1714, %v3667, %v2909
      %v3700 = vsel %vm1714, %v3668, %v2911
      %v3701 = vsel %vm1714, %v3669, %v2913
      %v3702 = vsel %vm1714, %v3670, %v2915
      %v3703 = vsel %vm1714, %v3671, %v2917
      %v3704 = vsel %vm1714, %v3672, %v2919
      %v3705 = vsel %vm1714, %v3673, %v2921
      %v3706 = vsel %vm1714, %v3674, %v2923
      %v3707 = vsel %vm1714, %v3675, %v2925
      %v3708 = vsel %vm1714, %v3676, %v2927
      %v3709 = vsel %vm1714, %v3677, %v2929
      %v3710 = vsel %vm1714, %v3678, %v2931
      %v3711 = vsel %vm1714, %v3679, %v2933
      %v3712 = vsel %vm1714, %v3680, %v2935
      %v3713 = vsel %vm1714, %v3681, %v2937
      %v3714 = vsel %vm1714, %v3682, %v2939
      %v3715 = vsel %vm1714, %v3683, %v2941
      %v3716 = vsel %vm1714, %v3684, %v2943
      %v3717 = vsel %vm1714, %v3685, %v2945
      %v3718 = vsel %vm1714, %v3686, %v2947
      %v3719 = vsel %vm1714, %v3687, %v2949
      %v3720 = vsel %vm1714, %v3688, %v2951
      %v3721 = vsel %vm1714, %v3689, %v2953
      %v3722 = vsel %vm1747, %v3690, %v3019
      %v3723 = vsel %vm1747, %v3691, %v3021
      %v3724 = vsel %vm1747, %v3692, %v3023
      %v3725 = vsel %vm1747, %v3693, %v3025
      %v3726 = vsel %vm1747, %v3694, %v3027
      %v3727 = vsel %vm1747, %v3695, %v3029
      %v3728 = vsel %vm1747, %v3696, %v3031
      %v3729 = vsel %vm1747, %v3697, %v3033
      %v3730 = vsel %vm1747, %v3698, %v3035
      %v3731 = vsel %vm1747, %v3699, %v3037
      %v3732 = vsel %vm1747, %v3700, %v3039
      %v3733 = vsel %vm1747, %v3701, %v3041
      %v3734 = vsel %vm1747, %v3702, %v3043
      %v3735 = vsel %vm1747, %v3703, %v3045
      %v3736 = vsel %vm1747, %v3704, %v3047
      %v3737 = vsel %vm1747, %v3705, %v3049
      %v3738 = vsel %vm1747, %v3706, %v3051
      %v3739 = vsel %vm1747, %v3707, %v3053
      %v3740 = vsel %vm1747, %v3708, %v3055
      %v3741 = vsel %vm1747, %v3709, %v3057
      %v3742 = vsel %vm1747, %v3710, %v3059
      %v3743 = vsel %vm1747, %v3711, %v3061
      %v3744 = vsel %vm1747, %v3712, %v3063
      %v3745 = vsel %vm1747, %v3713, %v3065
      %v3746 = vsel %vm1747, %v3714, %v3067
      %v3747 = vsel %vm1747, %v3715, %v3069
      %v3748 = vsel %vm1747, %v3716, %v3071
      %v3749 = vsel %vm1747, %v3717, %v3073
      %v3750 = vsel %vm1747, %v3718, %v3075
      %v3751 = vsel %vm1747, %v3719, %v3077
      %v3752 = vsel %vm1747, %v3720, %v3079
      %v3753 = vsel %vm1747, %v3721, %v3081
      %v3754 = vsel %vm1780, %v3722, %v3147
      %v3755 = vsel %vm1780, %v3723, %v3149
      %v3756 = vsel %vm1780, %v3724, %v3151
      %v3757 = vsel %vm1780, %v3725, %v3153
      %v3758 = vsel %vm1780, %v3726, %v3155
      %v3759 = vsel %vm1780, %v3727, %v3157
      %v3760 = vsel %vm1780, %v3728, %v3159
      %v3761 = vsel %vm1780, %v3729, %v3161
      %v3762 = vsel %vm1780, %v3730, %v3163
      %v3763 = vsel %vm1780, %v3731, %v3165
      %v3764 = vsel %vm1780, %v3732, %v3167
      %v3765 = vsel %vm1780, %v3733, %v3169
      %v3766 = vsel %vm1780, %v3734, %v3171
      %v3767 = vsel %vm1780, %v3735, %v3173
      %v3768 = vsel %vm1780, %v3736, %v3175
      %v3769 = vsel %vm1780, %v3737, %v3177
      %v3770 = vsel %vm1780, %v3738, %v3179
      %v3771 = vsel %vm1780, %v3739, %v3181
      %v3772 = vsel %vm1780, %v3740, %v3183
      %v3773 = vsel %vm1780, %v3741, %v3185
      %v3774 = vsel %vm1780, %v3742, %v3187
      %v3775 = vsel %vm1780, %v3743, %v3189
      %v3776 = vsel %vm1780, %v3744, %v3191
      %v3777 = vsel %vm1780, %v3745, %v3193
      %v3778 = vsel %vm1780, %v3746, %v3195
      %v3779 = vsel %vm1780, %v3747, %v3197
      %v3780 = vsel %vm1780, %v3748, %v3199
      %v3781 = vsel %vm1780, %v3749, %v3201
      %v3782 = vsel %vm1780, %v3750, %v3203
      %v3783 = vsel %vm1780, %v3751, %v3205
      %v3784 = vsel %vm1780, %v3752, %v3207
      %v3785 = vsel %vm1780, %v3753, %v3209
      %v3786 = vsel %vm1813, %v3754, %v3275
      %v3787 = vsel %vm1813, %v3755, %v3277
      %v3788 = vsel %vm1813, %v3756, %v3279
      %v3789 = vsel %vm1813, %v3757, %v3281
      %v3790 = vsel %vm1813, %v3758, %v3283
      %v3791 = vsel %vm1813, %v3759, %v3285
      %v3792 = vsel %vm1813, %v3760, %v3287
      %v3793 = vsel %vm1813, %v3761, %v3289
      %v3794 = vsel %vm1813, %v3762, %v3291
      %v3795 = vsel %vm1813, %v3763, %v3293
      %v3796 = vsel %vm1813, %v3764, %v3295
      %v3797 = vsel %vm1813, %v3765, %v3297
      %v3798 = vsel %vm1813, %v3766, %v3299
      %v3799 = vsel %vm1813, %v3767, %v3301
      %v3800 = vsel %vm1813, %v3768, %v3303
      %v3801 = vsel %vm1813, %v3769, %v3305
      %v3802 = vsel %vm1813, %v3770, %v3307
      %v3803 = vsel %vm1813, %v3771, %v3309
      %v3804 = vsel %vm1813, %v3772, %v3311
      %v3805 = vsel %vm1813, %v3773, %v3313
      %v3806 = vsel %vm1813, %v3774, %v3315
      %v3807 = vsel %vm1813, %v3775, %v3317
      %v3808 = vsel %vm1813, %v3776, %v3319
      %v3809 = vsel %vm1813, %v3777, %v3321
      %v3810 = vsel %vm1813, %v3778, %v3323
      %v3811 = vsel %vm1813, %v3779, %v3325
      %v3812 = vsel %vm1813, %v3780, %v3327
      %v3813 = vsel %vm1813, %v3781, %v3329
      %v3814 = vsel %vm1813, %v3782, %v3331
      %v3815 = vsel %vm1813, %v3783, %v3333
      %v3816 = vsel %vm1813, %v3784, %v3335
      %v3817 = vsel %vm1813, %v3785, %v3337
      %v3818 = vsel %vm1846, %v3786, %v3403
      %v3819 = vsel %vm1846, %v3787, %v3405
      %v3820 = vsel %vm1846, %v3788, %v3407
      %v3821 = vsel %vm1846, %v3789, %v3409
      %v3822 = vsel %vm1846, %v3790, %v3411
      %v3823 = vsel %vm1846, %v3791, %v3413
      %v3824 = vsel %vm1846, %v3792, %v3415
      %v3825 = vsel %vm1846, %v3793, %v3417
      %v3826 = vsel %vm1846, %v3794, %v3419
      %v3827 = vsel %vm1846, %v3795, %v3421
      %v3828 = vsel %vm1846, %v3796, %v3423
      %v3829 = vsel %vm1846, %v3797, %v3425
      %v3830 = vsel %vm1846, %v3798, %v3427
      %v3831 = vsel %vm1846, %v3799, %v3429
      %v3832 = vsel %vm1846, %v3800, %v3431
      %v3833 = vsel %vm1846, %v3801, %v3433
      %v3834 = vsel %vm1846, %v3802, %v3435
      %v3835 = vsel %vm1846, %v3803, %v3437
      %v3836 = vsel %vm1846, %v3804, %v3439
      %v3837 = vsel %vm1846, %v3805, %v3441
      %v3838 = vsel %vm1846, %v3806, %v3443
      %v3839 = vsel %vm1846, %v3807, %v3445
      %v3840 = vsel %vm1846, %v3808, %v3447
      %v3841 = vsel %vm1846, %v3809, %v3449
      %v3842 = vsel %vm1846, %v3810, %v3451
      %v3843 = vsel %vm1846, %v3811, %v3453
      %v3844 = vsel %vm1846, %v3812, %v3455
      %v3845 = vsel %vm1846, %v3813, %v3457
      %v3846 = vsel %vm1846, %v3814, %v3459
      %v3847 = vsel %vm1846, %v3815, %v3461
      %v3848 = vsel %vm1846, %v3816, %v3463
      %v3849 = vsel %vm1846, %v3817, %v3465
      %v3850 = vsel %vm1879, %v3818, %v3531
      %v3851 = vsel %vm1879, %v3819, %v3533
      %v3852 = vsel %vm1879, %v3820, %v3535
      %v3853 = vsel %vm1879, %v3821, %v3537
      %v3854 = vsel %vm1879, %v3822, %v3539
      %v3855 = vsel %vm1879, %v3823, %v3541
      %v3856 = vsel %vm1879, %v3824, %v3543
      %v3857 = vsel %vm1879, %v3825, %v3545
      %v3858 = vsel %vm1879, %v3826, %v3547
      %v3859 = vsel %vm1879, %v3827, %v3549
      %v3860 = vsel %vm1879, %v3828, %v3551
      %v3861 = vsel %vm1879, %v3829, %v3553
      %v3862 = vsel %vm1879, %v3830, %v3555
      %v3863 = vsel %vm1879, %v3831, %v3557
      %v3864 = vsel %vm1879, %v3832, %v3559
      %v3865 = vsel %vm1879, %v3833, %v3561
      %v3866 = vsel %vm1879, %v3834, %v3563
      %v3867 = vsel %vm1879, %v3835, %v3565
      %v3868 = vsel %vm1879, %v3836, %v3567
      %v3869 = vsel %vm1879, %v3837, %v3569
      %v3870 = vsel %vm1879, %v3838, %v3571
      %v3871 = vsel %vm1879, %v3839, %v3573
      %v3872 = vsel %vm1879, %v3840, %v3575
      %v3873 = vsel %vm1879, %v3841, %v3577
      %v3874 = vsel %vm1879, %v3842, %v3579
      %v3875 = vsel %vm1879, %v3843, %v3581
      %v3876 = vsel %vm1879, %v3844, %v3583
      %v3877 = vsel %vm1879, %v3845, %v3585
      %v3878 = vsel %vm1879, %v3846, %v3587
      %v3879 = vsel %vm1879, %v3847, %v3589
      %v3880 = vsel %vm1879, %v3848, %v3591
      %v3881 = vsel %vm1879, %v3849, %v3593
      %v3882 = vld [vmem:[%s3] sm:$0xff]
      %v3883 = vld [vmem:[%s3 + $0x8] sm:$0xff]
      %v3884 = vld [vmem:[%s3 + $0x10] sm:$0xff]
      %v3885 = vld [vmem:[%s3 + $0x18] sm:$0xff]
      %v3886 = vld [vmem:[%s3 + $0x20] sm:$0xf]
      %v3887 = vld [vmem:[%s4] sm:$0x1]
      %v3889 = vlaneseq
      %v3890 = vshrl.u32 %v3889, 7
      %v3891 = vsub.s32 0, %v3890
      %v3892 = vrot.slane %v3887, %v3891
      %v3895 = vsel %vm1924, %v3850, 0
      %v3898 = vsel %vm1924, %v3851, 0
      %v3901 = vsel %vm1924, %v3852, 0
      %v3904 = vsel %vm1924, %v3853, 0
      %v3907 = vsel %vm1924, %v3854, 0
      %v3910 = vsel %vm1924, %v3855, 0
      %v3913 = vsel %vm1924, %v3856, 0
      %v3916 = vsel %vm1924, %v3857, 0
      %v3919 = vsel %vm1924, %v3858, 0
      %v3922 = vsel %vm1924, %v3859, 0
      %v3925 = vsel %vm1924, %v3860, 0
      %v3928 = vsel %vm1924, %v3861, 0
      %v3931 = vsel %vm1924, %v3862, 0
      %v3934 = vsel %vm1924, %v3863, 0
      %v3937 = vsel %vm1924, %v3864, 0
      %v3940 = vsel %vm1924, %v3865, 0
      %v3943 = vsel %vm1924, %v3866, 0
      %v3946 = vsel %vm1924, %v3867, 0
      %v3949 = vsel %vm1924, %v3868, 0
      %v3952 = vsel %vm1924, %v3869, 0
      %v3955 = vsel %vm1924, %v3870, 0
      %v3958 = vsel %vm1924, %v3871, 0
      %v3961 = vsel %vm1924, %v3872, 0
      %v3964 = vsel %vm1924, %v3873, 0
      %v3967 = vsel %vm1924, %v3874, 0
      %v3970 = vsel %vm1924, %v3875, 0
      %v3973 = vsel %vm1924, %v3876, 0
      %v3976 = vsel %vm1924, %v3877, 0
      %v3979 = vsel %vm1924, %v3878, 0
      %v3982 = vsel %vm1924, %v3879, 0
      %v3985 = vsel %vm1924, %v3880, 0
      %v3988 = vsel %vm1924, %v3881, 0
      %v3991 = vsel %vm2021, %v3886, 0
      %3993 = vmatprep.subr.mxu0 0.0
      %3994 = vmatpush1.msra.mxu0 %v3882
      %3995 = vmatprep.subr.mxu0 0.0
      %3996 = vmatpush1.msra.mxu0 %v3883
      %3997 = vmatprep.subr.mxu0 0.0
      %3998 = vmatpush1.msra.mxu0 %v3884
      %3999 = vmatprep.subr.mxu0 0.0
      %4000 = vmatpush1.msra.mxu0 %v3885
      %4001 = vmatprep.subr.mxu0 0.0
      %4002 = vmatpush1.msra.mxu0 %v3991
      %4003 = vmatprep.subr.mxu0 0.0
      %4004 = vmatpush1.msra.mxu0 0.0
      %4005 = vmatprep.subr.mxu0 0.0
      %4006 = vmatpush1.msra.mxu0 0.0
      %4007 = vmatprep.subr.mxu0 0.0
      %4008 = vmatpush1.msra.mxu0 0.0
      %4009 = vmatprep.subr.mxu0 0.0
      %4010 = vmatpush1.msra.mxu0 0.0
      %4011 = vmatprep.subr.mxu0 0.0
      %4012 = vmatpush1.msra.mxu0 0.0
      %4013 = vmatprep.subr.mxu0 0.0
      %4014 = vmatpush1.msra.mxu0 0.0
      %4015 = vmatprep.subr.mxu0 0.0
      %4016 = vmatpush1.msra.mxu0 0.0
      %4017 = vmatprep.subr.mxu0 0.0
      %4018 = vmatpush1.msra.mxu0 0.0
      %4019 = vmatprep.subr.mxu0 0.0
      %4020 = vmatpush1.msra.mxu0 0.0
      %4021 = vmatprep.subr.mxu0 0.0
      %4022 = vmatpush1.msra.mxu0 0.0
      %4023 = vmatprep.subr.mxu0 0.0
      %4024 = vmatpush1.msra.mxu0 0.0
      %4025 = vmatprep.subr.mxu0 0.0
      %4026 = vmatpush1.msra.mxu0 0.0
      %4027 = vmatprep.subr.mxu0 0.0
      %4028 = vmatpush1.msra.mxu0 0.0
      %4029 = vmatprep.subr.mxu0 0.0
      %4030 = vmatpush1.msra.mxu0 0.0
      %4031 = vmatprep.subr.mxu0 0.0
      %4032 = vmatpush1.msra.mxu0 0.0
      %4033 = vmatprep.subr.mxu0 0.0
      %4034 = vmatpush1.msra.mxu0 0.0
      %4035 = vmatprep.subr.mxu0 0.0
      %4036 = vmatpush1.msra.mxu0 0.0
      %4037 = vmatprep.subr.mxu0 0.0
      %4038 = vmatpush1.msra.mxu0 0.0
      %4039 = vmatprep.subr.mxu0 0.0
      %4040 = vmatpush1.msra.mxu0 0.0
      %4041 = vmatprep.subr.mxu0 0.0
      %4042 = vmatpush1.msra.mxu0 0.0
      %4043 = vmatprep.subr.mxu0 0.0
      %4044 = vmatpush1.msra.mxu0 0.0
      %4045 = vmatprep.subr.mxu0 0.0
      %4046 = vmatpush1.msra.mxu0 0.0
      %4047 = vmatprep.subr.mxu0 0.0
      %4048 = vmatpush1.msra.mxu0 0.0
      %4049 = vmatprep.subr.mxu0 0.0
      %4050 = vmatpush1.msra.mxu0 0.0
      %4051 = vmatprep.subr.mxu0 0.0
      %4052 = vmatpush1.msra.mxu0 0.0
      %4053 = vmatprep.subr.mxu0 0.0
      %4054 = vmatpush1.msra.mxu0 0.0
      %4055 = vmatprep.subr.mxu0 0.0
      %4056 = vmatpush1.msra.mxu0 0.0
      %4057 = vmatprep.mubr.f32.mxu0 0.0
      %4058 = vmatmul.mubr.f32.gmra.mrb[0].mxu0 %v3895
      %v4059 = vpop.f32.mrb[0].mxu0
      %v4060 = vadd.f32 %v3892, %v4059
      %v4061 = vpop.f32.mrb[0].mxu0
      %4062 = vmatprep.mubr.f32.mxu0 0.0
      %4063 = vmatmul.mubr.f32.gmra.mrb[0].mxu0 %v3898
      %v4064 = vpop.f32.mrb[0].mxu0
      %v4065 = vadd.f32 %v3892, %v4064
      %v4066 = vpop.f32.mrb[0].mxu0
      %4067 = vmatprep.mubr.f32.mxu0 0.0
      %4068 = vmatmul.mubr.f32.gmra.mrb[0].mxu0 %v3901
      %v4069 = vpop.f32.mrb[0].mxu0
      %v4070 = vadd.f32 %v3892, %v4069
      %v4071 = vpop.f32.mrb[0].mxu0
      %4072 = vmatprep.mubr.f32.mxu0 0.0
      %4073 = vmatmul.mubr.f32.gmra.mrb[0].mxu0 %v3904
      %v4074 = vpop.f32.mrb[0].mxu0
      %v4075 = vadd.f32 %v3892, %v4074
      %v4076 = vpop.f32.mrb[0].mxu0
      %4077 = vmatprep.mubr.f32.mxu0 0.0
      %4078 = vmatmul.mubr.f32.gmra.mrb[0].mxu0 %v3907
      %v4079 = vpop.f32.mrb[0].mxu0
      %v4080 = vadd.f32 %v3892, %v4079
      %v4081 = vpop.f32.mrb[0].mxu0
      %4082 = vmatprep.mubr.f32.mxu0 0.0
      %4083 = vmatmul.mubr.f32.gmra.mrb[0].mxu0 %v3910
      %v4084 = vpop.f32.mrb[0].mxu0
      %v4085 = vadd.f32 %v3892, %v4084
      %v4086 = vpop.f32.mrb[0].mxu0
      %4087 = vmatprep.mubr.f32.mxu0 0.0
      %4088 = vmatmul.mubr.f32.gmra.mrb[0].mxu0 %v3913
      %v4089 = vpop.f32.mrb[0].mxu0
      %v4090 = vadd.f32 %v3892, %v4089
      %v4091 = vpop.f32.mrb[0].mxu0
      %4092 = vmatprep.mubr.f32.mxu0 0.0
      %4093 = vmatmul.mubr.f32.gmra.mrb[0].mxu0 %v3916
      %v4094 = vpop.f32.mrb[0].mxu0
      %v4095 = vadd.f32 %v3892, %v4094
      %v4096 = vpop.f32.mrb[0].mxu0
      %4097 = vmatprep.mubr.f32.mxu0 0.0
      %4098 = vmatmul.mubr.f32.gmra.mrb[0].mxu0 %v3919
      %v4099 = vpop.f32.mrb[0].mxu0
      %v4100 = vadd.f32 %v3892, %v4099
      %v4101 = vpop.f32.mrb[0].mxu0
      %4102 = vmatprep.mubr.f32.mxu0 0.0
      %4103 = vmatmul.mubr.f32.gmra.mrb[0].mxu0 %v3922
      %v4104 = vpop.f32.mrb[0].mxu0
      %v4105 = vadd.f32 %v3892, %v4104
      %v4106 = vpop.f32.mrb[0].mxu0
      %4107 = vmatprep.mubr.f32.mxu0 0.0
      %4108 = vmatmul.mubr.f32.gmra.mrb[0].mxu0 %v3925
      %v4109 = vpop.f32.mrb[0].mxu0
      %v4110 = vadd.f32 %v3892, %v4109
      %v4111 = vpop.f32.mrb[0].mxu0
      %4112 = vmatprep.mubr.f32.mxu0 0.0
      %4113 = vmatmul.mubr.f32.gmra.mrb[0].mxu0 %v3928
      %v4114 = vpop.f32.mrb[0].mxu0
      %v4115 = vadd.f32 %v3892, %v4114
      %v4116 = vpop.f32.mrb[0].mxu0
      %4117 = vmatprep.mubr.f32.mxu0 0.0
      %4118 = vmatmul.mubr.f32.gmra.mrb[0].mxu0 %v3931
      %v4119 = vpop.f32.mrb[0].mxu0
      %v4120 = vadd.f32 %v3892, %v4119
      %v4121 = vpop.f32.mrb[0].mxu0
      %4122 = vmatprep.mubr.f32.mxu0 0.0
      %4123 = vmatmul.mubr.f32.gmra.mrb[0].mxu0 %v3934
      %v4124 = vpop.f32.mrb[0].mxu0
      %v4125 = vadd.f32 %v3892, %v4124
      %v4126 = vpop.f32.mrb[0].mxu0
      %4127 = vmatprep.mubr.f32.mxu0 0.0
      %4128 = vmatmul.mubr.f32.gmra.mrb[0].mxu0 %v3937
      %v4129 = vpop.f32.mrb[0].mxu0
      %v4130 = vadd.f32 %v3892, %v4129
      %v4131 = vpop.f32.mrb[0].mxu0
      %4132 = vmatprep.mubr.f32.mxu0 0.0
      %4133 = vmatmul.mubr.f32.gmra.mrb[0].mxu0 %v3940
      %v4134 = vpop.f32.mrb[0].mxu0
      %v4135 = vadd.f32 %v3892, %v4134
      %v4136 = vpop.f32.mrb[0].mxu0
      %4137 = vmatprep.mubr.f32.mxu0 0.0
      %4138 = vmatmul.mubr.f32.gmra.mrb[0].mxu0 %v3943
      %v4139 = vpop.f32.mrb[0].mxu0
      %v4140 = vadd.f32 %v3892, %v4139
      %v4141 = vpop.f32.mrb[0].mxu0
      %4142 = vmatprep.mubr.f32.mxu0 0.0
      %4143 = vmatmul.mubr.f32.gmra.mrb[0].mxu0 %v3946
      %v4144 = vpop.f32.mrb[0].mxu0
      %v4145 = vadd.f32 %v3892, %v4144
      %v4146 = vpop.f32.mrb[0].mxu0
      %4147 = vmatprep.mubr.f32.mxu0 0.0
      %4148 = vmatmul.mubr.f32.gmra.mrb[0].mxu0 %v3949
      %v4149 = vpop.f32.mrb[0].mxu0
      %v4150 = vadd.f32 %v3892, %v4149
      %v4151 = vpop.f32.mrb[0].mxu0
      %4152 = vmatprep.mubr.f32.mxu0 0.0
      %4153 = vmatmul.mubr.f32.gmra.mrb[0].mxu0 %v3952
      %v4154 = vpop.f32.mrb[0].mxu0
      %v4155 = vadd.f32 %v3892, %v4154
      %v4156 = vpop.f32.mrb[0].mxu0
      %4157 = vmatprep.mubr.f32.mxu0 0.0
      %4158 = vmatmul.mubr.f32.gmra.mrb[0].mxu0 %v3955
      %v4159 = vpop.f32.mrb[0].mxu0
      %v4160 = vadd.f32 %v3892, %v4159
      %v4161 = vpop.f32.mrb[0].mxu0
      %4162 = vmatprep.mubr.f32.mxu0 0.0
      %4163 = vmatmul.mubr.f32.gmra.mrb[0].mxu0 %v3958
      %v4164 = vpop.f32.mrb[0].mxu0
      %v4165 = vadd.f32 %v3892, %v4164
      %v4166 = vpop.f32.mrb[0].mxu0
      %4167 = vmatprep.mubr.f32.mxu0 0.0
      %4168 = vmatmul.mubr.f32.gmra.mrb[0].mxu0 %v3961
      %v4169 = vpop.f32.mrb[0].mxu0
      %v4170 = vadd.f32 %v3892, %v4169
      %v4171 = vpop.f32.mrb[0].mxu0
      %4172 = vmatprep.mubr.f32.mxu0 0.0
      %4173 = vmatmul.mubr.f32.gmra.mrb[0].mxu0 %v3964
      %v4174 = vpop.f32.mrb[0].mxu0
      %v4175 = vadd.f32 %v3892, %v4174
      %v4176 = vpop.f32.mrb[0].mxu0
      %4177 = vmatprep.mubr.f32.mxu0 0.0
      %4178 = vmatmul.mubr.f32.gmra.mrb[0].mxu0 %v3967
      %v4179 = vpop.f32.mrb[0].mxu0
      %v4180 = vadd.f32 %v3892, %v4179
      %v4181 = vpop.f32.mrb[0].mxu0
      %4182 = vmatprep.mubr.f32.mxu0 0.0
      %4183 = vmatmul.mubr.f32.gmra.mrb[0].mxu0 %v3970
      %v4184 = vpop.f32.mrb[0].mxu0
      %v4185 = vadd.f32 %v3892, %v4184
      %v4186 = vpop.f32.mrb[0].mxu0
      %4187 = vmatprep.mubr.f32.mxu0 0.0
      %4188 = vmatmul.mubr.f32.gmra.mrb[0].mxu0 %v3973
      %v4189 = vpop.f32.mrb[0].mxu0
      %v4190 = vadd.f32 %v3892, %v4189
      %v4191 = vpop.f32.mrb[0].mxu0
      %4192 = vmatprep.mubr.f32.mxu0 0.0
      %4193 = vmatmul.mubr.f32.gmra.mrb[0].mxu0 %v3976
      %v4194 = vpop.f32.mrb[0].mxu0
      %v4195 = vadd.f32 %v3892, %v4194
      %v4196 = vpop.f32.mrb[0].mxu0
      %4197 = vmatprep.mubr.f32.mxu0 0.0
      %4198 = vmatmul.mubr.f32.gmra.mrb[0].mxu0 %v3979
      %v4199 = vpop.f32.mrb[0].mxu0
      %v4200 = vadd.f32 %v3892, %v4199
      %v4201 = vpop.f32.mrb[0].mxu0
      %4202 = vmatprep.mubr.f32.mxu0 0.0
      %4203 = vmatmul.mubr.f32.gmra.mrb[0].mxu0 %v3982
      %v4204 = vpop.f32.mrb[0].mxu0
      %v4205 = vadd.f32 %v3892, %v4204
      %v4206 = vpop.f32.mrb[0].mxu0
      %4207 = vmatprep.mubr.f32.mxu0 0.0
      %4208 = vmatmul.mubr.f32.gmra.mrb[0].mxu0 %v3985
      %v4209 = vpop.f32.mrb[0].mxu0
      %v4210 = vadd.f32 %v3892, %v4209
      %v4211 = vpop.f32.mrb[0].mxu0
      %4212 = vmatprep.mubr.f32.mxu0 0.0
      %4213 = vmatmul.mubr.f32.gmra.mrb[0].mxu0 %v3988
      %v4214 = vpop.f32.mrb[0].mxu0
      %v4215 = vadd.f32 %v3892, %v4214
      %v4216 = vpop.f32.mrb[0].mxu0
      %4217 = vdwg.mxu0
      %v4218 = vadd.f32 %v4060, %v271
      %v4219 = vadd.f32 %v4065, %v272
      %v4220 = vadd.f32 %v4070, %v273
      %v4221 = vadd.f32 %v4075, %v274
      %v4222 = vadd.f32 %v4080, %v275
      %v4223 = vadd.f32 %v4085, %v276
      %v4224 = vadd.f32 %v4090, %v277
      %v4225 = vadd.f32 %v4095, %v278
      %v4226 = vadd.f32 %v4100, %v279
      %v4227 = vadd.f32 %v4105, %v280
      %v4228 = vadd.f32 %v4110, %v281
      %v4229 = vadd.f32 %v4115, %v282
      %v4230 = vadd.f32 %v4120, %v283
      %v4231 = vadd.f32 %v4125, %v284
      %v4232 = vadd.f32 %v4130, %v285
      %v4233 = vadd.f32 %v4135, %v286
      %v4234 = vadd.f32 %v4140, %v287
      %v4235 = vadd.f32 %v4145, %v288
      %v4236 = vadd.f32 %v4150, %v289
      %v4237 = vadd.f32 %v4155, %v290
      %v4238 = vadd.f32 %v4160, %v291
      %v4239 = vadd.f32 %v4165, %v292
      %v4240 = vadd.f32 %v4170, %v293
      %v4241 = vadd.f32 %v4175, %v294
      %v4242 = vadd.f32 %v4180, %v295
      %v4243 = vadd.f32 %v4185, %v296
      %v4244 = vadd.f32 %v4190, %v297
      %v4245 = vadd.f32 %v4195, %v298
      %v4246 = vadd.f32 %v4200, %v299
      %v4247 = vadd.f32 %v4205, %v300
      %v4248 = vadd.f32 %v4210, %v301
      %v4249 = vadd.f32 %v4215, %v302
      %v4250 = vmax.f32 %v4218, 0.0
      %v4251 = vmax.f32 %v4219, 0.0
      %v4252 = vmax.f32 %v4220, 0.0
      %v4253 = vmax.f32 %v4221, 0.0
      %v4254 = vmax.f32 %v4222, 0.0
      %v4255 = vmax.f32 %v4223, 0.0
      %v4256 = vmax.f32 %v4224, 0.0
      %v4257 = vmax.f32 %v4225, 0.0
      %v4258 = vmax.f32 %v4226, 0.0
      %v4259 = vmax.f32 %v4227, 0.0
      %v4260 = vmax.f32 %v4228, 0.0
      %v4261 = vmax.f32 %v4229, 0.0
      %v4262 = vmax.f32 %v4230, 0.0
      %v4263 = vmax.f32 %v4231, 0.0
      %v4264 = vmax.f32 %v4232, 0.0
      %v4265 = vmax.f32 %v4233, 0.0
      %v4266 = vmax.f32 %v4234, 0.0
      %v4267 = vmax.f32 %v4235, 0.0
      %v4268 = vmax.f32 %v4236, 0.0
      %v4269 = vmax.f32 %v4237, 0.0
      %v4270 = vmax.f32 %v4238, 0.0
      %v4271 = vmax.f32 %v4239, 0.0
      %v4272 = vmax.f32 %v4240, 0.0
      %v4273 = vmax.f32 %v4241, 0.0
      %v4274 = vmax.f32 %v4242, 0.0
      %v4275 = vmax.f32 %v4243, 0.0
      %v4276 = vmax.f32 %v4244, 0.0
      %v4277 = vmax.f32 %v4245, 0.0
      %v4278 = vmax.f32 %v4246, 0.0
      %v4279 = vmax.f32 %v4247, 0.0
      %v4280 = vmax.f32 %v4248, 0.0
      %v4281 = vmax.f32 %v4249, 0.0
      %4282 = vst.msk [vmem:[%s224] sm:$0xff] %vm225, %v4250
      %4283 = vst.msk [vmem:[%s224 + $0x8] sm:$0xff] %vm225, %v4251
      %4284 = vst.msk [vmem:[%s224 + $0x10] sm:$0xff] %vm225, %v4252
      %4285 = vst.msk [vmem:[%s224 + $0x18] sm:$0xff] %vm225, %v4253
      %4286 = vst.msk [vmem:[%s224 + $0x20] sm:$0xff] %vm225, %v4254
      %4287 = vst.msk [vmem:[%s224 + $0x28] sm:$0xff] %vm225, %v4255
      %4288 = vst.msk [vmem:[%s224 + $0x30] sm:$0xff] %vm225, %v4256
      %4289 = vst.msk [vmem:[%s224 + $0x38] sm:$0xff] %vm225, %v4257
      %4290 = vst.msk [vmem:[%s224 + $0x40] sm:$0xff] %vm225, %v4258
      %4291 = vst.msk [vmem:[%s224 + $0x48] sm:$0xff] %vm225, %v4259
      %4292 = vst.msk [vmem:[%s224 + $0x50] sm:$0xff] %vm225, %v4260
      %4293 = vst.msk [vmem:[%s224 + $0x58] sm:$0xff] %vm225, %v4261
      %4294 = vst.msk [vmem:[%s224 + $0x60] sm:$0xff] %vm225, %v4262
      %4295 = vst.msk [vmem:[%s224 + $0x68] sm:$0xff] %vm225, %v4263
      %4296 = vst.msk [vmem:[%s224 + $0x70] sm:$0xff] %vm225, %v4264
      %4297 = vst.msk [vmem:[%s224 + $0x78] sm:$0xff] %vm225, %v4265
      %4298 = vst.msk [vmem:[%s224 + $0x80] sm:$0xff] %vm225, %v4266
      %4299 = vst.msk [vmem:[%s224 + $0x88] sm:$0xff] %vm225, %v4267
      %4300 = vst.msk [vmem:[%s224 + $0x90] sm:$0xff] %vm225, %v4268
      %4301 = vst.msk [vmem:[%s224 + $0x98] sm:$0xff] %vm225, %v4269
      %4302 = vst.msk [vmem:[%s224 + $0xa0] sm:$0xff] %vm225, %v4270
      %4303 = vst.msk [vmem:[%s224 + $0xa8] sm:$0xff] %vm225, %v4271
      %4304 = vst.msk [vmem:[%s224 + $0xb0] sm:$0xff] %vm225, %v4272
      %4305 = vst.msk [vmem:[%s224 + $0xb8] sm:$0xff] %vm225, %v4273
      %4306 = vst.msk [vmem:[%s224 + $0xc0] sm:$0xff] %vm225, %v4274
      %4307 = vst.msk [vmem:[%s224 + $0xc8] sm:$0xff] %vm225, %v4275
      %4308 = vst.msk [vmem:[%s224 + $0xd0] sm:$0xff] %vm225, %v4276
      %4309 = vst.msk [vmem:[%s224 + $0xd8] sm:$0xff] %vm225, %v4277
      %4310 = vst.msk [vmem:[%s224 + $0xe0] sm:$0xff] %vm225, %v4278
      %4311 = vst.msk [vmem:[%s224 + $0xe8] sm:$0xff] %vm225, %v4279
      %4312 = vst.msk [vmem:[%s224 + $0xf0] sm:$0xff] %vm225, %v4280
      %4313 = vst.msk [vmem:[%s224 + $0xf8] sm:$0xff] %vm225, %v4281
      %p4314 = scmp.lt.s32.totalorder %s16, 1
      %s4315 = scalar_select %p4314, %s16, 1
      %s4316 = smul.addr %s4315, 32
      %s4317 = smul.addr %s4316, 8
      %s4318 = scalar_lea.vmem %s5, %s4317
      // Predicated region
      $region41: #{basic_block_forward.1} parent=39 // pred_check
        %p4319 = pneg %p144
      $region42: #{basic_block_forward.1} parent=39 // pred_check_branch
        %4321 = sbr.rel (%p4319) target = $region44
      $region43: #{basic_block_forward.1} parent=39 // pred_region
        _
      $region44: #{basic_block_forward.1} parent=39 // pred_fallthru
        _
    $region40: #{basic_block_forward.1} parent=5 // pred_fallthru
      _
    %p4322 = scmp.le.s32.totalorder 2, %s11
    // Predicated region
    $region45: #{basic_block_forward.1} parent=5 // pred_check
      %p4323 = pneg %p4322
    $region46: #{basic_block_forward.1} parent=5 // pred_check_branch
      %4325 = sbr.rel (%p4323) target = $region48
    $region47: #{basic_block_forward.1} parent=5 // pred_region
      %s4326 = ssub.s32 %s11, 2
      // Predicated region
      $region49: #{basic_block_forward.1} parent=47 // pred_check
        %p4327 = pneg %p150
      $region50: #{basic_block_forward.1} parent=47 // pred_check_branch
        %4329 = sbr.rel (%p4327) target = $region52
      $region51: #{basic_block_forward.1} parent=47 // pred_region
        %p4330 = scmp.lt.s32.totalorder %s17, 1
        %s4331 = scalar_select %p4330, %s17, 1
        %s4332 = smul.addr %s4331, 32
        %s4333 = smul.addr %s4332, 8
        %s4334 = scalar_lea.vmem %s5, %s4333
      $region52: #{basic_block_forward.1} parent=47 // pred_fallthru
        _
    $region48: #{basic_block_forward.1} parent=5 // pred_fallthru
      _
  $region6: #{basic_block_forward.1} parent=0 // loop_footer
    %s15 = sadd.s32 1, %s11
  $region7: #{basic_block_forward.1} parent=0 // loop_footer_branch
    %10 = sbr.rel target = $region3
  $region8: #{basic_block_forward.1} parent=0 // loop_exit
    _

</llo_original>
